<compile_context>
chip_gen: v7x
topology: tpu7x:2x2x1
jax: 0.10.0
libtpu: 0.0.40
codegen_flags: <defaults>
</compile_context>

<pallas_src>
import functools

import jax
import jax.numpy as jnp
import numpy as np
from jax import lax
from jax.experimental import pallas as pl
from jax.experimental.pallas import tpu as pltpu

_VMEM_LIMIT = 32 * 1024 * 1024


def _fit_tile(dim, target, align):
    """Largest multiple of `align` that divides `dim` and is <= max(target, align)."""
    assert dim % align == 0, (dim, align)
    t = min(max(target, align), dim)
    t = (t // align) * align
    while dim % t:
        t -= align
    return t


# ----------------------------------------------------------------------------
# Kernel 1: tiled parallel matmul + bias (one-time fold E_proj = emb @ W_ih + b).
# Only used when T*B > V (otherwise the direct path is cheaper — see review).
# ----------------------------------------------------------------------------
def matmul_bias_kernel(a_ref, b_ref, bias_ref, o_ref, acc_ref):
    @pl.when(pl.program_id(2) == 0)
    def _():
        acc_ref[...] = jnp.zeros_like(acc_ref)

    acc_ref[...] += jnp.dot(a_ref[...], b_ref[...],
                            preferred_element_type=jnp.float32)

    @pl.when(pl.program_id(2) == pl.num_programs(2) - 1)
    def _():
        o_ref[...] = (acc_ref[...] + bias_ref[...]).astype(o_ref.dtype)


def matmul_bias(a, b, bias, *, tm=256, tn=256, tk=512):
    """a: (M, K), b: (K, N), bias: (1, N) -> (M, N) f32."""
    M, K = a.shape
    _, N = b.shape
    tm = _fit_tile(M, tm, 8)
    tn = _fit_tile(N, tn, 128)
    tk = _fit_tile(K, tk, 128)

    grid_spec = pltpu.PrefetchScalarGridSpec(
        num_scalar_prefetch=0,
        grid=(M // tm, N // tn, K // tk),
        in_specs=[
            pl.BlockSpec((tm, tk), lambda i, j, k: (i, k)),
            pl.BlockSpec((tk, tn), lambda i, j, k: (k, j)),
            pl.BlockSpec((1, tn), lambda i, j, k: (0, j)),
        ],
        out_specs=pl.BlockSpec((tm, tn), lambda i, j, k: (i, j)),
        scratch_shapes=[pltpu.VMEM((tm, tn), jnp.float32)],
    )
    return pl.pallas_call(
        matmul_bias_kernel,
        out_shape=jax.ShapeDtypeStruct((M, N), jnp.float32),
        grid_spec=grid_spec,
        compiler_params=pltpu.CompilerParams(
            dimension_semantics=("parallel", "parallel", "arbitrary"),
            vmem_limit_bytes=_VMEM_LIMIT),
    )(a, b, bias)


# ----------------------------------------------------------------------------
# Kernel 2: the sequential recurrence.  Grid iterates over chunks of timesteps;
# the hidden state is carried in vregs through the unrolled chunk loop and only
# touches the VMEM scratch at chunk boundaries.  Two variants:
#   - fused:       x is embedded tokens; x@W_ih + b is computed once per chunk
#                  (parallel MXU work, off the serial path).
#   - precomputed: x is already the input projection (fold path).
# ----------------------------------------------------------------------------
def _rnn_chunk_body(ih, w_hh_ref, h_out_ref, hn_ref, h_scratch):
    c = pl.program_id(0)
    chunk = ih.shape[0]

    @pl.when(c == 0)
    def _():
        h_scratch[...] = jnp.zeros_like(h_scratch)      # h0 = None -> zeros

    # vreg-carried hidden state (perf review): one VMEM read before the loop,
    # one write after; the serial tanh->matmul chain never touches VMEM for h.
    h = h_scratch[...]
    for k in range(chunk):                               # static unroll, chunk is small
        h = jnp.tanh(ih[k] + jnp.dot(h, w_hh_ref[...],
                                     preferred_element_type=jnp.float32))
        h_out_ref[k] = h.astype(h_out_ref.dtype)
    h_scratch[...] = h

    @pl.when(c == pl.num_programs(0) - 1)                # hn written exactly once
    def _():
        hn_ref[...] = h.astype(hn_ref.dtype)


def rnn_fused_kernel(x_ref, w_ih_ref, b_ref, w_hh_ref, h_out_ref, hn_ref, h_scratch):
    chunk, B, F = x_ref.shape
    H = w_hh_ref.shape[0]
    # Whole-chunk input projection in one parallel MXU matmul (not in the serial chain).
    ih = (jnp.dot(x_ref[...].reshape(chunk * B, F), w_ih_ref[...],
                  preferred_element_type=jnp.float32)
          + b_ref[...]).reshape(chunk, B, H)
    _rnn_chunk_body(ih, w_hh_ref, h_out_ref, hn_ref, h_scratch)


def rnn_precomputed_kernel(ih_ref, w_hh_ref, h_out_ref, hn_ref, h_scratch):
    _rnn_chunk_body(ih_ref[...].astype(jnp.float32),
                    w_hh_ref, h_out_ref, hn_ref, h_scratch)


def rnn_recurrence(x, w_hh, *, w_ih=None, b=None, chunk=8):
    """x: (T, B, F) embedded tokens (fused) or precomputed ih -> (T,B,H), (B,H)."""
    T, B, F = x.shape
    H = w_hh.shape[0]
    chunk = _fit_tile(T, chunk, 1)
    fused = w_ih is not None

    if fused:
        kernel = rnn_fused_kernel
        in_specs = [
            pl.BlockSpec((chunk, B, F), lambda c: (c, 0, 0)),   # embedded tokens chunk
            pl.BlockSpec((F, H), lambda c: (0, 0)),             # W_ih (resident)
            pl.BlockSpec((1, H), lambda c: (0, 0)),             # bias (resident)
            pl.BlockSpec((H, H), lambda c: (0, 0)),             # W_hh (resident)
        ]
        args = (x, w_ih, b, w_hh)
    else:
        kernel = rnn_precomputed_kernel
        in_specs = [
            pl.BlockSpec((chunk, B, H), lambda c: (c, 0, 0)),   # precomputed ih chunk
            pl.BlockSpec((H, H), lambda c: (0, 0)),             # W_hh (resident)
        ]
        args = (x, w_hh)

    grid_spec = pltpu.PrefetchScalarGridSpec(
        num_scalar_prefetch=0,
        grid=(T // chunk,),
        in_specs=in_specs,
        out_specs=[
            pl.BlockSpec((chunk, B, H), lambda c: (c, 0, 0)),   # h_all chunk
            pl.BlockSpec((B, H), lambda c: (0, 0)),             # hn (resident)
        ],
        scratch_shapes=[pltpu.VMEM((B, H), jnp.float32)],
    )
    return pl.pallas_call(
        kernel,
        out_shape=(
            jax.ShapeDtypeStruct((T, B, H), jnp.float32),
            jax.ShapeDtypeStruct((B, H), jnp.float32),
        ),
        grid_spec=grid_spec,
        compiler_params=pltpu.CompilerParams(
            dimension_semantics=("arbitrary",),                 # true sequential dependence
            vmem_limit_bytes=_VMEM_LIMIT),
    )(*args)


# ----------------------------------------------------------------------------
# Kernel 3: row-tiled output projection FUSED with cross-entropy, with a vocab
# grid axis and online logsumexp so W_out / logits tiles always fit VMEM.
# The (R, V) logits output is optional (skipped on loss-only paths).
# ----------------------------------------------------------------------------
def make_proj_xent_kernel(emit_logits, vocab):
    def kernel(h_ref, lab_ref, wout_ref, bout_ref, *rest):
        if emit_logits:
            logits_ref, nll_ref, m_sc, l_sc, corr_sc = rest
        else:
            nll_ref, m_sc, l_sc, corr_sc = rest
        v = pl.program_id(1)
        tv = wout_ref.shape[1]

        @pl.when(v == 0)
        def _():
            m_sc[...] = jnp.full_like(m_sc, -jnp.inf)
            l_sc[...] = jnp.zeros_like(l_sc)
            corr_sc[...] = jnp.zeros_like(corr_sc)

        logits = (jnp.dot(h_ref[...], wout_ref[...],
                          preferred_element_type=jnp.float32)
                  + bout_ref[...])                                    # (rt, tv) f32
        if emit_logits:
            logits_ref[...] = logits.astype(logits_ref.dtype)

        lab = lab_ref[...]                                            # (rt, 1) int32
        cls = lax.broadcasted_iota(jnp.int32, logits.shape, 1) + v * tv
        corr_sc[...] += jnp.sum(jnp.where(lab == cls, logits, 0.0),
                                axis=-1, keepdims=True)

        m_prev = m_sc[...]
        m_new = jnp.maximum(m_prev, jnp.max(logits, axis=-1, keepdims=True))
        l_sc[...] = (l_sc[...] * jnp.exp(m_prev - m_new)
                     + jnp.sum(jnp.exp(logits - m_new), axis=-1, keepdims=True))
        m_sc[...] = m_new

        @pl.when(v == pl.num_programs(1) - 1)
        def _():
            lse = m_sc[...] + jnp.log(l_sc[...])
            valid = jnp.logical_and(lab >= 0, lab < vocab)            # ignore pad labels
            nll_ref[...] = jnp.where(valid, lse - corr_sc[...], 0.0).astype(nll_ref.dtype)

    return kernel


def output_proj_xent(h2d, labels2d, w_out, b_out, *, row_tile=256, v_tile=512,
                     emit_logits=True):
    """h2d: (R, H), labels2d: (R, 1) -> (logits (R, V) or None, nll (R, 1))."""
    R, H = h2d.shape
    V = w_out.shape[1]
    rt = _fit_tile(R, row_tile, 8)
    tv = _fit_tile(V, v_tile, 128)

    out_shape, out_specs = [], []
    if emit_logits:
        out_shape.append(jax.ShapeDtypeStruct((R, V), jnp.float32))
        out_specs.append(pl.BlockSpec((rt, tv), lambda i, v: (i, v)))
    out_shape.append(jax.ShapeDtypeStruct((R, 1), jnp.float32))
    out_specs.append(pl.BlockSpec((rt, 1), lambda i, v: (i, 0)))
    # TODO(synk): lane-dense nll layout / in-kernel partial-sum reduction.

    grid_spec = pltpu.PrefetchScalarGridSpec(
        num_scalar_prefetch=0,
        grid=(R // rt, V // tv),
        in_specs=[
            pl.BlockSpec((rt, H), lambda i, v: (i, 0)),    # hidden rows (no refetch over v)
            pl.BlockSpec((rt, 1), lambda i, v: (i, 0)),    # labels
            pl.BlockSpec((H, tv), lambda i, v: (0, v)),    # W_out vocab tile
            pl.BlockSpec((1, tv), lambda i, v: (0, v)),    # b_out vocab tile
        ],
        out_specs=out_specs,
        scratch_shapes=[pltpu.VMEM((rt, 1), jnp.float32)] * 3,   # m, l, correct
    )
    results = pl.pallas_call(
        make_proj_xent_kernel(emit_logits, V),
        out_shape=tuple(out_shape),
        grid_spec=grid_spec,
        compiler_params=pltpu.CompilerParams(
            dimension_semantics=("parallel", "arbitrary"),
            vmem_limit_bytes=_VMEM_LIMIT),
    )(h2d, labels2d, w_out, b_out)

    if emit_logits:
        logits, nll = results
        return logits, nll
    nll = results[0] if isinstance(results, (tuple, list)) else results
    return None, nll


# ----------------------------------------------------------------------------
# Python wrapper mirroring BaseRNN.forward_packed_data / eval_ppl semantics.
# ----------------------------------------------------------------------------
@functools.partial(jax.jit, static_argnames=("return_logits",))
def forward_packed_data(tokens, params, labels, return_logits=True):
    T, B = tokens.shape
    V, _ = params["embedding"].shape
    H = params["w_hh"].shape[0]

    if T * B > V:
        # Fold path: E_proj = embedding @ W_ih + b once (V*H^2 < T*B*H^2 FLOPs);
        # the per-token gather IS the input projection.
        e_proj = matmul_bias(params["embedding"], params["w_ih"], params["b"])  # (V, H)
        ih = jnp.take(e_proj, tokens, axis=0)                                   # (T, B, H)
        h_all, hn = rnn_recurrence(ih, params["w_hh"])
    else:
        # Direct path: gather embeddings and fuse the (T*B,H)x(H,H) input
        # projection inside the recurrence kernel (no ih HBM round-trip).
        x_emb = jnp.take(params["embedding"], tokens, axis=0)                   # (T, B, E)
        h_all, hn = rnn_recurrence(x_emb, params["w_hh"],
                                   w_ih=params["w_ih"], b=params["b"])

    logits2d, nll = output_proj_xent(
        h_all.reshape(T * B, H), labels.reshape(T * B, 1),
        params["w_out"], params["b_out"], emit_logits=return_logits)

    # Masked mean over valid positions (PyTorch CE ignore-index style).
    valid = jnp.logical_and(labels >= 0, labels < V)
    count = jnp.maximum(jnp.sum(valid), 1).astype(jnp.float32)
    loss = jnp.sum(nll) / count
    ppl = jnp.exp(loss)

    logits = logits2d.reshape(T, B, V) if return_logits else None
    return logits, hn, loss, ppl


def make_params(key, vocab, hidden):
    ks = jax.random.split(key, 6)
    s = 0.1
    return {
        "embedding": s * jax.random.normal(ks[0], (vocab, hidden), jnp.float32),
        "w_ih": s * jax.random.normal(ks[1], (hidden, hidden), jnp.float32),
        "w_hh": s * jax.random.normal(ks[2], (hidden, hidden), jnp.float32),
        "b": s * jax.random.normal(ks[3], (1, hidden), jnp.float32),
        "w_out": s * jax.random.normal(ks[4], (hidden, vocab), jnp.float32),
        "b_out": s * jax.random.normal(ks[5], (1, vocab), jnp.float32),
    }


def reference(tokens, params, labels):
    x_emb = jnp.take(params["embedding"], tokens, axis=0)

    def step(h, x_t):
        h = jnp.tanh(x_t @ params["w_ih"] + h @ params["w_hh"] + params["b"][0])
        return h, h @ params["w_out"] + params["b_out"][0]

    h0 = jnp.zeros((x_emb.shape[1], params["w_hh"].shape[0]), jnp.float32)
    hn, logits = jax.lax.scan(step, h0, x_emb)
    lse = jax.nn.logsumexp(logits, axis=-1)
    correct = jnp.take_along_axis(logits, labels[..., None], axis=-1)[..., 0]
    loss = jnp.mean(lse - correct)
    return logits, hn, loss, jnp.exp(loss)


if __name__ == "__main__":
    root_key = jax.random.PRNGKey(0)
    case_keys = jax.random.split(root_key, 2)

    def run_case(key, T, B, V, H):
        k_par, k_tok, k_lab = jax.random.split(key, 3)
        params = make_params(k_par, V, H)
        tokens = jax.random.randint(k_tok, (T, B), 0, V, dtype=jnp.int32)   # batch_data['data']
        labels = jax.random.randint(k_lab, (T, B), 0, V, dtype=jnp.int32)   # batch_data['label']

        logits, hn, loss, ppl = forward_packed_data(tokens, params, labels)
        jax.block_until_ready((logits, hn, loss, ppl))

        # Loss-only path (eval_ppl / train_step): logits never written to HBM.
        _, hn2, loss2, _ = forward_packed_data(tokens, params, labels, return_logits=False)
        jax.block_until_ready((hn2, loss2))

        ref_logits, ref_hn, ref_loss, ref_ppl = reference(tokens, params, labels)
        np.testing.assert_allclose(np.asarray(logits), np.asarray(ref_logits),
                                   atol=2e-3, rtol=2e-3)
        np.testing.assert_allclose(np.asarray(hn), np.asarray(ref_hn), atol=2e-3, rtol=2e-3)
        np.testing.assert_allclose(float(loss), float(ref_loss), atol=1e-3, rtol=1e-3)
        np.testing.assert_allclose(float(loss2), float(ref_loss), atol=1e-3, rtol=1e-3)
        np.testing.assert_allclose(float(ppl), float(ref_ppl), atol=1e-2, rtol=1e-3)

    # Direct path (V > T*B): fused in-kernel input projection, 2 vocab tiles
    # exercising the online-logsumexp reduction.
    run_case(case_keys[0], T=16, B=8, V=1024, H=128)
    # Fold path (T*B > V): one-time E_proj fold + gathered ih recurrence.
    run_case(case_keys[1], T=32, B=16, V=128, H=128)

    print("KERNEL_OK")
</pallas_src>

<mosaic_0001>
module attributes {stable_mosaic.version = 11 : i64} {
  func.func @rnn_fused_kernel(%arg0: i32, %arg1: memref<8x8x128xf32, #tpu.memory_space<vmem>>, %arg2: memref<128x128xf32, #tpu.memory_space<vmem>>, %arg3: memref<1x128xf32, #tpu.memory_space<vmem>>, %arg4: memref<128x128xf32, #tpu.memory_space<vmem>>, %arg5: memref<8x8x128xf32, #tpu.memory_space<vmem>>, %arg6: memref<8x128xf32, #tpu.memory_space<vmem>>, %arg7: memref<8x128xf32, #tpu.memory_space<vmem>>) attributes {dimension_semantics = [#tpu.dimension_semantics<arbitrary>], iteration_bounds = array<i64: 2>, scalar_prefetch = 0 : i64, scratch_operands = 1 : i64, tpu.core_type = #tpu.core_type<tc>, window_params = [{transform_indices = @transform_0, window_bounds = array<i64: 8, 8, 128>}, {pipeline_mode = #tpu.pipeline_mode<synchronous>, transform_indices = @transform_1, window_bounds = array<i64: 128, 128>}, {pipeline_mode = #tpu.pipeline_mode<synchronous>, transform_indices = @transform_2, window_bounds = array<i64: 1, 128>}, {pipeline_mode = #tpu.pipeline_mode<synchronous>, transform_indices = @transform_3, window_bounds = array<i64: 128, 128>}, {transform_indices = @transform_4, window_bounds = array<i64: 8, 8, 128>}, {pipeline_mode = #tpu.pipeline_mode<synchronous>, transform_indices = @transform_5, window_bounds = array<i64: 8, 128>}]} {
    %c0 = arith.constant 0 : index
    %c0_0 = arith.constant 0 : index
    %c0_1 = arith.constant 0 : index
    %0 = vector.load %arg1[%c0, %c0_0, %c0_1] : memref<8x8x128xf32, #tpu.memory_space<vmem>>, vector<8x8x128xf32>
    %1 = vector.shape_cast %0 : vector<8x8x128xf32> to vector<64x128xf32>
    %c0_2 = arith.constant 0 : index
    %c0_3 = arith.constant 0 : index
    %2 = vector.load %arg2[%c0_2, %c0_3] : memref<128x128xf32, #tpu.memory_space<vmem>>, vector<128x128xf32>
    %cst = arith.constant dense<0.000000e+00> : vector<64x128xf32>
    %3 = tpu.matmul %1, %2, %cst {dimension_numbers = #tpu.dot_dimension_numbers<[1], [0], [0], [1], [0, 0, 1, 1], [], []>} : vector<64x128xf32>, vector<128x128xf32>, vector<64x128xf32> -> vector<64x128xf32>
    %c0_4 = arith.constant 0 : index
    %c0_5 = arith.constant 0 : index
    %4 = vector.load %arg3[%c0_4, %c0_5] : memref<1x128xf32, #tpu.memory_space<vmem>>, vector<1x128xf32>
    %5 = vector.broadcast %4 : vector<1x128xf32> to vector<64x128xf32>
    %6 = arith.addf %3, %5 : vector<64x128xf32>
    %7 = vector.shape_cast %6 : vector<64x128xf32> to vector<8x8x128xf32>
    %c0_i32 = arith.constant 0 : i32
    %8 = arith.cmpi eq, %arg0, %c0_i32 : i32
    %9 = arith.extui %8 : i1 to i32
    %c0_i32_6 = arith.constant 0 : i32
    %10 = arith.cmpi ne, %9, %c0_i32_6 : i32
    scf.if %10 {
      %cst_53 = arith.constant 0.000000e+00 : f32
      %88 = vector.broadcast %cst_53 : f32 to vector<8x128xf32>
      %c0_54 = arith.constant 0 : index
      %c0_55 = arith.constant 0 : index
      %89 = vector.load %arg7[%c0_54, %c0_55] : memref<8x128xf32, #tpu.memory_space<vmem>>, vector<8x128xf32>
      tpu.vector_store %arg7[%c0_54, %c0_55], %88 {strides = array<i32>} : memref<8x128xf32, #tpu.memory_space<vmem>>, vector<8x128xf32>,
    } else {
    }
    %c0_7 = arith.constant 0 : index
    %c0_8 = arith.constant 0 : index
    %11 = vector.load %arg7[%c0_7, %c0_8] : memref<8x128xf32, #tpu.memory_space<vmem>>, vector<8x128xf32>
    %12 = vector.extract_strided_slice %7 {offsets = [0, 0, 0], sizes = [1, 8, 128], strides = [1, 1, 1]} : vector<8x8x128xf32> to vector<1x8x128xf32>
    %13 = vector.shape_cast %12 : vector<1x8x128xf32> to vector<8x128xf32>
    %c0_9 = arith.constant 0 : index
    %c0_10 = arith.constant 0 : index
    %14 = vector.load %arg4[%c0_9, %c0_10] : memref<128x128xf32, #tpu.memory_space<vmem>>, vector<128x128xf32>
    %cst_11 = arith.constant dense<0.000000e+00> : vector<8x128xf32>
    %15 = tpu.matmul %11, %14, %cst_11 {dimension_numbers = #tpu.dot_dimension_numbers<[1], [0], [0], [1], [0, 0, 1, 1], [], []>} : vector<8x128xf32>, vector<128x128xf32>, vector<8x128xf32> -> vector<8x128xf32>
    %16 = arith.addf %13, %15 : vector<8x128xf32>
    %17 = math.tanh %16 : vector<8x128xf32>
    %c0_12 = arith.constant 0 : index
    %c0_13 = arith.constant 0 : index
    %c0_14 = arith.constant 0 : index
    %18 = vector.load %arg5[%c0_12, %c0_13, %c0_14] : memref<8x8x128xf32, #tpu.memory_space<vmem>>, vector<1x8x128xf32>
    %19 = vector.shape_cast %18 : vector<1x8x128xf32> to vector<8x128xf32>
    %20 = vector.shape_cast %17 : vector<8x128xf32> to vector<1x8x128xf32>
    tpu.vector_store %arg5[%c0_12, %c0_13, %c0_14], %20 {strides = array<i32>} : memref<8x8x128xf32, #tpu.memory_space<vmem>>, vector<1x8x128xf32>,
    %21 = vector.extract_strided_slice %7 {offsets = [1, 0, 0], sizes = [1, 8, 128], strides = [1, 1, 1]} : vector<8x8x128xf32> to vector<1x8x128xf32>
    %22 = vector.shape_cast %21 : vector<1x8x128xf32> to vector<8x128xf32>
    %c0_15 = arith.constant 0 : index
    %c0_16 = arith.constant 0 : index
    %23 = vector.load %arg4[%c0_15, %c0_16] : memref<128x128xf32, #tpu.memory_space<vmem>>, vector<128x128xf32>
    %cst_17 = arith.constant dense<0.000000e+00> : vector<8x128xf32>
    %24 = tpu.matmul %17, %23, %cst_17 {dimension_numbers = #tpu.dot_dimension_numbers<[1], [0], [0], [1], [0, 0, 1, 1], [], []>} : vector<8x128xf32>, vector<128x128xf32>, vector<8x128xf32> -> vector<8x128xf32>
    %25 = arith.addf %22, %24 : vector<8x128xf32>
    %26 = math.tanh %25 : vector<8x128xf32>
    %c1 = arith.constant 1 : index
    %c0_18 = arith.constant 0 : index
    %c0_19 = arith.constant 0 : index
    %27 = vector.load %arg5[%c1, %c0_18, %c0_19] : memref<8x8x128xf32, #tpu.memory_space<vmem>>, vector<1x8x128xf32>
    %28 = vector.shape_cast %27 : vector<1x8x128xf32> to vector<8x128xf32>
    %29 = vector.shape_cast %26 : vector<8x128xf32> to vector<1x8x128xf32>
    tpu.vector_store %arg5[%c1, %c0_18, %c0_19], %29 {strides = array<i32>} : memref<8x8x128xf32, #tpu.memory_space<vmem>>, vector<1x8x128xf32>,
    %30 = vector.extract_strided_slice %7 {offsets = [2, 0, 0], sizes = [1, 8, 128], strides = [1, 1, 1]} : vector<8x8x128xf32> to vector<1x8x128xf32>
    %31 = vector.shape_cast %30 : vector<1x8x128xf32> to vector<8x128xf32>
    %c0_20 = arith.constant 0 : index
    %c0_21 = arith.constant 0 : index
    %32 = vector.load %arg4[%c0_20, %c0_21] : memref<128x128xf32, #tpu.memory_space<vmem>>, vector<128x128xf32>
    %cst_22 = arith.constant dense<0.000000e+00> : vector<8x128xf32>
    %33 = tpu.matmul %26, %32, %cst_22 {dimension_numbers = #tpu.dot_dimension_numbers<[1], [0], [0], [1], [0, 0, 1, 1], [], []>} : vector<8x128xf32>, vector<128x128xf32>, vector<8x128xf32> -> vector<8x128xf32>
    %34 = arith.addf %31, %33 : vector<8x128xf32>
    %35 = math.tanh %34 : vector<8x128xf32>
    %c2 = arith.constant 2 : index
    %c0_23 = arith.constant 0 : index
    %c0_24 = arith.constant 0 : index
    %36 = vector.load %arg5[%c2, %c0_23, %c0_24] : memref<8x8x128xf32, #tpu.memory_space<vmem>>, vector<1x8x128xf32>
    %37 = vector.shape_cast %36 : vector<1x8x128xf32> to vector<8x128xf32>
    %38 = vector.shape_cast %35 : vector<8x128xf32> to vector<1x8x128xf32>
    tpu.vector_store %arg5[%c2, %c0_23, %c0_24], %38 {strides = array<i32>} : memref<8x8x128xf32, #tpu.memory_space<vmem>>, vector<1x8x128xf32>,
    %39 = vector.extract_strided_slice %7 {offsets = [3, 0, 0], sizes = [1, 8, 128], strides = [1, 1, 1]} : vector<8x8x128xf32> to vector<1x8x128xf32>
    %40 = vector.shape_cast %39 : vector<1x8x128xf32> to vector<8x128xf32>
    %c0_25 = arith.constant 0 : index
    %c0_26 = arith.constant 0 : index
    %41 = vector.load %arg4[%c0_25, %c0_26] : memref<128x128xf32, #tpu.memory_space<vmem>>, vector<128x128xf32>
    %cst_27 = arith.constant dense<0.000000e+00> : vector<8x128xf32>
    %42 = tpu.matmul %35, %41, %cst_27 {dimension_numbers = #tpu.dot_dimension_numbers<[1], [0], [0], [1], [0, 0, 1, 1], [], []>} : vector<8x128xf32>, vector<128x128xf32>, vector<8x128xf32> -> vector<8x128xf32>
    %43 = arith.addf %40, %42 : vector<8x128xf32>
    %44 = math.tanh %43 : vector<8x128xf32>
    %c3 = arith.constant 3 : index
    %c0_28 = arith.constant 0 : index
    %c0_29 = arith.constant 0 : index
    %45 = vector.load %arg5[%c3, %c0_28, %c0_29] : memref<8x8x128xf32, #tpu.memory_space<vmem>>, vector<1x8x128xf32>
    %46 = vector.shape_cast %45 : vector<1x8x128xf32> to vector<8x128xf32>
    %47 = vector.shape_cast %44 : vector<8x128xf32> to vector<1x8x128xf32>
    tpu.vector_store %arg5[%c3, %c0_28, %c0_29], %47 {strides = array<i32>} : memref<8x8x128xf32, #tpu.memory_space<vmem>>, vector<1x8x128xf32>,
    %48 = vector.extract_strided_slice %7 {offsets = [4, 0, 0], sizes = [1, 8, 128], strides = [1, 1, 1]} : vector<8x8x128xf32> to vector<1x8x128xf32>
    %49 = vector.shape_cast %48 : vector<1x8x128xf32> to vector<8x128xf32>
    %c0_30 = arith.constant 0 : index
    %c0_31 = arith.constant 0 : index
    %50 = vector.load %arg4[%c0_30, %c0_31] : memref<128x128xf32, #tpu.memory_space<vmem>>, vector<128x128xf32>
    %cst_32 = arith.constant dense<0.000000e+00> : vector<8x128xf32>
    %51 = tpu.matmul %44, %50, %cst_32 {dimension_numbers = #tpu.dot_dimension_numbers<[1], [0], [0], [1], [0, 0, 1, 1], [], []>} : vector<8x128xf32>, vector<128x128xf32>, vector<8x128xf32> -> vector<8x128xf32>
    %52 = arith.addf %49, %51 : vector<8x128xf32>
    %53 = math.tanh %52 : vector<8x128xf32>
    %c4 = arith.constant 4 : index
    %c0_33 = arith.constant 0 : index
    %c0_34 = arith.constant 0 : index
    %54 = vector.load %arg5[%c4, %c0_33, %c0_34] : memref<8x8x128xf32, #tpu.memory_space<vmem>>, vector<1x8x128xf32>
    %55 = vector.shape_cast %54 : vector<1x8x128xf32> to vector<8x128xf32>
    %56 = vector.shape_cast %53 : vector<8x128xf32> to vector<1x8x128xf32>
    tpu.vector_store %arg5[%c4, %c0_33, %c0_34], %56 {strides = array<i32>} : memref<8x8x128xf32, #tpu.memory_space<vmem>>, vector<1x8x128xf32>,
    %57 = vector.extract_strided_slice %7 {offsets = [5, 0, 0], sizes = [1, 8, 128], strides = [1, 1, 1]} : vector<8x8x128xf32> to vector<1x8x128xf32>
    %58 = vector.shape_cast %57 : vector<1x8x128xf32> to vector<8x128xf32>
    %c0_35 = arith.constant 0 : index
    %c0_36 = arith.constant 0 : index
    %59 = vector.load %arg4[%c0_35, %c0_36] : memref<128x128xf32, #tpu.memory_space<vmem>>, vector<128x128xf32>
    %cst_37 = arith.constant dense<0.000000e+00> : vector<8x128xf32>
    %60 = tpu.matmul %53, %59, %cst_37 {dimension_numbers = #tpu.dot_dimension_numbers<[1], [0], [0], [1], [0, 0, 1, 1], [], []>} : vector<8x128xf32>, vector<128x128xf32>, vector<8x128xf32> -> vector<8x128xf32>
    %61 = arith.addf %58, %60 : vector<8x128xf32>
    %62 = math.tanh %61 : vector<8x128xf32>
    %c5 = arith.constant 5 : index
    %c0_38 = arith.constant 0 : index
    %c0_39 = arith.constant 0 : index
    %63 = vector.load %arg5[%c5, %c0_38, %c0_39] : memref<8x8x128xf32, #tpu.memory_space<vmem>>, vector<1x8x128xf32>
    %64 = vector.shape_cast %63 : vector<1x8x128xf32> to vector<8x128xf32>
    %65 = vector.shape_cast %62 : vector<8x128xf32> to vector<1x8x128xf32>
    tpu.vector_store %arg5[%c5, %c0_38, %c0_39], %65 {strides = array<i32>} : memref<8x8x128xf32, #tpu.memory_space<vmem>>, vector<1x8x128xf32>,
    %66 = vector.extract_strided_slice %7 {offsets = [6, 0, 0], sizes = [1, 8, 128], strides = [1, 1, 1]} : vector<8x8x128xf32> to vector<1x8x128xf32>
    %67 = vector.shape_cast %66 : vector<1x8x128xf32> to vector<8x128xf32>
    %c0_40 = arith.constant 0 : index
    %c0_41 = arith.constant 0 : index
    %68 = vector.load %arg4[%c0_40, %c0_41] : memref<128x128xf32, #tpu.memory_space<vmem>>, vector<128x128xf32>
    %cst_42 = arith.constant dense<0.000000e+00> : vector<8x128xf32>
    %69 = tpu.matmul %62, %68, %cst_42 {dimension_numbers = #tpu.dot_dimension_numbers<[1], [0], [0], [1], [0, 0, 1, 1], [], []>} : vector<8x128xf32>, vector<128x128xf32>, vector<8x128xf32> -> vector<8x128xf32>
    %70 = arith.addf %67, %69 : vector<8x128xf32>
    %71 = math.tanh %70 : vector<8x128xf32>
    %c6 = arith.constant 6 : index
    %c0_43 = arith.constant 0 : index
    %c0_44 = arith.constant 0 : index
    %72 = vector.load %arg5[%c6, %c0_43, %c0_44] : memref<8x8x128xf32, #tpu.memory_space<vmem>>, vector<1x8x128xf32>
    %73 = vector.shape_cast %72 : vector<1x8x128xf32> to vector<8x128xf32>
    %74 = vector.shape_cast %71 : vector<8x128xf32> to vector<1x8x128xf32>
    tpu.vector_store %arg5[%c6, %c0_43, %c0_44], %74 {strides = array<i32>} : memref<8x8x128xf32, #tpu.memory_space<vmem>>, vector<1x8x128xf32>,
    %75 = vector.extract_strided_slice %7 {offsets = [7, 0, 0], sizes = [1, 8, 128], strides = [1, 1, 1]} : vector<8x8x128xf32> to vector<1x8x128xf32>
    %76 = vector.shape_cast %75 : vector<1x8x128xf32> to vector<8x128xf32>
    %c0_45 = arith.constant 0 : index
    %c0_46 = arith.constant 0 : index
    %77 = vector.load %arg4[%c0_45, %c0_46] : memref<128x128xf32, #tpu.memory_space<vmem>>, vector<128x128xf32>
    %cst_47 = arith.constant dense<0.000000e+00> : vector<8x128xf32>
    %78 = tpu.matmul %71, %77, %cst_47 {dimension_numbers = #tpu.dot_dimension_numbers<[1], [0], [0], [1], [0, 0, 1, 1], [], []>} : vector<8x128xf32>, vector<128x128xf32>, vector<8x128xf32> -> vector<8x128xf32>
    %79 = arith.addf %76, %78 : vector<8x128xf32>
    %80 = math.tanh %79 : vector<8x128xf32>
    %c7 = arith.constant 7 : index
    %c0_48 = arith.constant 0 : index
    %c0_49 = arith.constant 0 : index
    %81 = vector.load %arg5[%c7, %c0_48, %c0_49] : memref<8x8x128xf32, #tpu.memory_space<vmem>>, vector<1x8x128xf32>
    %82 = vector.shape_cast %81 : vector<1x8x128xf32> to vector<8x128xf32>
    %83 = vector.shape_cast %80 : vector<8x128xf32> to vector<1x8x128xf32>
    tpu.vector_store %arg5[%c7, %c0_48, %c0_49], %83 {strides = array<i32>} : memref<8x8x128xf32, #tpu.memory_space<vmem>>, vector<1x8x128xf32>,
    %c0_50 = arith.constant 0 : index
    %c0_51 = arith.constant 0 : index
    %84 = vector.load %arg7[%c0_50, %c0_51] : memref<8x128xf32, #tpu.memory_space<vmem>>, vector<8x128xf32>
    tpu.vector_store %arg7[%c0_50, %c0_51], %80 {strides = array<i32>} : memref<8x128xf32, #tpu.memory_space<vmem>>, vector<8x128xf32>,
    %c1_i32 = arith.constant 1 : i32
    %85 = arith.cmpi eq, %arg0, %c1_i32 : i32
    %86 = arith.extui %85 : i1 to i32
    %c0_i32_52 = arith.constant 0 : i32
    %87 = arith.cmpi ne, %86, %c0_i32_52 : i32
    scf.if %87 {
      %c0_53 = arith.constant 0 : index
      %c0_54 = arith.constant 0 : index
      %88 = vector.load %arg6[%c0_53, %c0_54] : memref<8x128xf32, #tpu.memory_space<vmem>>, vector<8x128xf32>
      tpu.vector_store %arg6[%c0_53, %c0_54], %80 {strides = array<i32>} : memref<8x128xf32, #tpu.memory_space<vmem>>, vector<8x128xf32>,
    } else {
    }
    return
  }
  func.func @transform_0(%arg0: i32) -> (i32, i32, i32) {
    %c0_i32 = arith.constant 0 : i32
    %c0_i32_0 = arith.constant 0 : i32
    %c0_i32_1 = arith.constant 0 : i32
    return %arg0, %c0_i32, %c0_i32_0 : i32, i32, i32
  }
  func.func @transform_1(%arg0: i32) -> (i32, i32) {
    %c0_i32 = arith.constant 0 : i32
    %c0_i32_0 = arith.constant 0 : i32
    %c0_i32_1 = arith.constant 0 : i32
    return %c0_i32, %c0_i32_0 : i32, i32
  }
  func.func @transform_2(%arg0: i32) -> (i32, i32) {
    %c0_i32 = arith.constant 0 : i32
    %c0_i32_0 = arith.constant 0 : i32
    %c0_i32_1 = arith.constant 0 : i32
    return %c0_i32, %c0_i32_0 : i32, i32
  }
  func.func @transform_3(%arg0: i32) -> (i32, i32) {
    %c0_i32 = arith.constant 0 : i32
    %c0_i32_0 = arith.constant 0 : i32
    %c0_i32_1 = arith.constant 0 : i32
    return %c0_i32, %c0_i32_0 : i32, i32
  }
  func.func @transform_4(%arg0: i32) -> (i32, i32, i32) {
    %c0_i32 = arith.constant 0 : i32
    %c0_i32_0 = arith.constant 0 : i32
    %c0_i32_1 = arith.constant 0 : i32
    return %arg0, %c0_i32, %c0_i32_0 : i32, i32, i32
  }
  func.func @transform_5(%arg0: i32) -> (i32, i32) {
    %c0_i32 = arith.constant 0 : i32
    %c0_i32_0 = arith.constant 0 : i32
    %c0_i32_1 = arith.constant 0 : i32
    return %c0_i32, %c0_i32_0 : i32, i32
  }
}

module attributes {stable_mosaic.version = 11 : i64} {
  func.func @kernel(%arg0: i32, %arg1: i32, %arg2: memref<128x128xf32, #tpu.memory_space<vmem>>, %arg3: memref<128x1xi32, #tpu.memory_space<vmem>>, %arg4: memref<128x512xf32, #tpu.memory_space<vmem>>, %arg5: memref<1x512xf32, #tpu.memory_space<vmem>>, %arg6: memref<128x512xf32, #tpu.memory_space<vmem>>, %arg7: memref<128x1xf32, #tpu.memory_space<vmem>>, %arg8: memref<128x1xf32, #tpu.memory_space<vmem>>, %arg9: memref<128x1xf32, #tpu.memory_space<vmem>>, %arg10: memref<128x1xf32, #tpu.memory_space<vmem>>) attributes {dimension_semantics = [#tpu.dimension_semantics<parallel>, #tpu.dimension_semantics<arbitrary>], iteration_bounds = array<i64: 1, 2>, scalar_prefetch = 0 : i64, scratch_operands = 3 : i64, tpu.core_type = #tpu.core_type<tc>, window_params = [{transform_indices = @transform_0, window_bounds = array<i64: 128, 128>}, {transform_indices = @transform_1, window_bounds = array<i64: 128, 1>}, {transform_indices = @transform_2, window_bounds = array<i64: 128, 512>}, {transform_indices = @transform_3, window_bounds = array<i64: 1, 512>}, {transform_indices = @transform_4, window_bounds = array<i64: 128, 512>}, {transform_indices = @transform_5, window_bounds = array<i64: 128, 1>}]} {
    %c0_i32 = arith.constant 0 : i32
    %0 = arith.cmpi eq, %arg1, %c0_i32 : i32
    %1 = arith.extui %0 : i1 to i32
    %c0_i32_0 = arith.constant 0 : i32
    %2 = arith.cmpi ne, %1, %c0_i32_0 : i32
    scf.if %2 {
      %cst_27 = arith.constant 0xFF800000 : f32
      %43 = vector.broadcast %cst_27 : f32 to vector<128x1xf32>
      %c0_28 = arith.constant 0 : index
      %c0_29 = arith.constant 0 : index
      %44 = vector.load %arg8[%c0_28, %c0_29] : memref<128x1xf32, #tpu.memory_space<vmem>>, vector<128x1xf32>
      tpu.vector_store %arg8[%c0_28, %c0_29], %43 {strides = array<i32>} : memref<128x1xf32, #tpu.memory_space<vmem>>, vector<128x1xf32>,
      %cst_30 = arith.constant 0.000000e+00 : f32
      %45 = vector.broadcast %cst_30 : f32 to vector<128x1xf32>
      %c0_31 = arith.constant 0 : index
      %c0_32 = arith.constant 0 : index
      %46 = vector.load %arg9[%c0_31, %c0_32] : memref<128x1xf32, #tpu.memory_space<vmem>>, vector<128x1xf32>
      tpu.vector_store %arg9[%c0_31, %c0_32], %45 {strides = array<i32>} : memref<128x1xf32, #tpu.memory_space<vmem>>, vector<128x1xf32>,
      %cst_33 = arith.constant 0.000000e+00 : f32
      %47 = vector.broadcast %cst_33 : f32 to vector<128x1xf32>
      %c0_34 = arith.constant 0 : index
      %c0_35 = arith.constant 0 : index
      %48 = vector.load %arg10[%c0_34, %c0_35] : memref<128x1xf32, #tpu.memory_space<vmem>>, vector<128x1xf32>
      tpu.vector_store %arg10[%c0_34, %c0_35], %47 {strides = array<i32>} : memref<128x1xf32, #tpu.memory_space<vmem>>, vector<128x1xf32>,
    } else {
    }
    %c0 = arith.constant 0 : index
    %c0_1 = arith.constant 0 : index
    %3 = vector.load %arg2[%c0, %c0_1] : memref<128x128xf32, #tpu.memory_space<vmem>>, vector<128x128xf32>
    %c0_2 = arith.constant 0 : index
    %c0_3 = arith.constant 0 : index
    %4 = vector.load %arg4[%c0_2, %c0_3] : memref<128x512xf32, #tpu.memory_space<vmem>>, vector<128x512xf32>
    %cst = arith.constant dense<0.000000e+00> : vector<128x512xf32>
    %5 = tpu.matmul %3, %4, %cst {dimension_numbers = #tpu.dot_dimension_numbers<[1], [0], [0], [1], [0, 0, 1, 1], [], []>} : vector<128x128xf32>, vector<128x512xf32>, vector<128x512xf32> -> vector<128x512xf32>
    %c0_4 = arith.constant 0 : index
    %c0_5 = arith.constant 0 : index
    %6 = vector.load %arg5[%c0_4, %c0_5] : memref<1x512xf32, #tpu.memory_space<vmem>>, vector<1x512xf32>
    %7 = vector.broadcast %6 : vector<1x512xf32> to vector<128x512xf32>
    %8 = arith.addf %5, %7 : vector<128x512xf32>
    %c0_6 = arith.constant 0 : index
    %c0_7 = arith.constant 0 : index
    %9 = vector.load %arg6[%c0_6, %c0_7] : memref<128x512xf32, #tpu.memory_space<vmem>>, vector<128x512xf32>
    tpu.vector_store %arg6[%c0_6, %c0_7], %8 {strides = array<i32>} : memref<128x512xf32, #tpu.memory_space<vmem>>, vector<128x512xf32>,
    %c0_8 = arith.constant 0 : index
    %c0_9 = arith.constant 0 : index
    %10 = vector.load %arg3[%c0_8, %c0_9] : memref<128x1xi32, #tpu.memory_space<vmem>>, vector<128x1xi32>
    %11 = tpu.iota {dimensions = array<i32: 1>} : vector<128x512xi32>
    %c512_i32 = arith.constant 512 : i32
    %12 = arith.muli %arg1, %c512_i32 : i32
    %13 = vector.broadcast %12 : i32 to vector<128x512xi32>
    %14 = arith.addi %11, %13 : vector<128x512xi32>
    %c0_10 = arith.constant 0 : index
    %c0_11 = arith.constant 0 : index
    %15 = vector.load %arg10[%c0_10, %c0_11] : memref<128x1xf32, #tpu.memory_space<vmem>>, vector<128x1xf32>
    %16 = vector.broadcast %10 : vector<128x1xi32> to vector<128x512xi32>
    %17 = arith.cmpi eq, %16, %14 : vector<128x512xi32>
    %cst_12 = arith.constant 0.000000e+00 : f32
    %18 = vector.broadcast %cst_12 : f32 to vector<128x512xf32>
    %19 = arith.select %17, %8, %18 : vector<128x512xi1>, vector<128x512xf32>
    %cst_13 = arith.constant dense<0.000000e+00> : vector<128xf32>
    %20 = vector.multi_reduction <add>, %19, %cst_13 [1] : vector<128x512xf32> to vector<128xf32>
    %21 = vector.shape_cast %20 : vector<128xf32> to vector<128x1xf32>
    %22 = arith.addf %15, %21 : vector<128x1xf32>
    %c0_14 = arith.constant 0 : index
    %c0_15 = arith.constant 0 : index
    %23 = vector.load %arg10[%c0_14, %c0_15] : memref<128x1xf32, #tpu.memory_space<vmem>>, vector<128x1xf32>
    tpu.vector_store %arg10[%c0_14, %c0_15], %22 {strides = array<i32>} : memref<128x1xf32, #tpu.memory_space<vmem>>, vector<128x1xf32>,
    %c0_16 = arith.constant 0 : index
    %c0_17 = arith.constant 0 : index
    %24 = vector.load %arg8[%c0_16, %c0_17] : memref<128x1xf32, #tpu.memory_space<vmem>>, vector<128x1xf32>
    %cst_18 = arith.constant dense<0xFF800000> : vector<128xf32>
    %25 = vector.multi_reduction <maximumf>, %8, %cst_18 [1] : vector<128x512xf32> to vector<128xf32>
    %26 = vector.shape_cast %25 : vector<128xf32> to vector<128x1xf32>
    %27 = arith.maximumf %24, %26 : vector<128x1xf32>
    %c0_19 = arith.constant 0 : index
    %c0_20 = arith.constant 0 : index
    %28 = vector.load %arg9[%c0_19, %c0_20] : memref<128x1xf32, #tpu.memory_space<vmem>>, vector<128x1xf32>
    %29 = arith.subf %24, %27 : vector<128x1xf32>
    %30 = math.exp %29 : vector<128x1xf32>
    %31 = arith.mulf %28, %30 : vector<128x1xf32>
    %32 = vector.broadcast %27 : vector<128x1xf32> to vector<128x512xf32>
    %33 = arith.subf %8, %32 : vector<128x512xf32>
    %34 = math.exp %33 : vector<128x512xf32>
    %cst_21 = arith.constant dense<0.000000e+00> : vector<128xf32>
    %35 = vector.multi_reduction <add>, %34, %cst_21 [1] : vector<128x512xf32> to vector<128xf32>
    %36 = vector.shape_cast %35 : vector<128xf32> to vector<128x1xf32>
    %37 = arith.addf %31, %36 : vector<128x1xf32>
    %c0_22 = arith.constant 0 : index
    %c0_23 = arith.constant 0 : index
    %38 = vector.load %arg9[%c0_22, %c0_23] : memref<128x1xf32, #tpu.memory_space<vmem>>, vector<128x1xf32>
    tpu.vector_store %arg9[%c0_22, %c0_23], %37 {strides = array<i32>} : memref<128x1xf32, #tpu.memory_space<vmem>>, vector<128x1xf32>,
    %c0_24 = arith.constant 0 : index
    %c0_25 = arith.constant 0 : index
    %39 = vector.load %arg8[%c0_24, %c0_25] : memref<128x1xf32, #tpu.memory_space<vmem>>, vector<128x1xf32>
    tpu.vector_store %arg8[%c0_24, %c0_25], %27 {strides = array<i32>} : memref<128x1xf32, #tpu.memory_space<vmem>>, vector<128x1xf32>,
    %c1_i32 = arith.constant 1 : i32
    %40 = arith.cmpi eq, %arg1, %c1_i32 : i32
    %41 = arith.extui %40 : i1 to i32
    %c0_i32_26 = arith.constant 0 : i32
    %42 = arith.cmpi ne, %41, %c0_i32_26 : i32
    scf.if %42 {
      %c0_27 = arith.constant 0 : index
      %c0_28 = arith.constant 0 : index
      %43 = vector.load %arg8[%c0_27, %c0_28] : memref<128x1xf32, #tpu.memory_space<vmem>>, vector<128x1xf32>
      %c0_29 = arith.constant 0 : index
      %c0_30 = arith.constant 0 : index
      %44 = vector.load %arg9[%c0_29, %c0_30] : memref<128x1xf32, #tpu.memory_space<vmem>>, vector<128x1xf32>
      %45 = math.log %44 : vector<128x1xf32>
      %46 = arith.addf %43, %45 : vector<128x1xf32>
      %c0_i32_31 = arith.constant 0 : i32
      %47 = vector.broadcast %c0_i32_31 : i32 to vector<128x1xi32>
      %48 = arith.cmpi sge, %10, %47 : vector<128x1xi32>
      %c1024_i32 = arith.constant 1024 : i32
      %49 = vector.broadcast %c1024_i32 : i32 to vector<128x1xi32>
      %50 = arith.cmpi slt, %10, %49 : vector<128x1xi32>
      %51 = arith.andi %48, %50 : vector<128x1xi1>
      %c0_32 = arith.constant 0 : index
      %c0_33 = arith.constant 0 : index
      %52 = vector.load %arg10[%c0_32, %c0_33] : memref<128x1xf32, #tpu.memory_space<vmem>>, vector<128x1xf32>
      %53 = arith.subf %46, %52 : vector<128x1xf32>
      %cst_34 = arith.constant 0.000000e+00 : f32
      %54 = vector.broadcast %cst_34 : f32 to vector<128x1xf32>
      %55 = arith.select %51, %53, %54 : vector<128x1xi1>, vector<128x1xf32>
      %c0_35 = arith.constant 0 : index
      %c0_36 = arith.constant 0 : index
      %56 = vector.load %arg7[%c0_35, %c0_36] : memref<128x1xf32, #tpu.memory_space<vmem>>, vector<128x1xf32>
      tpu.vector_store %arg7[%c0_35, %c0_36], %55 {strides = array<i32>} : memref<128x1xf32, #tpu.memory_space<vmem>>, vector<128x1xf32>,
    } else {
    }
    return
  }
  func.func @transform_0(%arg0: i32, %arg1: i32) -> (i32, i32) {
    %c0_i32 = arith.constant 0 : i32
    %c0_i32_0 = arith.constant 0 : i32
    return %arg0, %c0_i32 : i32, i32
  }
  func.func @transform_1(%arg0: i32, %arg1: i32) -> (i32, i32) {
    %c0_i32 = arith.constant 0 : i32
    %c0_i32_0 = arith.constant 0 : i32
    return %arg0, %c0_i32 : i32, i32
  }
  func.func @transform_2(%arg0: i32, %arg1: i32) -> (i32, i32) {
    %c0_i32 = arith.constant 0 : i32
    %c0_i32_0 = arith.constant 0 : i32
    return %c0_i32, %arg1 : i32, i32
  }
  func.func @transform_3(%arg0: i32, %arg1: i32) -> (i32, i32) {
    %c0_i32 = arith.constant 0 : i32
    %c0_i32_0 = arith.constant 0 : i32
    return %c0_i32, %arg1 : i32, i32
  }
  func.func @transform_4(%arg0: i32, %arg1: i32) -> (i32, i32) {
    %c0_i32 = arith.constant 0 : i32
    return %arg0, %arg1 : i32, i32
  }
  func.func @transform_5(%arg0: i32, %arg1: i32) -> (i32, i32) {
    %c0_i32 = arith.constant 0 : i32
    %c0_i32_0 = arith.constant 0 : i32
    return %arg0, %c0_i32 : i32, i32
  }
}

</mosaic_0001>

<llo_original>
// kernel: forward_packed_data.2
$region0: #{forward_packed_data.2}
  #allocation0 [shape = 'u32[]', space=smem, size = 0x4, offset = 0x4, fixed_abs, tag = 'smem constant byte address 0x4 - core index']
  #allocation1 [shape = 'u32[144,128]{1,0:T(1,128)}', space=vmem, size = 0x12000, scoped, tag = 'internal scratch']
  #allocation2 [shape = 'f32[8,128]{1,0:T(8,128)}', space=vmem, size = 0x1000, scoped, tag = 'scratch operand']
  %s0 = inlined_call_operand.vmem [shape: f32[16,8,128], index: 0, kind: input, shape index: {}]
  %s1 = inlined_call_operand.vmem [shape: f32[128,128], index: 1, kind: input, shape index: {}]
  %s2 = inlined_call_operand.vmem [shape: f32[1,128], index: 2, kind: input, shape index: {}]
  %s3 = inlined_call_operand.vmem [shape: f32[128,128], index: 3, kind: input, shape index: {}]
  %s4 = inlined_call_operand.vmem [shape: f32[16,8,128], index: 4, kind: output, shape index: {0}]
  %s5 = inlined_call_operand.hbm [shape: f32[8,128], index: 5, kind: output, shape index: {1}]
  %6 = xla_tuple %s4, %s5
  %s7 = sld [smem:[#allocation0]]
  $region65: #{forward_packed_data.2} parent=0
    _
  %s9 = ssub.s32 1, %s7
  %s10 = scalar_select 0, %s9, %s7
  $region1: #{forward_packed_data.2} parent=0
    #allocation3 [shape = 'u8[4096]{0}', space=vmem, size = 0x1000, scoped, tag = 'output window, operand 1, single buffered']
    #allocation4 [shape = 's32[2]{0}', space=sflag, size = 0x8, scoped, tag = 'scoped memory for forward_packed_data.2']
    %11 = vsyncpa [#allocation4], 0
    loop: start=0, step=1, limit=4
    $region2: #{forward_packed_data.2} parent=1 // loop_pre_header
      _
    $region3: #{forward_packed_data.2} parent=1 // loop_header
      %s13 = sphi 0, %s17
      %p14 = scmp.ge.s32.totalorder %s13, 4
      %s23 = sphi 0, %s25
      %s26 = sphi 0, %s23
      %s27 = sphi 0, %s26
      %s43 = sphi 0, %s27
      %s47 = sphi 0, %s47
      %s49 = sphi 0, %s47
      %s50 = sphi 0, %s49
      %s64 = sphi 0, %s50
      %s68 = sphi 0, %s68
      %s70 = sphi 0, %s68
      %s71 = sphi 0, %s70
      %s85 = sphi 0, %s71
      %s89 = sphi 0, %s89
      %s91 = sphi 0, %s89
      %s92 = sphi 0, %s91
      %s106 = sphi 0, %s92
      %s112 = sphi 0, %s114
      %s115 = sphi 0, %s112
      %s116 = sphi 0, %s115
      %s132 = sphi 0, %s116
      %s136 = sphi 0, %s136
      %s138 = sphi 0, %s136
      %s139 = sphi 0, %s138
      %s153 = sphi 0, %s139
    $region4: #{forward_packed_data.2} parent=1 // loop_header_branch
      %16 = sbr.rel (%p14) target = $region8
    $region5: #{forward_packed_data.2} parent=1 // loop_body
      %s18 = ssub.s32 %s13, 1
      %s19 = ssub.s32 %s13, 2
      %s20 = sadd.s32 %s13, 1
      %s21 = ssub.s32 %s13, %s20
      %p22 = scmp.eq.s32.totalorder %s21, 0
      %s24 = sadd.s32 %s23, 1
      %s25 = scalar_select %p22, %s23, %s24
      %p28 = pneg %p22
      %p29 = scmp.eq.s32.totalorder %s13, 1
      %p30 = por %p28, %p29
      %p31 = scmp.ne.s32.totalorder %s23, %s26
      %p32 = scmp.eq.s32.totalorder %s13, 0
      %p33 = por %p31, %p32
      %p34 = scmp.ne.s32.totalorder %s23, %s26
      %p35 = scmp.eq.s32.totalorder %s18, 1
      %p36 = por %p34, %p35
      %p37 = scmp.ne.s32.totalorder %s26, %s27
      %p38 = scmp.eq.s32.totalorder %s18, 0
      %p39 = por %p37, %p38
      %p40 = scmp.ne.s32.totalorder %s26, %s27
      %p41 = scmp.eq.s32.totalorder %s19, 1
      %p42 = por %p40, %p41
      %p44 = scmp.ne.s32.totalorder %s27, %s43
      %p45 = scmp.eq.s32.totalorder %s19, 0
      %p46 = por %p44, %p45
      %s48 = sadd.s32 %s47, 1
      %p51 = scmp.eq.s32.totalorder %s13, 1
      %p52 = scmp.ne.s32.totalorder %s47, %s49
      %p53 = scmp.eq.s32.totalorder %s13, 0
      %p54 = por %p52, %p53
      %p55 = scmp.ne.s32.totalorder %s47, %s49
      %p56 = scmp.eq.s32.totalorder %s18, 1
      %p57 = por %p55, %p56
      %p58 = scmp.ne.s32.totalorder %s49, %s50
      %p59 = scmp.eq.s32.totalorder %s18, 0
      %p60 = por %p58, %p59
      %p61 = scmp.ne.s32.totalorder %s49, %s50
      %p62 = scmp.eq.s32.totalorder %s19, 1
      %p63 = por %p61, %p62
      %p65 = scmp.ne.s32.totalorder %s50, %s64
      %p66 = scmp.eq.s32.totalorder %s19, 0
      %p67 = por %p65, %p66
      %s69 = sadd.s32 %s68, 1
      %p72 = scmp.eq.s32.totalorder %s13, 1
      %p73 = scmp.ne.s32.totalorder %s68, %s70
      %p74 = scmp.eq.s32.totalorder %s13, 0
      %p75 = por %p73, %p74
      %p76 = scmp.ne.s32.totalorder %s68, %s70
      %p77 = scmp.eq.s32.totalorder %s18, 1
      %p78 = por %p76, %p77
      %p79 = scmp.ne.s32.totalorder %s70, %s71
      %p80 = scmp.eq.s32.totalorder %s18, 0
      %p81 = por %p79, %p80
      %p82 = scmp.ne.s32.totalorder %s70, %s71
      %p83 = scmp.eq.s32.totalorder %s19, 1
      %p84 = por %p82, %p83
      %p86 = scmp.ne.s32.totalorder %s71, %s85
      %p87 = scmp.eq.s32.totalorder %s19, 0
      %p88 = por %p86, %p87
      %s90 = sadd.s32 %s89, 1
      %p93 = scmp.eq.s32.totalorder %s13, 1
      %p94 = scmp.ne.s32.totalorder %s89, %s91
      %p95 = scmp.eq.s32.totalorder %s13, 0
      %p96 = por %p94, %p95
      %p97 = scmp.ne.s32.totalorder %s89, %s91
      %p98 = scmp.eq.s32.totalorder %s18, 1
      %p99 = por %p97, %p98
      %p100 = scmp.ne.s32.totalorder %s91, %s92
      %p101 = scmp.eq.s32.totalorder %s18, 0
      %p102 = por %p100, %p101
      %p103 = scmp.ne.s32.totalorder %s91, %s92
      %p104 = scmp.eq.s32.totalorder %s19, 1
      %p105 = por %p103, %p104
      %p107 = scmp.ne.s32.totalorder %s92, %s106
      %p108 = scmp.eq.s32.totalorder %s19, 0
      %p109 = por %p107, %p108
      %s110 = ssub.s32 %s13, %s20
      %p111 = scmp.eq.s32.totalorder %s110, 0
      %s113 = sadd.s32 %s112, 1
      %s114 = scalar_select %p111, %s112, %s113
      %p117 = pneg %p111
      %p118 = scmp.eq.s32.totalorder %s13, 1
      %p119 = por %p117, %p118
      %p120 = scmp.ne.s32.totalorder %s112, %s115
      %p121 = scmp.eq.s32.totalorder %s13, 0
      %p122 = por %p120, %p121
      %p123 = scmp.ne.s32.totalorder %s112, %s115
      %p124 = scmp.eq.s32.totalorder %s18, 1
      %p125 = por %p123, %p124
      %p126 = scmp.ne.s32.totalorder %s115, %s116
      %p127 = scmp.eq.s32.totalorder %s18, 0
      %p128 = por %p126, %p127
      %p129 = scmp.ne.s32.totalorder %s115, %s116
      %p130 = scmp.eq.s32.totalorder %s19, 1
      %p131 = por %p129, %p130
      %p133 = scmp.ne.s32.totalorder %s116, %s132
      %p134 = scmp.eq.s32.totalorder %s19, 0
      %p135 = por %p133, %p134
      %s137 = sadd.s32 %s136, 1
      %p140 = scmp.eq.s32.totalorder %s13, 1
      %p141 = scmp.ne.s32.totalorder %s136, %s138
      %p142 = scmp.eq.s32.totalorder %s13, 0
      %p143 = por %p141, %p142
      %p144 = scmp.ne.s32.totalorder %s136, %s138
      %p145 = scmp.eq.s32.totalorder %s18, 1
      %p146 = por %p144, %p145
      %p147 = scmp.ne.s32.totalorder %s138, %s139
      %p148 = scmp.eq.s32.totalorder %s18, 0
      %p149 = por %p147, %p148
      %p150 = scmp.ne.s32.totalorder %s138, %s139
      %p151 = scmp.eq.s32.totalorder %s19, 1
      %p152 = por %p150, %p151
      %p154 = scmp.ne.s32.totalorder %s139, %s153
      %p155 = scmp.eq.s32.totalorder %s19, 0
      %p156 = por %p154, %p155
      %p157 = scmp.le.s32.totalorder 1, %s13
      %p158 = scmp.lt.s32.totalorder %s13, 3
      %p159 = pnand %p157, %p158
      %p160 = pneg %p159
      // Predicated region
      $region9: #{forward_packed_data.2} parent=5 // pred_check
        _
      $region10: #{forward_packed_data.2} parent=5 // pred_check_branch
        %162 = sbr.rel (%p159) target = $region12
      $region11: #{forward_packed_data.2} parent=5 // pred_region
        %s163 = ssub.s32 %s13, 1
        // Predicated region
        $region13: #{forward_packed_data.2} parent=11 // pred_check
          %p164 = pneg %p60
        $region14: #{forward_packed_data.2} parent=11 // pred_check_branch
          %166 = sbr.rel (%p164) target = $region16
        $region15: #{forward_packed_data.2} parent=11 // pred_region
          _
        $region16: #{forward_packed_data.2} parent=11 // pred_fallthru
          _
        // Predicated region
        $region17: #{forward_packed_data.2} parent=11 // pred_check
          %p167 = pneg %p81
        $region18: #{forward_packed_data.2} parent=11 // pred_check_branch
          %169 = sbr.rel (%p167) target = $region20
        $region19: #{forward_packed_data.2} parent=11 // pred_region
          _
        $region20: #{forward_packed_data.2} parent=11 // pred_fallthru
          _
        // Predicated region
        $region21: #{forward_packed_data.2} parent=11 // pred_check
          %p170 = pneg %p102
        $region22: #{forward_packed_data.2} parent=11 // pred_check_branch
          %172 = sbr.rel (%p170) target = $region24
        $region23: #{forward_packed_data.2} parent=11 // pred_region
          _
        $region24: #{forward_packed_data.2} parent=11 // pred_fallthru
          _
      $region12: #{forward_packed_data.2} parent=5 // pred_fallthru
        _
      %p173 = scmp.lt.s32.totalorder %s13, 2
      // Predicated region
      $region25: #{forward_packed_data.2} parent=5 // pred_check
        %p174 = pneg %p173
      $region26: #{forward_packed_data.2} parent=5 // pred_check_branch
        %176 = sbr.rel (%p174) target = $region28
      $region27: #{forward_packed_data.2} parent=5 // pred_region
        // Predicated region
        $region29: #{forward_packed_data.2} parent=27 // pred_check
          %p177 = pneg %p33
        $region30: #{forward_packed_data.2} parent=27 // pred_check_branch
          %179 = sbr.rel (%p177) target = $region32
        $region31: #{forward_packed_data.2} parent=27 // pred_region
          %s180 = smul.u32 8, %s13
          %p181 = scmp.lt.s32.totalorder %s180, 15
          %s182 = scalar_select %p181, %s180, 15
          %s183 = smul.addr %s182, 8
          %s184 = scalar_lea.vmem %s0, %s183
          %s185 = smul.u32 8, %s13
        $region32: #{forward_packed_data.2} parent=27 // pred_fallthru
          _
      $region28: #{forward_packed_data.2} parent=5 // pred_fallthru
        _
      %p186 = scmp.le.s32.totalorder 1, %s13
      %p187 = scmp.lt.s32.totalorder %s13, 3
      %p188 = pnand %p186, %p187
      %p189 = pneg %p188
      // Predicated region
      $region33: #{forward_packed_data.2} parent=5 // pred_check
        _
      $region34: #{forward_packed_data.2} parent=5 // pred_check_branch
        %191 = sbr.rel (%p188) target = $region36
      $region35: #{forward_packed_data.2} parent=5 // pred_region
        %s192 = ssub.s32 %s13, 1
        %s193 = smul.u32 8, %s18
        %p194 = scmp.lt.s32.totalorder %s193, 15
        %s195 = scalar_select %p194, %s193, 15
        %s196 = smul.addr %s195, 8
        %s197 = scalar_lea.vmem %s0, %s196
        %p198 = pneg %p39
        %p199 = pneg %p36
        %p200 = pneg %p60
        %p201 = pneg %p57
        %p202 = pneg %p81
        %p203 = pneg %p78
        %p204 = pneg %p102
        %p205 = pneg %p99
        %p206 = pneg %p128
        %p207 = pneg %p125
        %s208 = smul.u32 8, %s18
        %p209 = scmp.lt.s32.totalorder %s208, 15
        %s210 = scalar_select %p209, %s208, 15
        %s211 = smul.addr %s210, 8
        %s212 = scalar_lea.vmem %s4, %s211
        %p213 = pneg %p149
        %p214 = pneg %p146
        %s215 = smul.u32 8, %s18
        %p216 = scmp.lt.s32.totalorder %s215, 15
        %s217 = scalar_select %p216, %s215, 15
        %s218 = smul.addr %s217, 8
        %s219 = scalar_lea.vmem %s0, %s218
        %s220 = smul.u32 8, %s18
        %s221 = smul.u32 8, %s18
        %p222 = scmp.lt.s32.totalorder %s221, 15
        %s223 = scalar_select %p222, %s221, 15
        %s224 = smul.addr %s223, 8
        %s225 = scalar_lea.vmem %s4, %s224
        %s226 = smul.u32 8, %s18
        %v227 = vld [vmem:[%s219] sm:$0xff]
        %v228 = vld [vmem:[%s219 + $0x8] sm:$0xff]
        %v229 = vld [vmem:[%s219 + $0x10] sm:$0xff]
        %v230 = vld [vmem:[%s219 + $0x18] sm:$0xff]
        %v231 = vld [vmem:[%s219 + $0x20] sm:$0xff]
        %v232 = vld [vmem:[%s219 + $0x28] sm:$0xff]
        %v233 = vld [vmem:[%s219 + $0x30] sm:$0xff]
        %v234 = vld [vmem:[%s219 + $0x38] sm:$0xff]
        %v235 = vld [vmem:[%s1] sm:$0xff]
        %v236 = vld [vmem:[%s1 + $0x8] sm:$0xff]
        %v237 = vld [vmem:[%s1 + $0x10] sm:$0xff]
        %v238 = vld [vmem:[%s1 + $0x18] sm:$0xff]
        %v239 = vld [vmem:[%s1 + $0x20] sm:$0xff]
        %v240 = vld [vmem:[%s1 + $0x28] sm:$0xff]
        %v241 = vld [vmem:[%s1 + $0x30] sm:$0xff]
        %v242 = vld [vmem:[%s1 + $0x38] sm:$0xff]
        %v243 = vld [vmem:[%s1 + $0x40] sm:$0xff]
        %v244 = vld [vmem:[%s1 + $0x48] sm:$0xff]
        %v245 = vld [vmem:[%s1 + $0x50] sm:$0xff]
        %v246 = vld [vmem:[%s1 + $0x58] sm:$0xff]
        %v247 = vld [vmem:[%s1 + $0x60] sm:$0xff]
        %v248 = vld [vmem:[%s1 + $0x68] sm:$0xff]
        %v249 = vld [vmem:[%s1 + $0x70] sm:$0xff]
        %v250 = vld [vmem:[%s1 + $0x78] sm:$0xff]
        %v251 = vld [vmem:[%s2] sm:$0x1]
        %v253 = vlaneseq
        %v254 = vshrl.u32 %v253, 7
        %v255 = vsub.s32 0, %v254
        %v256 = vrot.slane %v251, %v255
        %258 = vmatprep.subr.mxu0 0.0
        %259 = vmatpush1.msra.mxu0 %v235
        %260 = vmatprep.subr.mxu0 0.0
        %261 = vmatpush1.msra.mxu0 %v236
        %262 = vmatprep.subr.mxu0 0.0
        %263 = vmatpush1.msra.mxu0 %v237
        %264 = vmatprep.subr.mxu0 0.0
        %265 = vmatpush1.msra.mxu0 %v238
        %266 = vmatprep.subr.mxu0 0.0
        %267 = vmatpush1.msra.mxu0 %v239
        %268 = vmatprep.subr.mxu0 0.0
        %269 = vmatpush1.msra.mxu0 %v240
        %270 = vmatprep.subr.mxu0 0.0
        %271 = vmatpush1.msra.mxu0 %v241
        %272 = vmatprep.subr.mxu0 0.0
        %273 = vmatpush1.msra.mxu0 %v242
        %274 = vmatprep.subr.mxu0 0.0
        %275 = vmatpush1.msra.mxu0 %v243
        %276 = vmatprep.subr.mxu0 0.0
        %277 = vmatpush1.msra.mxu0 %v244
        %278 = vmatprep.subr.mxu0 0.0
        %279 = vmatpush1.msra.mxu0 %v245
        %280 = vmatprep.subr.mxu0 0.0
        %281 = vmatpush1.msra.mxu0 %v246
        %282 = vmatprep.subr.mxu0 0.0
        %283 = vmatpush1.msra.mxu0 %v247
        %284 = vmatprep.subr.mxu0 0.0
        %285 = vmatpush1.msra.mxu0 %v248
        %286 = vmatprep.subr.mxu0 0.0
        %287 = vmatpush1.msra.mxu0 %v249
        %288 = vmatprep.subr.mxu0 0.0
        %289 = vmatpush1.msra.mxu0 %v250
        %290 = vmatprep.subr.mxu0 0.0
        %291 = vmatpush1.msra.mxu0 0.0
        %292 = vmatprep.subr.mxu0 0.0
        %293 = vmatpush1.msra.mxu0 0.0
        %294 = vmatprep.subr.mxu0 0.0
        %295 = vmatpush1.msra.mxu0 0.0
        %296 = vmatprep.subr.mxu0 0.0
        %297 = vmatpush1.msra.mxu0 0.0
        %298 = vmatprep.subr.mxu0 0.0
        %299 = vmatpush1.msra.mxu0 0.0
        %300 = vmatprep.subr.mxu0 0.0
        %301 = vmatpush1.msra.mxu0 0.0
        %302 = vmatprep.subr.mxu0 0.0
        %303 = vmatpush1.msra.mxu0 0.0
        %304 = vmatprep.subr.mxu0 0.0
        %305 = vmatpush1.msra.mxu0 0.0
        %306 = vmatprep.subr.mxu0 0.0
        %307 = vmatpush1.msra.mxu0 0.0
        %308 = vmatprep.subr.mxu0 0.0
        %309 = vmatpush1.msra.mxu0 0.0
        %310 = vmatprep.subr.mxu0 0.0
        %311 = vmatpush1.msra.mxu0 0.0
        %312 = vmatprep.subr.mxu0 0.0
        %313 = vmatpush1.msra.mxu0 0.0
        %314 = vmatprep.subr.mxu0 0.0
        %315 = vmatpush1.msra.mxu0 0.0
        %316 = vmatprep.subr.mxu0 0.0
        %317 = vmatpush1.msra.mxu0 0.0
        %318 = vmatprep.subr.mxu0 0.0
        %319 = vmatpush1.msra.mxu0 0.0
        %320 = vmatprep.subr.mxu0 0.0
        %321 = vmatpush1.msra.mxu0 0.0
        %322 = vmatprep.mubr.f32.mxu0 0.0
        %323 = vmatmul.mubr.f32.gmra.mrb[0].mxu0 %v227
        %v324 = vpop.f32.mrb[0].mxu0
        %v325 = vadd.f32 %v256, %v324
        %v326 = vpop.f32.mrb[0].mxu0
        %327 = vmatprep.mubr.f32.mxu0 0.0
        %328 = vmatmul.mubr.f32.gmra.mrb[0].mxu0 %v228
        %v329 = vpop.f32.mrb[0].mxu0
        %v330 = vadd.f32 %v256, %v329
        %v331 = vpop.f32.mrb[0].mxu0
        %332 = vmatprep.mubr.f32.mxu0 0.0
        %333 = vmatmul.mubr.f32.gmra.mrb[0].mxu0 %v229
        %v334 = vpop.f32.mrb[0].mxu0
        %v335 = vadd.f32 %v256, %v334
        %v336 = vpop.f32.mrb[0].mxu0
        %337 = vmatprep.mubr.f32.mxu0 0.0
        %338 = vmatmul.mubr.f32.gmra.mrb[0].mxu0 %v230
        %v339 = vpop.f32.mrb[0].mxu0
        %v340 = vadd.f32 %v256, %v339
        %v341 = vpop.f32.mrb[0].mxu0
        %342 = vmatprep.mubr.f32.mxu0 0.0
        %343 = vmatmul.mubr.f32.gmra.mrb[0].mxu0 %v231
        %v344 = vpop.f32.mrb[0].mxu0
        %v345 = vadd.f32 %v256, %v344
        %v346 = vpop.f32.mrb[0].mxu0
        %347 = vmatprep.mubr.f32.mxu0 0.0
        %348 = vmatmul.mubr.f32.gmra.mrb[0].mxu0 %v232
        %v349 = vpop.f32.mrb[0].mxu0
        %v350 = vadd.f32 %v256, %v349
        %v351 = vpop.f32.mrb[0].mxu0
        %352 = vmatprep.mubr.f32.mxu0 0.0
        %353 = vmatmul.mubr.f32.gmra.mrb[0].mxu0 %v233
        %v354 = vpop.f32.mrb[0].mxu0
        %v355 = vadd.f32 %v256, %v354
        %v356 = vpop.f32.mrb[0].mxu0
        %357 = vmatprep.mubr.f32.mxu0 0.0
        %358 = vmatmul.mubr.f32.gmra.mrb[0].mxu0 %v234
        %v359 = vpop.f32.mrb[0].mxu0
        %v360 = vadd.f32 %v256, %v359
        %v361 = vpop.f32.mrb[0].mxu0
        %362 = vdwg.mxu0
        %p363 = scmp.eq.s32.totalorder %s18, 0
        // Predicated region
        $region37: #{forward_packed_data.2} parent=35 // pred_check
          %p364 = pneg %p363
        $region38: #{forward_packed_data.2} parent=35 // pred_check_branch
          %366 = sbr.rel (%p364) target = $region40
        $region39: #{forward_packed_data.2} parent=35 // pred_region
          %367 = vst [vmem:[#allocation2] sm:$0xff] 0.0
        $region40: #{forward_packed_data.2} parent=35 // pred_fallthru
          _
        %v368 = vld [vmem:[#allocation2] sm:$0xff]
        %v369 = vld [vmem:[%s3] sm:$0xff]
        %v370 = vld [vmem:[%s3 + $0x8] sm:$0xff]
        %v371 = vld [vmem:[%s3 + $0x10] sm:$0xff]
        %v372 = vld [vmem:[%s3 + $0x18] sm:$0xff]
        %v373 = vld [vmem:[%s3 + $0x20] sm:$0xff]
        %v374 = vld [vmem:[%s3 + $0x28] sm:$0xff]
        %v375 = vld [vmem:[%s3 + $0x30] sm:$0xff]
        %v376 = vld [vmem:[%s3 + $0x38] sm:$0xff]
        %v377 = vld [vmem:[%s3 + $0x40] sm:$0xff]
        %v378 = vld [vmem:[%s3 + $0x48] sm:$0xff]
        %v379 = vld [vmem:[%s3 + $0x50] sm:$0xff]
        %v380 = vld [vmem:[%s3 + $0x58] sm:$0xff]
        %v381 = vld [vmem:[%s3 + $0x60] sm:$0xff]
        %v382 = vld [vmem:[%s3 + $0x68] sm:$0xff]
        %v383 = vld [vmem:[%s3 + $0x70] sm:$0xff]
        %v384 = vld [vmem:[%s3 + $0x78] sm:$0xff]
        %385 = vmatprep.subr.mxu0 0.0
        %386 = vmatpush1.msra.mxu0 %v369
        %387 = vmatprep.subr.mxu0 0.0
        %388 = vmatpush1.msra.mxu0 %v370
        %389 = vmatprep.subr.mxu0 0.0
        %390 = vmatpush1.msra.mxu0 %v371
        %391 = vmatprep.subr.mxu0 0.0
        %392 = vmatpush1.msra.mxu0 %v372
        %393 = vmatprep.subr.mxu0 0.0
        %394 = vmatpush1.msra.mxu0 %v373
        %395 = vmatprep.subr.mxu0 0.0
        %396 = vmatpush1.msra.mxu0 %v374
        %397 = vmatprep.subr.mxu0 0.0
        %398 = vmatpush1.msra.mxu0 %v375
        %399 = vmatprep.subr.mxu0 0.0
        %400 = vmatpush1.msra.mxu0 %v376
        %401 = vmatprep.subr.mxu0 0.0
        %402 = vmatpush1.msra.mxu0 %v377
        %403 = vmatprep.subr.mxu0 0.0
        %404 = vmatpush1.msra.mxu0 %v378
        %405 = vmatprep.subr.mxu0 0.0
        %406 = vmatpush1.msra.mxu0 %v379
        %407 = vmatprep.subr.mxu0 0.0
        %408 = vmatpush1.msra.mxu0 %v380
        %409 = vmatprep.subr.mxu0 0.0
        %410 = vmatpush1.msra.mxu0 %v381
        %411 = vmatprep.subr.mxu0 0.0
        %412 = vmatpush1.msra.mxu0 %v382
        %413 = vmatprep.subr.mxu0 0.0
        %414 = vmatpush1.msra.mxu0 %v383
        %415 = vmatprep.subr.mxu0 0.0
        %416 = vmatpush1.msra.mxu0 %v384
        %417 = vmatprep.subr.mxu0 0.0
        %418 = vmatpush1.msra.mxu0 0.0
        %419 = vmatprep.subr.mxu0 0.0
        %420 = vmatpush1.msra.mxu0 0.0
        %421 = vmatprep.subr.mxu0 0.0
        %422 = vmatpush1.msra.mxu0 0.0
        %423 = vmatprep.subr.mxu0 0.0
        %424 = vmatpush1.msra.mxu0 0.0
        %425 = vmatprep.subr.mxu0 0.0
        %426 = vmatpush1.msra.mxu0 0.0
        %427 = vmatprep.subr.mxu0 0.0
        %428 = vmatpush1.msra.mxu0 0.0
        %429 = vmatprep.subr.mxu0 0.0
        %430 = vmatpush1.msra.mxu0 0.0
        %431 = vmatprep.subr.mxu0 0.0
        %432 = vmatpush1.msra.mxu0 0.0
        %433 = vmatprep.subr.mxu0 0.0
        %434 = vmatpush1.msra.mxu0 0.0
        %435 = vmatprep.subr.mxu0 0.0
        %436 = vmatpush1.msra.mxu0 0.0
        %437 = vmatprep.subr.mxu0 0.0
        %438 = vmatpush1.msra.mxu0 0.0
        %439 = vmatprep.subr.mxu0 0.0
        %440 = vmatpush1.msra.mxu0 0.0
        %441 = vmatprep.subr.mxu0 0.0
        %442 = vmatpush1.msra.mxu0 0.0
        %443 = vmatprep.subr.mxu0 0.0
        %444 = vmatpush1.msra.mxu0 0.0
        %445 = vmatprep.subr.mxu0 0.0
        %446 = vmatpush1.msra.mxu0 0.0
        %447 = vmatprep.subr.mxu0 0.0
        %448 = vmatpush1.msra.mxu0 0.0
        %449 = vmatprep.mubr.f32.mxu0 0.0
        %450 = vmatmul.mubr.f32.gmra.mrb[0].mxu0 %v368
        %v451 = vpop.f32.mrb[0].mxu0
        %v452 = vadd.f32 0.0, %v451
        %v453 = vpop.f32.mrb[0].mxu0
        %454 = vdwg.mxu0
        %v455 = vadd.f32 %v325, %v452
        %v456 = vtanh.pop %v455
        %457 = vst [vmem:[%s225] sm:$0xff] %v456
        %v458 = vld [vmem:[%s3] sm:$0xff]
        %v459 = vld [vmem:[%s3 + $0x8] sm:$0xff]
        %v460 = vld [vmem:[%s3 + $0x10] sm:$0xff]
        %v461 = vld [vmem:[%s3 + $0x18] sm:$0xff]
        %v462 = vld [vmem:[%s3 + $0x20] sm:$0xff]
        %v463 = vld [vmem:[%s3 + $0x28] sm:$0xff]
        %v464 = vld [vmem:[%s3 + $0x30] sm:$0xff]
        %v465 = vld [vmem:[%s3 + $0x38] sm:$0xff]
        %v466 = vld [vmem:[%s3 + $0x40] sm:$0xff]
        %v467 = vld [vmem:[%s3 + $0x48] sm:$0xff]
        %v468 = vld [vmem:[%s3 + $0x50] sm:$0xff]
        %v469 = vld [vmem:[%s3 + $0x58] sm:$0xff]
        %v470 = vld [vmem:[%s3 + $0x60] sm:$0xff]
        %v471 = vld [vmem:[%s3 + $0x68] sm:$0xff]
        %v472 = vld [vmem:[%s3 + $0x70] sm:$0xff]
        %v473 = vld [vmem:[%s3 + $0x78] sm:$0xff]
        %474 = vmatprep.subr.mxu0 0.0
        %475 = vmatpush1.msra.mxu0 %v458
        %476 = vmatprep.subr.mxu0 0.0
        %477 = vmatpush1.msra.mxu0 %v459
        %478 = vmatprep.subr.mxu0 0.0
        %479 = vmatpush1.msra.mxu0 %v460
        %480 = vmatprep.subr.mxu0 0.0
        %481 = vmatpush1.msra.mxu0 %v461
        %482 = vmatprep.subr.mxu0 0.0
        %483 = vmatpush1.msra.mxu0 %v462
        %484 = vmatprep.subr.mxu0 0.0
        %485 = vmatpush1.msra.mxu0 %v463
        %486 = vmatprep.subr.mxu0 0.0
        %487 = vmatpush1.msra.mxu0 %v464
        %488 = vmatprep.subr.mxu0 0.0
        %489 = vmatpush1.msra.mxu0 %v465
        %490 = vmatprep.subr.mxu0 0.0
        %491 = vmatpush1.msra.mxu0 %v466
        %492 = vmatprep.subr.mxu0 0.0
        %493 = vmatpush1.msra.mxu0 %v467
        %494 = vmatprep.subr.mxu0 0.0
        %495 = vmatpush1.msra.mxu0 %v468
        %496 = vmatprep.subr.mxu0 0.0
        %497 = vmatpush1.msra.mxu0 %v469
        %498 = vmatprep.subr.mxu0 0.0
        %499 = vmatpush1.msra.mxu0 %v470
        %500 = vmatprep.subr.mxu0 0.0
        %501 = vmatpush1.msra.mxu0 %v471
        %502 = vmatprep.subr.mxu0 0.0
        %503 = vmatpush1.msra.mxu0 %v472
        %504 = vmatprep.subr.mxu0 0.0
        %505 = vmatpush1.msra.mxu0 %v473
        %506 = vmatprep.subr.mxu0 0.0
        %507 = vmatpush1.msra.mxu0 0.0
        %508 = vmatprep.subr.mxu0 0.0
        %509 = vmatpush1.msra.mxu0 0.0
        %510 = vmatprep.subr.mxu0 0.0
        %511 = vmatpush1.msra.mxu0 0.0
        %512 = vmatprep.subr.mxu0 0.0
        %513 = vmatpush1.msra.mxu0 0.0
        %514 = vmatprep.subr.mxu0 0.0
        %515 = vmatpush1.msra.mxu0 0.0
        %516 = vmatprep.subr.mxu0 0.0
        %517 = vmatpush1.msra.mxu0 0.0
        %518 = vmatprep.subr.mxu0 0.0
        %519 = vmatpush1.msra.mxu0 0.0
        %520 = vmatprep.subr.mxu0 0.0
        %521 = vmatpush1.msra.mxu0 0.0
        %522 = vmatprep.subr.mxu0 0.0
        %523 = vmatpush1.msra.mxu0 0.0
        %524 = vmatprep.subr.mxu0 0.0
        %525 = vmatpush1.msra.mxu0 0.0
        %526 = vmatprep.subr.mxu0 0.0
        %527 = vmatpush1.msra.mxu0 0.0
        %528 = vmatprep.subr.mxu0 0.0
        %529 = vmatpush1.msra.mxu0 0.0
        %530 = vmatprep.subr.mxu0 0.0
        %531 = vmatpush1.msra.mxu0 0.0
        %532 = vmatprep.subr.mxu0 0.0
        %533 = vmatpush1.msra.mxu0 0.0
        %534 = vmatprep.subr.mxu0 0.0
        %535 = vmatpush1.msra.mxu0 0.0
        %536 = vmatprep.subr.mxu0 0.0
        %537 = vmatpush1.msra.mxu0 0.0
        %538 = vmatprep.mubr.f32.mxu0 0.0
        %539 = vmatmul.mubr.f32.gmra.mrb[0].mxu0 %v456
        %v540 = vpop.f32.mrb[0].mxu0
        %v541 = vadd.f32 0.0, %v540
        %v542 = vpop.f32.mrb[0].mxu0
        %543 = vdwg.mxu0
        %v544 = vadd.f32 %v330, %v541
        %v545 = vtanh.pop %v544
        %s546 = scalar_lea.vmem %s225, 8
        %547 = vst [vmem:[%s546] sm:$0xff] %v545
        %v548 = vld [vmem:[%s3] sm:$0xff]
        %v549 = vld [vmem:[%s3 + $0x8] sm:$0xff]
        %v550 = vld [vmem:[%s3 + $0x10] sm:$0xff]
        %v551 = vld [vmem:[%s3 + $0x18] sm:$0xff]
        %v552 = vld [vmem:[%s3 + $0x20] sm:$0xff]
        %v553 = vld [vmem:[%s3 + $0x28] sm:$0xff]
        %v554 = vld [vmem:[%s3 + $0x30] sm:$0xff]
        %v555 = vld [vmem:[%s3 + $0x38] sm:$0xff]
        %v556 = vld [vmem:[%s3 + $0x40] sm:$0xff]
        %v557 = vld [vmem:[%s3 + $0x48] sm:$0xff]
        %v558 = vld [vmem:[%s3 + $0x50] sm:$0xff]
        %v559 = vld [vmem:[%s3 + $0x58] sm:$0xff]
        %v560 = vld [vmem:[%s3 + $0x60] sm:$0xff]
        %v561 = vld [vmem:[%s3 + $0x68] sm:$0xff]
        %v562 = vld [vmem:[%s3 + $0x70] sm:$0xff]
        %v563 = vld [vmem:[%s3 + $0x78] sm:$0xff]
        %564 = vmatprep.subr.mxu0 0.0
        %565 = vmatpush1.msra.mxu0 %v548
        %566 = vmatprep.subr.mxu0 0.0
        %567 = vmatpush1.msra.mxu0 %v549
        %568 = vmatprep.subr.mxu0 0.0
        %569 = vmatpush1.msra.mxu0 %v550
        %570 = vmatprep.subr.mxu0 0.0
        %571 = vmatpush1.msra.mxu0 %v551
        %572 = vmatprep.subr.mxu0 0.0
        %573 = vmatpush1.msra.mxu0 %v552
        %574 = vmatprep.subr.mxu0 0.0
        %575 = vmatpush1.msra.mxu0 %v553
        %576 = vmatprep.subr.mxu0 0.0
        %577 = vmatpush1.msra.mxu0 %v554
        %578 = vmatprep.subr.mxu0 0.0
        %579 = vmatpush1.msra.mxu0 %v555
        %580 = vmatprep.subr.mxu0 0.0
        %581 = vmatpush1.msra.mxu0 %v556
        %582 = vmatprep.subr.mxu0 0.0
        %583 = vmatpush1.msra.mxu0 %v557
        %584 = vmatprep.subr.mxu0 0.0
        %585 = vmatpush1.msra.mxu0 %v558
        %586 = vmatprep.subr.mxu0 0.0
        %587 = vmatpush1.msra.mxu0 %v559
        %588 = vmatprep.subr.mxu0 0.0
        %589 = vmatpush1.msra.mxu0 %v560
        %590 = vmatprep.subr.mxu0 0.0
        %591 = vmatpush1.msra.mxu0 %v561
        %592 = vmatprep.subr.mxu0 0.0
        %593 = vmatpush1.msra.mxu0 %v562
        %594 = vmatprep.subr.mxu0 0.0
        %595 = vmatpush1.msra.mxu0 %v563
        %596 = vmatprep.subr.mxu0 0.0
        %597 = vmatpush1.msra.mxu0 0.0
        %598 = vmatprep.subr.mxu0 0.0
        %599 = vmatpush1.msra.mxu0 0.0
        %600 = vmatprep.subr.mxu0 0.0
        %601 = vmatpush1.msra.mxu0 0.0
        %602 = vmatprep.subr.mxu0 0.0
        %603 = vmatpush1.msra.mxu0 0.0
        %604 = vmatprep.subr.mxu0 0.0
        %605 = vmatpush1.msra.mxu0 0.0
        %606 = vmatprep.subr.mxu0 0.0
        %607 = vmatpush1.msra.mxu0 0.0
        %608 = vmatprep.subr.mxu0 0.0
        %609 = vmatpush1.msra.mxu0 0.0
        %610 = vmatprep.subr.mxu0 0.0
        %611 = vmatpush1.msra.mxu0 0.0
        %612 = vmatprep.subr.mxu0 0.0
        %613 = vmatpush1.msra.mxu0 0.0
        %614 = vmatprep.subr.mxu0 0.0
        %615 = vmatpush1.msra.mxu0 0.0
        %616 = vmatprep.subr.mxu0 0.0
        %617 = vmatpush1.msra.mxu0 0.0
        %618 = vmatprep.subr.mxu0 0.0
        %619 = vmatpush1.msra.mxu0 0.0
        %620 = vmatprep.subr.mxu0 0.0
        %621 = vmatpush1.msra.mxu0 0.0
        %622 = vmatprep.subr.mxu0 0.0
        %623 = vmatpush1.msra.mxu0 0.0
        %624 = vmatprep.subr.mxu0 0.0
        %625 = vmatpush1.msra.mxu0 0.0
        %626 = vmatprep.subr.mxu0 0.0
        %627 = vmatpush1.msra.mxu0 0.0
        %628 = vmatprep.mubr.f32.mxu0 0.0
        %629 = vmatmul.mubr.f32.gmra.mrb[0].mxu0 %v545
        %v630 = vpop.f32.mrb[0].mxu0
        %v631 = vadd.f32 0.0, %v630
        %v632 = vpop.f32.mrb[0].mxu0
        %633 = vdwg.mxu0
        %v634 = vadd.f32 %v335, %v631
        %v635 = vtanh.pop %v634
        %s636 = scalar_lea.vmem %s225, 16
        %637 = vst [vmem:[%s636] sm:$0xff] %v635
        %v638 = vld [vmem:[%s3] sm:$0xff]
        %v639 = vld [vmem:[%s3 + $0x8] sm:$0xff]
        %v640 = vld [vmem:[%s3 + $0x10] sm:$0xff]
        %v641 = vld [vmem:[%s3 + $0x18] sm:$0xff]
        %v642 = vld [vmem:[%s3 + $0x20] sm:$0xff]
        %v643 = vld [vmem:[%s3 + $0x28] sm:$0xff]
        %v644 = vld [vmem:[%s3 + $0x30] sm:$0xff]
        %v645 = vld [vmem:[%s3 + $0x38] sm:$0xff]
        %v646 = vld [vmem:[%s3 + $0x40] sm:$0xff]
        %v647 = vld [vmem:[%s3 + $0x48] sm:$0xff]
        %v648 = vld [vmem:[%s3 + $0x50] sm:$0xff]
        %v649 = vld [vmem:[%s3 + $0x58] sm:$0xff]
        %v650 = vld [vmem:[%s3 + $0x60] sm:$0xff]
        %v651 = vld [vmem:[%s3 + $0x68] sm:$0xff]
        %v652 = vld [vmem:[%s3 + $0x70] sm:$0xff]
        %v653 = vld [vmem:[%s3 + $0x78] sm:$0xff]
        %654 = vmatprep.subr.mxu0 0.0
        %655 = vmatpush1.msra.mxu0 %v638
        %656 = vmatprep.subr.mxu0 0.0
        %657 = vmatpush1.msra.mxu0 %v639
        %658 = vmatprep.subr.mxu0 0.0
        %659 = vmatpush1.msra.mxu0 %v640
        %660 = vmatprep.subr.mxu0 0.0
        %661 = vmatpush1.msra.mxu0 %v641
        %662 = vmatprep.subr.mxu0 0.0
        %663 = vmatpush1.msra.mxu0 %v642
        %664 = vmatprep.subr.mxu0 0.0
        %665 = vmatpush1.msra.mxu0 %v643
        %666 = vmatprep.subr.mxu0 0.0
        %667 = vmatpush1.msra.mxu0 %v644
        %668 = vmatprep.subr.mxu0 0.0
        %669 = vmatpush1.msra.mxu0 %v645
        %670 = vmatprep.subr.mxu0 0.0
        %671 = vmatpush1.msra.mxu0 %v646
        %672 = vmatprep.subr.mxu0 0.0
        %673 = vmatpush1.msra.mxu0 %v647
        %674 = vmatprep.subr.mxu0 0.0
        %675 = vmatpush1.msra.mxu0 %v648
        %676 = vmatprep.subr.mxu0 0.0
        %677 = vmatpush1.msra.mxu0 %v649
        %678 = vmatprep.subr.mxu0 0.0
        %679 = vmatpush1.msra.mxu0 %v650
        %680 = vmatprep.subr.mxu0 0.0
        %681 = vmatpush1.msra.mxu0 %v651
        %682 = vmatprep.subr.mxu0 0.0
        %683 = vmatpush1.msra.mxu0 %v652
        %684 = vmatprep.subr.mxu0 0.0
        %685 = vmatpush1.msra.mxu0 %v653
        %686 = vmatprep.subr.mxu0 0.0
        %687 = vmatpush1.msra.mxu0 0.0
        %688 = vmatprep.subr.mxu0 0.0
        %689 = vmatpush1.msra.mxu0 0.0
        %690 = vmatprep.subr.mxu0 0.0
        %691 = vmatpush1.msra.mxu0 0.0
        %692 = vmatprep.subr.mxu0 0.0
        %693 = vmatpush1.msra.mxu0 0.0
        %694 = vmatprep.subr.mxu0 0.0
        %695 = vmatpush1.msra.mxu0 0.0
        %696 = vmatprep.subr.mxu0 0.0
        %697 = vmatpush1.msra.mxu0 0.0
        %698 = vmatprep.subr.mxu0 0.0
        %699 = vmatpush1.msra.mxu0 0.0
        %700 = vmatprep.subr.mxu0 0.0
        %701 = vmatpush1.msra.mxu0 0.0
        %702 = vmatprep.subr.mxu0 0.0
        %703 = vmatpush1.msra.mxu0 0.0
        %704 = vmatprep.subr.mxu0 0.0
        %705 = vmatpush1.msra.mxu0 0.0
        %706 = vmatprep.subr.mxu0 0.0
        %707 = vmatpush1.msra.mxu0 0.0
        %708 = vmatprep.subr.mxu0 0.0
        %709 = vmatpush1.msra.mxu0 0.0
        %710 = vmatprep.subr.mxu0 0.0
        %711 = vmatpush1.msra.mxu0 0.0
        %712 = vmatprep.subr.mxu0 0.0
        %713 = vmatpush1.msra.mxu0 0.0
        %714 = vmatprep.subr.mxu0 0.0
        %715 = vmatpush1.msra.mxu0 0.0
        %716 = vmatprep.subr.mxu0 0.0
        %717 = vmatpush1.msra.mxu0 0.0
        %718 = vmatprep.mubr.f32.mxu0 0.0
        %719 = vmatmul.mubr.f32.gmra.mrb[0].mxu0 %v635
        %v720 = vpop.f32.mrb[0].mxu0
        %v721 = vadd.f32 0.0, %v720
        %v722 = vpop.f32.mrb[0].mxu0
        %723 = vdwg.mxu0
        %v724 = vadd.f32 %v340, %v721
        %v725 = vtanh.pop %v724
        %s726 = scalar_lea.vmem %s225, 24
        %727 = vst [vmem:[%s726] sm:$0xff] %v725
        %v728 = vld [vmem:[%s3] sm:$0xff]
        %v729 = vld [vmem:[%s3 + $0x8] sm:$0xff]
        %v730 = vld [vmem:[%s3 + $0x10] sm:$0xff]
        %v731 = vld [vmem:[%s3 + $0x18] sm:$0xff]
        %v732 = vld [vmem:[%s3 + $0x20] sm:$0xff]
        %v733 = vld [vmem:[%s3 + $0x28] sm:$0xff]
        %v734 = vld [vmem:[%s3 + $0x30] sm:$0xff]
        %v735 = vld [vmem:[%s3 + $0x38] sm:$0xff]
        %v736 = vld [vmem:[%s3 + $0x40] sm:$0xff]
        %v737 = vld [vmem:[%s3 + $0x48] sm:$0xff]
        %v738 = vld [vmem:[%s3 + $0x50] sm:$0xff]
        %v739 = vld [vmem:[%s3 + $0x58] sm:$0xff]
        %v740 = vld [vmem:[%s3 + $0x60] sm:$0xff]
        %v741 = vld [vmem:[%s3 + $0x68] sm:$0xff]
        %v742 = vld [vmem:[%s3 + $0x70] sm:$0xff]
        %v743 = vld [vmem:[%s3 + $0x78] sm:$0xff]
        %744 = vmatprep.subr.mxu0 0.0
        %745 = vmatpush1.msra.mxu0 %v728
        %746 = vmatprep.subr.mxu0 0.0
        %747 = vmatpush1.msra.mxu0 %v729
        %748 = vmatprep.subr.mxu0 0.0
        %749 = vmatpush1.msra.mxu0 %v730
        %750 = vmatprep.subr.mxu0 0.0
        %751 = vmatpush1.msra.mxu0 %v731
        %752 = vmatprep.subr.mxu0 0.0
        %753 = vmatpush1.msra.mxu0 %v732
        %754 = vmatprep.subr.mxu0 0.0
        %755 = vmatpush1.msra.mxu0 %v733
        %756 = vmatprep.subr.mxu0 0.0
        %757 = vmatpush1.msra.mxu0 %v734
        %758 = vmatprep.subr.mxu0 0.0
        %759 = vmatpush1.msra.mxu0 %v735
        %760 = vmatprep.subr.mxu0 0.0
        %761 = vmatpush1.msra.mxu0 %v736
        %762 = vmatprep.subr.mxu0 0.0
        %763 = vmatpush1.msra.mxu0 %v737
        %764 = vmatprep.subr.mxu0 0.0
        %765 = vmatpush1.msra.mxu0 %v738
        %766 = vmatprep.subr.mxu0 0.0
        %767 = vmatpush1.msra.mxu0 %v739
        %768 = vmatprep.subr.mxu0 0.0
        %769 = vmatpush1.msra.mxu0 %v740
        %770 = vmatprep.subr.mxu0 0.0
        %771 = vmatpush1.msra.mxu0 %v741
        %772 = vmatprep.subr.mxu0 0.0
        %773 = vmatpush1.msra.mxu0 %v742
        %774 = vmatprep.subr.mxu0 0.0
        %775 = vmatpush1.msra.mxu0 %v743
        %776 = vmatprep.subr.mxu0 0.0
        %777 = vmatpush1.msra.mxu0 0.0
        %778 = vmatprep.subr.mxu0 0.0
        %779 = vmatpush1.msra.mxu0 0.0
        %780 = vmatprep.subr.mxu0 0.0
        %781 = vmatpush1.msra.mxu0 0.0
        %782 = vmatprep.subr.mxu0 0.0
        %783 = vmatpush1.msra.mxu0 0.0
        %784 = vmatprep.subr.mxu0 0.0
        %785 = vmatpush1.msra.mxu0 0.0
        %786 = vmatprep.subr.mxu0 0.0
        %787 = vmatpush1.msra.mxu0 0.0
        %788 = vmatprep.subr.mxu0 0.0
        %789 = vmatpush1.msra.mxu0 0.0
        %790 = vmatprep.subr.mxu0 0.0
        %791 = vmatpush1.msra.mxu0 0.0
        %792 = vmatprep.subr.mxu0 0.0
        %793 = vmatpush1.msra.mxu0 0.0
        %794 = vmatprep.subr.mxu0 0.0
        %795 = vmatpush1.msra.mxu0 0.0
        %796 = vmatprep.subr.mxu0 0.0
        %797 = vmatpush1.msra.mxu0 0.0
        %798 = vmatprep.subr.mxu0 0.0
        %799 = vmatpush1.msra.mxu0 0.0
        %800 = vmatprep.subr.mxu0 0.0
        %801 = vmatpush1.msra.mxu0 0.0
        %802 = vmatprep.subr.mxu0 0.0
        %803 = vmatpush1.msra.mxu0 0.0
        %804 = vmatprep.subr.mxu0 0.0
        %805 = vmatpush1.msra.mxu0 0.0
        %806 = vmatprep.subr.mxu0 0.0
        %807 = vmatpush1.msra.mxu0 0.0
        %808 = vmatprep.mubr.f32.mxu0 0.0
        %809 = vmatmul.mubr.f32.gmra.mrb[0].mxu0 %v725
        %v810 = vpop.f32.mrb[0].mxu0
        %v811 = vadd.f32 0.0, %v810
        %v812 = vpop.f32.mrb[0].mxu0
        %813 = vdwg.mxu0
        %v814 = vadd.f32 %v345, %v811
        %v815 = vtanh.pop %v814
        %s816 = scalar_lea.vmem %s225, 32
        %817 = vst [vmem:[%s816] sm:$0xff] %v815
        %v818 = vld [vmem:[%s3] sm:$0xff]
        %v819 = vld [vmem:[%s3 + $0x8] sm:$0xff]
        %v820 = vld [vmem:[%s3 + $0x10] sm:$0xff]
        %v821 = vld [vmem:[%s3 + $0x18] sm:$0xff]
        %v822 = vld [vmem:[%s3 + $0x20] sm:$0xff]
        %v823 = vld [vmem:[%s3 + $0x28] sm:$0xff]
        %v824 = vld [vmem:[%s3 + $0x30] sm:$0xff]
        %v825 = vld [vmem:[%s3 + $0x38] sm:$0xff]
        %v826 = vld [vmem:[%s3 + $0x40] sm:$0xff]
        %v827 = vld [vmem:[%s3 + $0x48] sm:$0xff]
        %v828 = vld [vmem:[%s3 + $0x50] sm:$0xff]
        %v829 = vld [vmem:[%s3 + $0x58] sm:$0xff]
        %v830 = vld [vmem:[%s3 + $0x60] sm:$0xff]
        %v831 = vld [vmem:[%s3 + $0x68] sm:$0xff]
        %v832 = vld [vmem:[%s3 + $0x70] sm:$0xff]
        %v833 = vld [vmem:[%s3 + $0x78] sm:$0xff]
        %834 = vmatprep.subr.mxu0 0.0
        %835 = vmatpush1.msra.mxu0 %v818
        %836 = vmatprep.subr.mxu0 0.0
        %837 = vmatpush1.msra.mxu0 %v819
        %838 = vmatprep.subr.mxu0 0.0
        %839 = vmatpush1.msra.mxu0 %v820
        %840 = vmatprep.subr.mxu0 0.0
        %841 = vmatpush1.msra.mxu0 %v821
        %842 = vmatprep.subr.mxu0 0.0
        %843 = vmatpush1.msra.mxu0 %v822
        %844 = vmatprep.subr.mxu0 0.0
        %845 = vmatpush1.msra.mxu0 %v823
        %846 = vmatprep.subr.mxu0 0.0
        %847 = vmatpush1.msra.mxu0 %v824
        %848 = vmatprep.subr.mxu0 0.0
        %849 = vmatpush1.msra.mxu0 %v825
        %850 = vmatprep.subr.mxu0 0.0
        %851 = vmatpush1.msra.mxu0 %v826
        %852 = vmatprep.subr.mxu0 0.0
        %853 = vmatpush1.msra.mxu0 %v827
        %854 = vmatprep.subr.mxu0 0.0
        %855 = vmatpush1.msra.mxu0 %v828
        %856 = vmatprep.subr.mxu0 0.0
        %857 = vmatpush1.msra.mxu0 %v829
        %858 = vmatprep.subr.mxu0 0.0
        %859 = vmatpush1.msra.mxu0 %v830
        %860 = vmatprep.subr.mxu0 0.0
        %861 = vmatpush1.msra.mxu0 %v831
        %862 = vmatprep.subr.mxu0 0.0
        %863 = vmatpush1.msra.mxu0 %v832
        %864 = vmatprep.subr.mxu0 0.0
        %865 = vmatpush1.msra.mxu0 %v833
        %866 = vmatprep.subr.mxu0 0.0
        %867 = vmatpush1.msra.mxu0 0.0
        %868 = vmatprep.subr.mxu0 0.0
        %869 = vmatpush1.msra.mxu0 0.0
        %870 = vmatprep.subr.mxu0 0.0
        %871 = vmatpush1.msra.mxu0 0.0
        %872 = vmatprep.subr.mxu0 0.0
        %873 = vmatpush1.msra.mxu0 0.0
        %874 = vmatprep.subr.mxu0 0.0
        %875 = vmatpush1.msra.mxu0 0.0
        %876 = vmatprep.subr.mxu0 0.0
        %877 = vmatpush1.msra.mxu0 0.0
        %878 = vmatprep.subr.mxu0 0.0
        %879 = vmatpush1.msra.mxu0 0.0
        %880 = vmatprep.subr.mxu0 0.0
        %881 = vmatpush1.msra.mxu0 0.0
        %882 = vmatprep.subr.mxu0 0.0
        %883 = vmatpush1.msra.mxu0 0.0
        %884 = vmatprep.subr.mxu0 0.0
        %885 = vmatpush1.msra.mxu0 0.0
        %886 = vmatprep.subr.mxu0 0.0
        %887 = vmatpush1.msra.mxu0 0.0
        %888 = vmatprep.subr.mxu0 0.0
        %889 = vmatpush1.msra.mxu0 0.0
        %890 = vmatprep.subr.mxu0 0.0
        %891 = vmatpush1.msra.mxu0 0.0
        %892 = vmatprep.subr.mxu0 0.0
        %893 = vmatpush1.msra.mxu0 0.0
        %894 = vmatprep.subr.mxu0 0.0
        %895 = vmatpush1.msra.mxu0 0.0
        %896 = vmatprep.subr.mxu0 0.0
        %897 = vmatpush1.msra.mxu0 0.0
        %898 = vmatprep.mubr.f32.mxu0 0.0
        %899 = vmatmul.mubr.f32.gmra.mrb[0].mxu0 %v815
        %v900 = vpop.f32.mrb[0].mxu0
        %v901 = vadd.f32 0.0, %v900
        %v902 = vpop.f32.mrb[0].mxu0
        %903 = vdwg.mxu0
        %v904 = vadd.f32 %v350, %v901
        %v905 = vtanh.pop %v904
        %s906 = scalar_lea.vmem %s225, 40
        %907 = vst [vmem:[%s906] sm:$0xff] %v905
        %v908 = vld [vmem:[%s3] sm:$0xff]
        %v909 = vld [vmem:[%s3 + $0x8] sm:$0xff]
        %v910 = vld [vmem:[%s3 + $0x10] sm:$0xff]
        %v911 = vld [vmem:[%s3 + $0x18] sm:$0xff]
        %v912 = vld [vmem:[%s3 + $0x20] sm:$0xff]
        %v913 = vld [vmem:[%s3 + $0x28] sm:$0xff]
        %v914 = vld [vmem:[%s3 + $0x30] sm:$0xff]
        %v915 = vld [vmem:[%s3 + $0x38] sm:$0xff]
        %v916 = vld [vmem:[%s3 + $0x40] sm:$0xff]
        %v917 = vld [vmem:[%s3 + $0x48] sm:$0xff]
        %v918 = vld [vmem:[%s3 + $0x50] sm:$0xff]
        %v919 = vld [vmem:[%s3 + $0x58] sm:$0xff]
        %v920 = vld [vmem:[%s3 + $0x60] sm:$0xff]
        %v921 = vld [vmem:[%s3 + $0x68] sm:$0xff]
        %v922 = vld [vmem:[%s3 + $0x70] sm:$0xff]
        %v923 = vld [vmem:[%s3 + $0x78] sm:$0xff]
        %924 = vmatprep.subr.mxu0 0.0
        %925 = vmatpush1.msra.mxu0 %v908
        %926 = vmatprep.subr.mxu0 0.0
        %927 = vmatpush1.msra.mxu0 %v909
        %928 = vmatprep.subr.mxu0 0.0
        %929 = vmatpush1.msra.mxu0 %v910
        %930 = vmatprep.subr.mxu0 0.0
        %931 = vmatpush1.msra.mxu0 %v911
        %932 = vmatprep.subr.mxu0 0.0
        %933 = vmatpush1.msra.mxu0 %v912
        %934 = vmatprep.subr.mxu0 0.0
        %935 = vmatpush1.msra.mxu0 %v913
        %936 = vmatprep.subr.mxu0 0.0
        %937 = vmatpush1.msra.mxu0 %v914
        %938 = vmatprep.subr.mxu0 0.0
        %939 = vmatpush1.msra.mxu0 %v915
        %940 = vmatprep.subr.mxu0 0.0
        %941 = vmatpush1.msra.mxu0 %v916
        %942 = vmatprep.subr.mxu0 0.0
        %943 = vmatpush1.msra.mxu0 %v917
        %944 = vmatprep.subr.mxu0 0.0
        %945 = vmatpush1.msra.mxu0 %v918
        %946 = vmatprep.subr.mxu0 0.0
        %947 = vmatpush1.msra.mxu0 %v919
        %948 = vmatprep.subr.mxu0 0.0
        %949 = vmatpush1.msra.mxu0 %v920
        %950 = vmatprep.subr.mxu0 0.0
        %951 = vmatpush1.msra.mxu0 %v921
        %952 = vmatprep.subr.mxu0 0.0
        %953 = vmatpush1.msra.mxu0 %v922
        %954 = vmatprep.subr.mxu0 0.0
        %955 = vmatpush1.msra.mxu0 %v923
        %956 = vmatprep.subr.mxu0 0.0
        %957 = vmatpush1.msra.mxu0 0.0
        %958 = vmatprep.subr.mxu0 0.0
        %959 = vmatpush1.msra.mxu0 0.0
        %960 = vmatprep.subr.mxu0 0.0
        %961 = vmatpush1.msra.mxu0 0.0
        %962 = vmatprep.subr.mxu0 0.0
        %963 = vmatpush1.msra.mxu0 0.0
        %964 = vmatprep.subr.mxu0 0.0
        %965 = vmatpush1.msra.mxu0 0.0
        %966 = vmatprep.subr.mxu0 0.0
        %967 = vmatpush1.msra.mxu0 0.0
        %968 = vmatprep.subr.mxu0 0.0
        %969 = vmatpush1.msra.mxu0 0.0
        %970 = vmatprep.subr.mxu0 0.0
        %971 = vmatpush1.msra.mxu0 0.0
        %972 = vmatprep.subr.mxu0 0.0
        %973 = vmatpush1.msra.mxu0 0.0
        %974 = vmatprep.subr.mxu0 0.0
        %975 = vmatpush1.msra.mxu0 0.0
        %976 = vmatprep.subr.mxu0 0.0
        %977 = vmatpush1.msra.mxu0 0.0
        %978 = vmatprep.subr.mxu0 0.0
        %979 = vmatpush1.msra.mxu0 0.0
        %980 = vmatprep.subr.mxu0 0.0
        %981 = vmatpush1.msra.mxu0 0.0
        %982 = vmatprep.subr.mxu0 0.0
        %983 = vmatpush1.msra.mxu0 0.0
        %984 = vmatprep.subr.mxu0 0.0
        %985 = vmatpush1.msra.mxu0 0.0
        %986 = vmatprep.subr.mxu0 0.0
        %987 = vmatpush1.msra.mxu0 0.0
        %988 = vmatprep.mubr.f32.mxu0 0.0
        %989 = vmatmul.mubr.f32.gmra.mrb[0].mxu0 %v905
        %v990 = vpop.f32.mrb[0].mxu0
        %v991 = vadd.f32 0.0, %v990
        %v992 = vpop.f32.mrb[0].mxu0
        %993 = vdwg.mxu0
        %v994 = vadd.f32 %v355, %v991
        %v995 = vtanh.pop %v994
        %s996 = scalar_lea.vmem %s225, 48
        %997 = vst [vmem:[%s996] sm:$0xff] %v995
        %v998 = vld [vmem:[%s3] sm:$0xff]
        %v999 = vld [vmem:[%s3 + $0x8] sm:$0xff]
        %v1000 = vld [vmem:[%s3 + $0x10] sm:$0xff]
        %v1001 = vld [vmem:[%s3 + $0x18] sm:$0xff]
        %v1002 = vld [vmem:[%s3 + $0x20] sm:$0xff]
        %v1003 = vld [vmem:[%s3 + $0x28] sm:$0xff]
        %v1004 = vld [vmem:[%s3 + $0x30] sm:$0xff]
        %v1005 = vld [vmem:[%s3 + $0x38] sm:$0xff]
        %v1006 = vld [vmem:[%s3 + $0x40] sm:$0xff]
        %v1007 = vld [vmem:[%s3 + $0x48] sm:$0xff]
        %v1008 = vld [vmem:[%s3 + $0x50] sm:$0xff]
        %v1009 = vld [vmem:[%s3 + $0x58] sm:$0xff]
        %v1010 = vld [vmem:[%s3 + $0x60] sm:$0xff]
        %v1011 = vld [vmem:[%s3 + $0x68] sm:$0xff]
        %v1012 = vld [vmem:[%s3 + $0x70] sm:$0xff]
        %v1013 = vld [vmem:[%s3 + $0x78] sm:$0xff]
        %1014 = vmatprep.subr.mxu0 0.0
        %1015 = vmatpush1.msra.mxu0 %v998
        %1016 = vmatprep.subr.mxu0 0.0
        %1017 = vmatpush1.msra.mxu0 %v999
        %1018 = vmatprep.subr.mxu0 0.0
        %1019 = vmatpush1.msra.mxu0 %v1000
        %1020 = vmatprep.subr.mxu0 0.0
        %1021 = vmatpush1.msra.mxu0 %v1001
        %1022 = vmatprep.subr.mxu0 0.0
        %1023 = vmatpush1.msra.mxu0 %v1002
        %1024 = vmatprep.subr.mxu0 0.0
        %1025 = vmatpush1.msra.mxu0 %v1003
        %1026 = vmatprep.subr.mxu0 0.0
        %1027 = vmatpush1.msra.mxu0 %v1004
        %1028 = vmatprep.subr.mxu0 0.0
        %1029 = vmatpush1.msra.mxu0 %v1005
        %1030 = vmatprep.subr.mxu0 0.0
        %1031 = vmatpush1.msra.mxu0 %v1006
        %1032 = vmatprep.subr.mxu0 0.0
        %1033 = vmatpush1.msra.mxu0 %v1007
        %1034 = vmatprep.subr.mxu0 0.0
        %1035 = vmatpush1.msra.mxu0 %v1008
        %1036 = vmatprep.subr.mxu0 0.0
        %1037 = vmatpush1.msra.mxu0 %v1009
        %1038 = vmatprep.subr.mxu0 0.0
        %1039 = vmatpush1.msra.mxu0 %v1010
        %1040 = vmatprep.subr.mxu0 0.0
        %1041 = vmatpush1.msra.mxu0 %v1011
        %1042 = vmatprep.subr.mxu0 0.0
        %1043 = vmatpush1.msra.mxu0 %v1012
        %1044 = vmatprep.subr.mxu0 0.0
        %1045 = vmatpush1.msra.mxu0 %v1013
        %1046 = vmatprep.subr.mxu0 0.0
        %1047 = vmatpush1.msra.mxu0 0.0
        %1048 = vmatprep.subr.mxu0 0.0
        %1049 = vmatpush1.msra.mxu0 0.0
        %1050 = vmatprep.subr.mxu0 0.0
        %1051 = vmatpush1.msra.mxu0 0.0
        %1052 = vmatprep.subr.mxu0 0.0
        %1053 = vmatpush1.msra.mxu0 0.0
        %1054 = vmatprep.subr.mxu0 0.0
        %1055 = vmatpush1.msra.mxu0 0.0
        %1056 = vmatprep.subr.mxu0 0.0
        %1057 = vmatpush1.msra.mxu0 0.0
        %1058 = vmatprep.subr.mxu0 0.0
        %1059 = vmatpush1.msra.mxu0 0.0
        %1060 = vmatprep.subr.mxu0 0.0
        %1061 = vmatpush1.msra.mxu0 0.0
        %1062 = vmatprep.subr.mxu0 0.0
        %1063 = vmatpush1.msra.mxu0 0.0
        %1064 = vmatprep.subr.mxu0 0.0
        %1065 = vmatpush1.msra.mxu0 0.0
        %1066 = vmatprep.subr.mxu0 0.0
        %1067 = vmatpush1.msra.mxu0 0.0
        %1068 = vmatprep.subr.mxu0 0.0
        %1069 = vmatpush1.msra.mxu0 0.0
        %1070 = vmatprep.subr.mxu0 0.0
        %1071 = vmatpush1.msra.mxu0 0.0
        %1072 = vmatprep.subr.mxu0 0.0
        %1073 = vmatpush1.msra.mxu0 0.0
        %1074 = vmatprep.subr.mxu0 0.0
        %1075 = vmatpush1.msra.mxu0 0.0
        %1076 = vmatprep.subr.mxu0 0.0
        %1077 = vmatpush1.msra.mxu0 0.0
        %1078 = vmatprep.mubr.f32.mxu0 0.0
        %1079 = vmatmul.mubr.f32.gmra.mrb[0].mxu0 %v995
        %v1080 = vpop.f32.mrb[0].mxu0
        %v1081 = vadd.f32 0.0, %v1080
        %v1082 = vpop.f32.mrb[0].mxu0
        %1083 = vdwg.mxu0
        %v1084 = vadd.f32 %v360, %v1081
        %v1085 = vtanh.pop %v1084
        %s1086 = scalar_lea.vmem %s225, 56
        %1087 = vst [vmem:[%s1086] sm:$0xff] %v1085
        %1088 = vst [vmem:[#allocation2] sm:$0xff] %v1085
        %p1089 = scmp.eq.s32.totalorder %s18, 1
        // Predicated region
        $region41: #{forward_packed_data.2} parent=35 // pred_check
          %p1090 = pneg %p1089
        $region42: #{forward_packed_data.2} parent=35 // pred_check_branch
          %1092 = sbr.rel (%p1090) target = $region44
        $region43: #{forward_packed_data.2} parent=35 // pred_region
          %1093 = vst [vmem:[#allocation3] sm:$0xff] %v1085
        $region44: #{forward_packed_data.2} parent=35 // pred_fallthru
          _
        %s1094 = smul.u32 8, %s18
        %p1095 = scmp.lt.s32.totalorder %s1094, 15
        %s1096 = scalar_select %p1095, %s1094, 15
        %s1097 = smul.addr %s1096, 8
        %s1098 = scalar_lea.vmem %s4, %s1097
        // Predicated region
        $region45: #{forward_packed_data.2} parent=35 // pred_check
          %p1099 = pneg %p125
        $region46: #{forward_packed_data.2} parent=35 // pred_check_branch
          %1101 = sbr.rel (%p1099) target = $region48
        $region47: #{forward_packed_data.2} parent=35 // pred_region
          %s1102 = smul.u32 8, %s18
        $region48: #{forward_packed_data.2} parent=35 // pred_fallthru
          _
        // Predicated region
        $region49: #{forward_packed_data.2} parent=35 // pred_check
          %p1103 = pneg %p146
        $region50: #{forward_packed_data.2} parent=35 // pred_check_branch
          %1105 = sbr.rel (%p1103) target = $region52
        $region51: #{forward_packed_data.2} parent=35 // pred_region
          %s1107 = ssub.s32 128, 128
          %1108 = vsyncadd [#allocation4], %s1107
          %s1110 = sshll.u32 [#allocation3], 4
          %s1111 = int_to_ptr.vmem [resolvable:$true] %s1110
          %1113 = dma.vmem_to_hbm [thread:$0]  %s1111, 128, %s5, [#allocation4]
        $region52: #{forward_packed_data.2} parent=35 // pred_fallthru
          _
        // Predicated region
        $region53: #{forward_packed_data.2} parent=35 // pred_check
          %p1114 = pneg %p146
        $region54: #{forward_packed_data.2} parent=35 // pred_check_branch
          %1116 = sbr.rel (%p1114) target = $region56
        $region55: #{forward_packed_data.2} parent=35 // pred_region
          %1117 = dma.done [#allocation4], 128
        $region56: #{forward_packed_data.2} parent=35 // pred_fallthru
          _
      $region36: #{forward_packed_data.2} parent=5 // pred_fallthru
        _
      %p1118 = scmp.le.s32.totalorder 2, %s13
      // Predicated region
      $region57: #{forward_packed_data.2} parent=5 // pred_check
        %p1119 = pneg %p1118
      $region58: #{forward_packed_data.2} parent=5 // pred_check_branch
        %1121 = sbr.rel (%p1119) target = $region60
      $region59: #{forward_packed_data.2} parent=5 // pred_region
        %s1122 = ssub.s32 %s13, 2
        // Predicated region
        $region61: #{forward_packed_data.2} parent=59 // pred_check
          %p1123 = pneg %p131
        $region62: #{forward_packed_data.2} parent=59 // pred_check_branch
          %1125 = sbr.rel (%p1123) target = $region64
        $region63: #{forward_packed_data.2} parent=59 // pred_region
          %s1126 = smul.u32 8, %s19
          %p1127 = scmp.lt.s32.totalorder %s1126, 15
          %s1128 = scalar_select %p1127, %s1126, 15
          %s1129 = smul.addr %s1128, 8
          %s1130 = scalar_lea.vmem %s4, %s1129
        $region64: #{forward_packed_data.2} parent=59 // pred_fallthru
          _
      $region60: #{forward_packed_data.2} parent=5 // pred_fallthru
        _
    $region6: #{forward_packed_data.2} parent=1 // loop_footer
      %s17 = sadd.s32 1, %s13
    $region7: #{forward_packed_data.2} parent=1 // loop_footer_branch
      %12 = sbr.rel target = $region3
    $region8: #{forward_packed_data.2} parent=1 // loop_exit
      _
    %1131 = vsyncpa [#allocation4], 1
    %s1132 = scalar_lea.sflag [#allocation4], 1
    %1133 = vsyncpa %s1132, 1

// kernel: forward_packed_data.3
$region0: #{forward_packed_data.3}
  #allocation0 [shape = 'u32[]', space=smem, size = 0x4, offset = 0x4, fixed_abs, tag = 'smem constant byte address 0x4 - core index']
  #allocation1 [shape = 'u32[144,128]{1,0:T(1,128)}', space=vmem, size = 0x12000, scoped, tag = 'internal scratch']
  #allocation2 [shape = 'f32[128,1]{1,0:T(8,128)}', space=vmem, size = 0x10000, scoped, tag = 'scratch operand']
  #allocation3 [shape = 'f32[128,1]{1,0:T(8,128)}', space=vmem, size = 0x10000, scoped, tag = 'scratch operand']
  #allocation4 [shape = 'f32[128,1]{1,0:T(8,128)}', space=vmem, size = 0x10000, scoped, tag = 'scratch operand']
  %s0 = inlined_call_operand.vmem [shape: f32[128,128], index: 0, kind: input, shape index: {}]
  %s1 = inlined_call_operand.vmem [shape: s32[128,1], index: 1, kind: input, shape index: {}]
  %s2 = inlined_call_operand.vmem [shape: f32[128,1024], index: 2, kind: input, shape index: {}]
  %s3 = inlined_call_operand.vmem [shape: f32[1,1024], index: 3, kind: input, shape index: {}]
  %s4 = inlined_call_operand.hbm [shape: f32[128,1024], index: 4, kind: output, shape index: {0}]
  %s5 = inlined_call_operand.vmem [shape: f32[128,1], index: 5, kind: output, shape index: {1}]
  %6 = xla_tuple %s4, %s5
  %s7 = sld [smem:[#allocation0]]
  $region88: #{forward_packed_data.3} parent=0
    _
  %s9 = ssub.s32 1, %s7
  %s10 = scalar_select 0, %s9, %s7
  $region1: #{forward_packed_data.3} parent=0
    #allocation5 [shape = 'u8[524288]{0}', space=vmem, size = 0x80000, scoped, tag = 'input window, operand 2']
    #allocation6 [shape = 'u8[524288]{0}', space=vmem, size = 0x80000, scoped, tag = 'output window, operand 0']
    #allocation7 [shape = 's32[2]{0}', space=sflag, size = 0x8, scoped, tag = 'scoped memory for forward_packed_data.3']
    %11 = vsyncpa [#allocation7], 0
    %s12 = scalar_lea.sflag [#allocation7], 1
    %13 = vsyncpa %s12, 0
    loop: start=0, step=1, limit=4
    $region2: #{forward_packed_data.3} parent=1 // loop_pre_header
      _
    $region3: #{forward_packed_data.3} parent=1 // loop_header
      %s15 = sphi 0, %s19
      %p16 = scmp.ge.s32.totalorder %s15, 4
      %s22 = sphi 0, %s34
      %s23 = sphi 0, %s30
      %s24 = sphi 0, %s22
      %s25 = sphi 0, %s23
      %s26 = sphi 0, %s24
      %s27 = sphi 0, %s25
      %s37 = sphi 0, %s39
      %s40 = sphi 0, %s37
      %s41 = sphi 0, %s40
      %s57 = sphi 0, %s41
      %s63 = sphi 0, %s65
      %s66 = sphi 0, %s63
      %s67 = sphi 0, %s66
      %s83 = sphi 0, %s67
      %s89 = sphi 0, %s91
      %s92 = sphi 0, %s89
      %s93 = sphi 0, %s92
      %s109 = sphi 0, %s93
      %s115 = sphi 0, %s117
      %s118 = sphi 0, %s115
      %s119 = sphi 0, %s118
      %s135 = sphi 0, %s119
      %s143 = sphi 0, %s145
      %s146 = sphi 0, %s143
      %s147 = sphi 0, %s146
      %s163 = sphi 0, %s147
      %s169 = sphi 0, %s171
      %s172 = sphi 0, %s169
      %s173 = sphi 0, %s172
      %s189 = sphi 0, %s173
    $region4: #{forward_packed_data.3} parent=1 // loop_header_branch
      %18 = sbr.rel (%p16) target = $region8
    $region5: #{forward_packed_data.3} parent=1 // loop_body
      %s20 = ssub.s32 %s15, 1
      %s21 = ssub.s32 %s15, 2
      %s28 = sadd.s32 1, %s23
      %p29 = scmp.ge.s32.totalorder %s28, 2
      %s30 = scalar_select %p29, 0, %s28
      %s31 = sadd.s32 1, %s22
      %s32 = scalar_select %p29, %s31, %s22
      %p33 = scmp.ge.s32.totalorder %s32, 1
      %s34 = scalar_select %p33, 0, %s32
      %s35 = ssub.s32 %s22, %s34
      %p36 = scmp.eq.s32.totalorder %s35, 0
      %s38 = sadd.s32 %s37, 1
      %s39 = scalar_select %p36, %s37, %s38
      %p42 = pneg %p36
      %p43 = scmp.eq.s32.totalorder %s15, 1
      %p44 = por %p42, %p43
      %p45 = scmp.ne.s32.totalorder %s37, %s40
      %p46 = scmp.eq.s32.totalorder %s15, 0
      %p47 = por %p45, %p46
      %p48 = scmp.ne.s32.totalorder %s37, %s40
      %p49 = scmp.eq.s32.totalorder %s20, 1
      %p50 = por %p48, %p49
      %p51 = scmp.ne.s32.totalorder %s40, %s41
      %p52 = scmp.eq.s32.totalorder %s20, 0
      %p53 = por %p51, %p52
      %p54 = scmp.ne.s32.totalorder %s40, %s41
      %p55 = scmp.eq.s32.totalorder %s21, 1
      %p56 = por %p54, %p55
      %p58 = scmp.ne.s32.totalorder %s41, %s57
      %p59 = scmp.eq.s32.totalorder %s21, 0
      %p60 = por %p58, %p59
      %s61 = ssub.s32 %s22, %s34
      %p62 = scmp.eq.s32.totalorder %s61, 0
      %s64 = sadd.s32 %s63, 1
      %s65 = scalar_select %p62, %s63, %s64
      %p68 = pneg %p62
      %p69 = scmp.eq.s32.totalorder %s15, 1
      %p70 = por %p68, %p69
      %p71 = scmp.ne.s32.totalorder %s63, %s66
      %p72 = scmp.eq.s32.totalorder %s15, 0
      %p73 = por %p71, %p72
      %p74 = scmp.ne.s32.totalorder %s63, %s66
      %p75 = scmp.eq.s32.totalorder %s20, 1
      %p76 = por %p74, %p75
      %p77 = scmp.ne.s32.totalorder %s66, %s67
      %p78 = scmp.eq.s32.totalorder %s20, 0
      %p79 = por %p77, %p78
      %p80 = scmp.ne.s32.totalorder %s66, %s67
      %p81 = scmp.eq.s32.totalorder %s21, 1
      %p82 = por %p80, %p81
      %p84 = scmp.ne.s32.totalorder %s67, %s83
      %p85 = scmp.eq.s32.totalorder %s21, 0
      %p86 = por %p84, %p85
      %s87 = ssub.s32 %s23, %s30
      %p88 = scmp.eq.s32.totalorder %s87, 0
      %s90 = sadd.s32 %s89, 1
      %s91 = scalar_select %p88, %s89, %s90
      %p94 = pneg %p88
      %p95 = scmp.eq.s32.totalorder %s15, 1
      %p96 = por %p94, %p95
      %p97 = scmp.ne.s32.totalorder %s89, %s92
      %p98 = scmp.eq.s32.totalorder %s15, 0
      %p99 = por %p97, %p98
      %p100 = scmp.ne.s32.totalorder %s89, %s92
      %p101 = scmp.eq.s32.totalorder %s20, 1
      %p102 = por %p100, %p101
      %p103 = scmp.ne.s32.totalorder %s92, %s93
      %p104 = scmp.eq.s32.totalorder %s20, 0
      %p105 = por %p103, %p104
      %p106 = scmp.ne.s32.totalorder %s92, %s93
      %p107 = scmp.eq.s32.totalorder %s21, 1
      %p108 = por %p106, %p107
      %p110 = scmp.ne.s32.totalorder %s93, %s109
      %p111 = scmp.eq.s32.totalorder %s21, 0
      %p112 = por %p110, %p111
      %s113 = ssub.s32 %s23, %s30
      %p114 = scmp.eq.s32.totalorder %s113, 0
      %s116 = sadd.s32 %s115, 1
      %s117 = scalar_select %p114, %s115, %s116
      %p120 = pneg %p114
      %p121 = scmp.eq.s32.totalorder %s15, 1
      %p122 = por %p120, %p121
      %p123 = scmp.ne.s32.totalorder %s115, %s118
      %p124 = scmp.eq.s32.totalorder %s15, 0
      %p125 = por %p123, %p124
      %p126 = scmp.ne.s32.totalorder %s115, %s118
      %p127 = scmp.eq.s32.totalorder %s20, 1
      %p128 = por %p126, %p127
      %p129 = scmp.ne.s32.totalorder %s118, %s119
      %p130 = scmp.eq.s32.totalorder %s20, 0
      %p131 = por %p129, %p130
      %p132 = scmp.ne.s32.totalorder %s118, %s119
      %p133 = scmp.eq.s32.totalorder %s21, 1
      %p134 = por %p132, %p133
      %p136 = scmp.ne.s32.totalorder %s119, %s135
      %p137 = scmp.eq.s32.totalorder %s21, 0
      %p138 = por %p136, %p137
      %s139 = ssub.s32 %s22, %s34
      %s140 = ssub.s32 %s23, %s30
      %s141 = sor.u32 %s139, %s140
      %p142 = scmp.eq.s32.totalorder %s141, 0
      %s144 = sadd.s32 %s143, 1
      %s145 = scalar_select %p142, %s143, %s144
      %p148 = pneg %p142
      %p149 = scmp.eq.s32.totalorder %s15, 1
      %p150 = por %p148, %p149
      %p151 = scmp.ne.s32.totalorder %s143, %s146
      %p152 = scmp.eq.s32.totalorder %s15, 0
      %p153 = por %p151, %p152
      %p154 = scmp.ne.s32.totalorder %s143, %s146
      %p155 = scmp.eq.s32.totalorder %s20, 1
      %p156 = por %p154, %p155
      %p157 = scmp.ne.s32.totalorder %s146, %s147
      %p158 = scmp.eq.s32.totalorder %s20, 0
      %p159 = por %p157, %p158
      %p160 = scmp.ne.s32.totalorder %s146, %s147
      %p161 = scmp.eq.s32.totalorder %s21, 1
      %p162 = por %p160, %p161
      %p164 = scmp.ne.s32.totalorder %s147, %s163
      %p165 = scmp.eq.s32.totalorder %s21, 0
      %p166 = por %p164, %p165
      %s167 = ssub.s32 %s22, %s34
      %p168 = scmp.eq.s32.totalorder %s167, 0
      %s170 = sadd.s32 %s169, 1
      %s171 = scalar_select %p168, %s169, %s170
      %p174 = pneg %p168
      %p175 = scmp.eq.s32.totalorder %s15, 1
      %p176 = por %p174, %p175
      %p177 = scmp.ne.s32.totalorder %s169, %s172
      %p178 = scmp.eq.s32.totalorder %s15, 0
      %p179 = por %p177, %p178
      %p180 = scmp.ne.s32.totalorder %s169, %s172
      %p181 = scmp.eq.s32.totalorder %s20, 1
      %p182 = por %p180, %p181
      %p183 = scmp.ne.s32.totalorder %s172, %s173
      %p184 = scmp.eq.s32.totalorder %s20, 0
      %p185 = por %p183, %p184
      %p186 = scmp.ne.s32.totalorder %s172, %s173
      %p187 = scmp.eq.s32.totalorder %s21, 1
      %p188 = por %p186, %p187
      %p190 = scmp.ne.s32.totalorder %s173, %s189
      %p191 = scmp.eq.s32.totalorder %s21, 0
      %p192 = por %p190, %p191
      %p193 = scmp.le.s32.totalorder 1, %s15
      %p194 = scmp.lt.s32.totalorder %s15, 3
      %p195 = pnand %p193, %p194
      %p196 = pneg %p195
      // Predicated region
      $region9: #{forward_packed_data.3} parent=5 // pred_check
        _
      $region10: #{forward_packed_data.3} parent=5 // pred_check_branch
        %198 = sbr.rel (%p195) target = $region12
      $region11: #{forward_packed_data.3} parent=5 // pred_region
        %s199 = ssub.s32 %s15, 1
        // Predicated region
        $region13: #{forward_packed_data.3} parent=11 // pred_check
          %p200 = pneg %p53
        $region14: #{forward_packed_data.3} parent=11 // pred_check_branch
          %202 = sbr.rel (%p200) target = $region16
        $region15: #{forward_packed_data.3} parent=11 // pred_region
          %s203 = smul.u32 16, %s24
          %p204 = scmp.lt.s32.totalorder %s203, 15
          %s205 = scalar_select %p204, %s203, 15
          %s206 = smul.addr %s205, 8
          %s207 = scalar_lea.vmem %s0, %s206
          %s208 = smul.u32 16, %s24
        $region16: #{forward_packed_data.3} parent=11 // pred_fallthru
          _
        // Predicated region
        $region17: #{forward_packed_data.3} parent=11 // pred_check
          %p209 = pneg %p79
        $region18: #{forward_packed_data.3} parent=11 // pred_check_branch
          %211 = sbr.rel (%p209) target = $region20
        $region19: #{forward_packed_data.3} parent=11 // pred_region
          %s212 = smul.u32 16, %s24
          %p213 = scmp.lt.s32.totalorder %s212, 15
          %s214 = scalar_select %p213, %s212, 15
          %s215 = smul.addr %s214, 8
          %s216 = scalar_lea.vmem %s1, %s215
          %s217 = smul.u32 16, %s24
        $region20: #{forward_packed_data.3} parent=11 // pred_fallthru
          _
      $region12: #{forward_packed_data.3} parent=5 // pred_fallthru
        _
      %p218 = scmp.lt.s32.totalorder %s15, 2
      // Predicated region
      $region21: #{forward_packed_data.3} parent=5 // pred_check
        %p219 = pneg %p218
      $region22: #{forward_packed_data.3} parent=5 // pred_check_branch
        %221 = sbr.rel (%p219) target = $region24
      $region23: #{forward_packed_data.3} parent=5 // pred_region
        // Predicated region
        $region25: #{forward_packed_data.3} parent=23 // pred_check
          %p222 = pneg %p99
        $region26: #{forward_packed_data.3} parent=23 // pred_check_branch
          %224 = sbr.rel (%p222) target = $region28
        $region27: #{forward_packed_data.3} parent=23 // pred_region
          %s225 = sand.u32 %s89, 1
          %s226 = sand.u32 %s89, 1
          %s227 = smul.addr %s226, 512
          %s228 = scalar_lea.vmem [#allocation5], %s227
          %s229 = smul.u32 4, %s23
          %s230 = smul.addr %s229, 8
          %s231 = scalar_lea.vmem %s2, %s230
          // Predicated region
          $region29: #{forward_packed_data.3} parent=27 // pred_check
            _
          $region30: #{forward_packed_data.3} parent=27 // pred_check_branch
            %233 = sbr.rel (0) target = $region32
          $region31: #{forward_packed_data.3} parent=27 // pred_region
            // Predicated region
            $region33: #{forward_packed_data.3} parent=31 // pred_check
              _
            $region34: #{forward_packed_data.3} parent=31 // pred_check_branch
              %235 = sbr.rel (0) target = $region36
            $region35: #{forward_packed_data.3} parent=31 // pred_region
              loop: start=0, step=1, limit=1
              $region37: #{forward_packed_data.3} parent=35 // loop_pre_header
                _
              $region38: #{forward_packed_data.3} parent=35 // loop_header
                %s237 = sphi 0, %s241
                %p238 = scmp.ge.s32.totalorder %s237, 1
                %s242 = sphi %s231, %s231
                %s243 = sphi %s228, %s228
              $region39: #{forward_packed_data.3} parent=35 // loop_header_branch
                %240 = sbr.rel (%p238) target = $region43
              $region40: #{forward_packed_data.3} parent=35 // loop_body
                %v244 = vld [vmem:[%s242] sm:$0xff]
                %245 = vst [vmem:[%s243] sm:$0xff] %v244
                %v246 = vld [vmem:[%s242 + $0x8] sm:$0xff]
                %247 = vst [vmem:[%s243 + $0x8] sm:$0xff] %v246
                %v248 = vld [vmem:[%s242 + $0x10] sm:$0xff]
                %249 = vst [vmem:[%s243 + $0x10] sm:$0xff] %v248
                %v250 = vld [vmem:[%s242 + $0x18] sm:$0xff]
                %251 = vst [vmem:[%s243 + $0x18] sm:$0xff] %v250
                %v252 = vld [vmem:[%s242 + $0x40] sm:$0xff]
                %253 = vst [vmem:[%s243 + $0x20] sm:$0xff] %v252
                %v254 = vld [vmem:[%s242 + $0x48] sm:$0xff]
                %255 = vst [vmem:[%s243 + $0x28] sm:$0xff] %v254
                %v256 = vld [vmem:[%s242 + $0x50] sm:$0xff]
                %257 = vst [vmem:[%s243 + $0x30] sm:$0xff] %v256
                %v258 = vld [vmem:[%s242 + $0x58] sm:$0xff]
                %259 = vst [vmem:[%s243 + $0x38] sm:$0xff] %v258
                %v260 = vld [vmem:[%s242 + $0x80] sm:$0xff]
                %261 = vst [vmem:[%s243 + $0x40] sm:$0xff] %v260
                %v262 = vld [vmem:[%s242 + $0x88] sm:$0xff]
                %263 = vst [vmem:[%s243 + $0x48] sm:$0xff] %v262
                %v264 = vld [vmem:[%s242 + $0x90] sm:$0xff]
                %265 = vst [vmem:[%s243 + $0x50] sm:$0xff] %v264
                %v266 = vld [vmem:[%s242 + $0x98] sm:$0xff]
                %267 = vst [vmem:[%s243 + $0x58] sm:$0xff] %v266
                %v268 = vld [vmem:[%s242 + $0xc0] sm:$0xff]
                %269 = vst [vmem:[%s243 + $0x60] sm:$0xff] %v268
                %v270 = vld [vmem:[%s242 + $0xc8] sm:$0xff]
                %271 = vst [vmem:[%s243 + $0x68] sm:$0xff] %v270
                %v272 = vld [vmem:[%s242 + $0xd0] sm:$0xff]
                %273 = vst [vmem:[%s243 + $0x70] sm:$0xff] %v272
                %v274 = vld [vmem:[%s242 + $0xd8] sm:$0xff]
                %275 = vst [vmem:[%s243 + $0x78] sm:$0xff] %v274
                %v276 = vld [vmem:[%s242 + $0x100] sm:$0xff]
                %277 = vst [vmem:[%s243 + $0x80] sm:$0xff] %v276
                %v278 = vld [vmem:[%s242 + $0x108] sm:$0xff]
                %279 = vst [vmem:[%s243 + $0x88] sm:$0xff] %v278
                %v280 = vld [vmem:[%s242 + $0x110] sm:$0xff]
                %281 = vst [vmem:[%s243 + $0x90] sm:$0xff] %v280
                %v282 = vld [vmem:[%s242 + $0x118] sm:$0xff]
                %283 = vst [vmem:[%s243 + $0x98] sm:$0xff] %v282
                %v284 = vld [vmem:[%s242 + $0x140] sm:$0xff]
                %285 = vst [vmem:[%s243 + $0xa0] sm:$0xff] %v284
                %v286 = vld [vmem:[%s242 + $0x148] sm:$0xff]
                %287 = vst [vmem:[%s243 + $0xa8] sm:$0xff] %v286
                %v288 = vld [vmem:[%s242 + $0x150] sm:$0xff]
                %289 = vst [vmem:[%s243 + $0xb0] sm:$0xff] %v288
                %v290 = vld [vmem:[%s242 + $0x158] sm:$0xff]
                %291 = vst [vmem:[%s243 + $0xb8] sm:$0xff] %v290
                %v292 = vld [vmem:[%s242 + $0x180] sm:$0xff]
                %293 = vst [vmem:[%s243 + $0xc0] sm:$0xff] %v292
                %v294 = vld [vmem:[%s242 + $0x188] sm:$0xff]
                %295 = vst [vmem:[%s243 + $0xc8] sm:$0xff] %v294
                %v296 = vld [vmem:[%s242 + $0x190] sm:$0xff]
                %297 = vst [vmem:[%s243 + $0xd0] sm:$0xff] %v296
                %v298 = vld [vmem:[%s242 + $0x198] sm:$0xff]
                %299 = vst [vmem:[%s243 + $0xd8] sm:$0xff] %v298
                %v300 = vld [vmem:[%s242 + $0x1c0] sm:$0xff]
                %301 = vst [vmem:[%s243 + $0xe0] sm:$0xff] %v300
                %v302 = vld [vmem:[%s242 + $0x1c8] sm:$0xff]
                %303 = vst [vmem:[%s243 + $0xe8] sm:$0xff] %v302
                %v304 = vld [vmem:[%s242 + $0x1d0] sm:$0xff]
                %305 = vst [vmem:[%s243 + $0xf0] sm:$0xff] %v304
                %v306 = vld [vmem:[%s242 + $0x1d8] sm:$0xff]
                %307 = vst [vmem:[%s243 + $0xf8] sm:$0xff] %v306
                %v308 = vld [vmem:[%s242 + $0x200] sm:$0xff]
                %309 = vst [vmem:[%s243 + $0x100] sm:$0xff] %v308
                %v310 = vld [vmem:[%s242 + $0x208] sm:$0xff]
                %311 = vst [vmem:[%s243 + $0x108] sm:$0xff] %v310
                %v312 = vld [vmem:[%s242 + $0x210] sm:$0xff]
                %313 = vst [vmem:[%s243 + $0x110] sm:$0xff] %v312
                %v314 = vld [vmem:[%s242 + $0x218] sm:$0xff]
                %315 = vst [vmem:[%s243 + $0x118] sm:$0xff] %v314
                %v316 = vld [vmem:[%s242 + $0x240] sm:$0xff]
                %317 = vst [vmem:[%s243 + $0x120] sm:$0xff] %v316
                %v318 = vld [vmem:[%s242 + $0x248] sm:$0xff]
                %319 = vst [vmem:[%s243 + $0x128] sm:$0xff] %v318
                %v320 = vld [vmem:[%s242 + $0x250] sm:$0xff]
                %321 = vst [vmem:[%s243 + $0x130] sm:$0xff] %v320
                %v322 = vld [vmem:[%s242 + $0x258] sm:$0xff]
                %323 = vst [vmem:[%s243 + $0x138] sm:$0xff] %v322
                %v324 = vld [vmem:[%s242 + $0x280] sm:$0xff]
                %325 = vst [vmem:[%s243 + $0x140] sm:$0xff] %v324
                %v326 = vld [vmem:[%s242 + $0x288] sm:$0xff]
                %327 = vst [vmem:[%s243 + $0x148] sm:$0xff] %v326
                %v328 = vld [vmem:[%s242 + $0x290] sm:$0xff]
                %329 = vst [vmem:[%s243 + $0x150] sm:$0xff] %v328
                %v330 = vld [vmem:[%s242 + $0x298] sm:$0xff]
                %331 = vst [vmem:[%s243 + $0x158] sm:$0xff] %v330
                %v332 = vld [vmem:[%s242 + $0x2c0] sm:$0xff]
                %333 = vst [vmem:[%s243 + $0x160] sm:$0xff] %v332
                %v334 = vld [vmem:[%s242 + $0x2c8] sm:$0xff]
                %335 = vst [vmem:[%s243 + $0x168] sm:$0xff] %v334
                %v336 = vld [vmem:[%s242 + $0x2d0] sm:$0xff]
                %337 = vst [vmem:[%s243 + $0x170] sm:$0xff] %v336
                %v338 = vld [vmem:[%s242 + $0x2d8] sm:$0xff]
                %339 = vst [vmem:[%s243 + $0x178] sm:$0xff] %v338
                %v340 = vld [vmem:[%s242 + $0x300] sm:$0xff]
                %341 = vst [vmem:[%s243 + $0x180] sm:$0xff] %v340
                %v342 = vld [vmem:[%s242 + $0x308] sm:$0xff]
                %343 = vst [vmem:[%s243 + $0x188] sm:$0xff] %v342
                %v344 = vld [vmem:[%s242 + $0x310] sm:$0xff]
                %345 = vst [vmem:[%s243 + $0x190] sm:$0xff] %v344
                %v346 = vld [vmem:[%s242 + $0x318] sm:$0xff]
                %347 = vst [vmem:[%s243 + $0x198] sm:$0xff] %v346
                %v348 = vld [vmem:[%s242 + $0x340] sm:$0xff]
                %349 = vst [vmem:[%s243 + $0x1a0] sm:$0xff] %v348
                %v350 = vld [vmem:[%s242 + $0x348] sm:$0xff]
                %351 = vst [vmem:[%s243 + $0x1a8] sm:$0xff] %v350
                %v352 = vld [vmem:[%s242 + $0x350] sm:$0xff]
                %353 = vst [vmem:[%s243 + $0x1b0] sm:$0xff] %v352
                %v354 = vld [vmem:[%s242 + $0x358] sm:$0xff]
                %355 = vst [vmem:[%s243 + $0x1b8] sm:$0xff] %v354
                %v356 = vld [vmem:[%s242 + $0x380] sm:$0xff]
                %357 = vst [vmem:[%s243 + $0x1c0] sm:$0xff] %v356
                %v358 = vld [vmem:[%s242 + $0x388] sm:$0xff]
                %359 = vst [vmem:[%s243 + $0x1c8] sm:$0xff] %v358
                %v360 = vld [vmem:[%s242 + $0x390] sm:$0xff]
                %361 = vst [vmem:[%s243 + $0x1d0] sm:$0xff] %v360
                %v362 = vld [vmem:[%s242 + $0x398] sm:$0xff]
                %363 = vst [vmem:[%s243 + $0x1d8] sm:$0xff] %v362
                %v364 = vld [vmem:[%s242 + $0x3c0] sm:$0xff]
                %365 = vst [vmem:[%s243 + $0x1e0] sm:$0xff] %v364
                %v366 = vld [vmem:[%s242 + $0x3c8] sm:$0xff]
                %367 = vst [vmem:[%s243 + $0x1e8] sm:$0xff] %v366
                %v368 = vld [vmem:[%s242 + $0x3d0] sm:$0xff]
                %369 = vst [vmem:[%s243 + $0x1f0] sm:$0xff] %v368
                %v370 = vld [vmem:[%s242 + $0x3d8] sm:$0xff]
                %371 = vst [vmem:[%s243 + $0x1f8] sm:$0xff] %v370
              $region41: #{forward_packed_data.3} parent=35 // loop_footer
                %s241 = sadd.s32 1, %s237
              $region42: #{forward_packed_data.3} parent=35 // loop_footer_branch
                %236 = sbr.rel target = $region38
              $region43: #{forward_packed_data.3} parent=35 // loop_exit
                _
            $region36: #{forward_packed_data.3} parent=31 // pred_fallthru
              _
            // Predicated region
            $region44: #{forward_packed_data.3} parent=31 // pred_check
              _
            $region45: #{forward_packed_data.3} parent=31 // pred_check_branch
              %373 = sbr.rel target = $region47
            $region46: #{forward_packed_data.3} parent=31 // pred_region
              _
            $region47: #{forward_packed_data.3} parent=31 // pred_fallthru
              _
          $region32: #{forward_packed_data.3} parent=27 // pred_fallthru
            _
          %374 = vnop
        $region28: #{forward_packed_data.3} parent=23 // pred_fallthru
          _
        // Predicated region
        $region48: #{forward_packed_data.3} parent=23 // pred_check
          %p375 = pneg %p125
        $region49: #{forward_packed_data.3} parent=23 // pred_check_branch
          %377 = sbr.rel (%p375) target = $region51
        $region50: #{forward_packed_data.3} parent=23 // pred_region
          %s378 = smul.u32 4, %s23
          %p379 = scmp.lt.s32.totalorder %s378, 7
          %s380 = scalar_select %p379, %s378, 7
          %s381 = scalar_lea.vmem %s3, %s380
          %s382 = smul.u32 4, %s23
        $region51: #{forward_packed_data.3} parent=23 // pred_fallthru
          _
      $region24: #{forward_packed_data.3} parent=5 // pred_fallthru
        _
      %p383 = scmp.le.s32.totalorder 1, %s15
      %p384 = scmp.lt.s32.totalorder %s15, 3
      %p385 = pnand %p383, %p384
      %p386 = pneg %p385
      // Predicated region
      $region52: #{forward_packed_data.3} parent=5 // pred_check
        _
      $region53: #{forward_packed_data.3} parent=5 // pred_check_branch
        %388 = sbr.rel (%p385) target = $region55
      $region54: #{forward_packed_data.3} parent=5 // pred_region
        %s389 = ssub.s32 %s15, 1
        %s390 = sand.u32 %s92, 1
        %s391 = sand.u32 %s92, 1
        %s392 = smul.addr %s391, 512
        %s393 = scalar_lea.vmem [#allocation5], %s392
        // Predicated region
        $region56: #{forward_packed_data.3} parent=54 // pred_check
          %p394 = pneg %p105
        $region57: #{forward_packed_data.3} parent=54 // pred_check_branch
          %396 = sbr.rel (%p394) target = $region59
        $region58: #{forward_packed_data.3} parent=54 // pred_region
          _
        $region59: #{forward_packed_data.3} parent=54 // pred_fallthru
          _
        %s397 = smul.u32 16, %s24
        %p398 = scmp.lt.s32.totalorder %s397, 15
        %s399 = scalar_select %p398, %s397, 15
        %s400 = smul.addr %s399, 8
        %s401 = scalar_lea.vmem %s0, %s400
        %p402 = pneg %p53
        %p403 = pneg %p50
        %s404 = smul.u32 16, %s24
        %p405 = scmp.lt.s32.totalorder %s404, 15
        %s406 = scalar_select %p405, %s404, 15
        %s407 = smul.addr %s406, 8
        %s408 = scalar_lea.vmem %s1, %s407
        %p409 = pneg %p79
        %p410 = pneg %p76
        %s411 = sand.u32 %s92, 1
        %s412 = sand.u32 %s92, 1
        %s413 = smul.addr %s412, 512
        %s414 = scalar_lea.vmem [#allocation5], %s413
        %p415 = pneg %p105
        %p416 = pneg %p102
        %s417 = smul.u32 4, %s25
        %p418 = scmp.lt.s32.totalorder %s417, 7
        %s419 = scalar_select %p418, %s417, 7
        %s420 = scalar_lea.vmem %s3, %s419
        %p421 = pneg %p131
        %p422 = pneg %p128
        %p423 = pneg %p159
        %p424 = pneg %p156
        %s425 = sand.u32 %s146, 1
        %s426 = scalar_lea.sflag [#allocation7], %s425
        %s427 = sand.u32 %s146, 1
        %s428 = smul.addr %s427, 512
        %s429 = scalar_lea.vmem [#allocation6], %s428
        %p430 = pneg %p185
        %p431 = pneg %p182
        %s432 = smul.u32 16, %s24
        %p433 = scmp.lt.s32.totalorder %s432, 15
        %s434 = scalar_select %p433, %s432, 15
        %s435 = smul.addr %s434, 8
        %s436 = scalar_lea.vmem %s5, %s435
        %s437 = smul.u32 16, %s24
        %p438 = scmp.lt.s32.totalorder %s437, 15
        %s439 = scalar_select %p438, %s437, 15
        %s440 = smul.addr %s439, 8
        %s441 = scalar_lea.vmem %s0, %s440
        %s442 = smul.u32 16, %s24
        %s443 = smul.u32 16, %s24
        %p444 = scmp.lt.s32.totalorder %s443, 15
        %s445 = scalar_select %p444, %s443, 15
        %s446 = smul.addr %s445, 8
        %s447 = scalar_lea.vmem %s1, %s446
        %s448 = smul.u32 16, %s24
        %s449 = smul.u32 4, %s25
        %s450 = smul.u32 4, %s25
        %p451 = scmp.lt.s32.totalorder %s450, 7
        %s452 = scalar_select %p451, %s450, 7
        %s453 = scalar_lea.vmem %s3, %s452
        %s454 = smul.u32 4, %s25
        %s455 = smul.u32 16, %s24
        %s456 = smul.u32 4, %s25
        %s457 = smul.u32 16, %s24
        %p458 = scmp.lt.s32.totalorder %s457, 15
        %s459 = scalar_select %p458, %s457, 15
        %s460 = smul.addr %s459, 8
        %s461 = scalar_lea.vmem %s5, %s460
        %s462 = smul.u32 16, %s24
        %p463 = scmp.eq.s32.totalorder %s25, 0
        // Predicated region
        $region60: #{forward_packed_data.3} parent=54 // pred_check
          %p464 = pneg %p463
        $region61: #{forward_packed_data.3} parent=54 // pred_check_branch
          %466 = sbr.rel (%p464) target = $region63
        $region62: #{forward_packed_data.3} parent=54 // pred_region
          %vm467 = vcmask 7168
          %468 = vst.msk [vmem:[#allocation2] sm:$0xff] %vm467, -inf
          %469 = vst.msk [vmem:[#allocation2 + $0x8] sm:$0xff] %vm467, -inf
          %470 = vst.msk [vmem:[#allocation2 + $0x10] sm:$0xff] %vm467, -inf
          %471 = vst.msk [vmem:[#allocation2 + $0x18] sm:$0xff] %vm467, -inf
          %472 = vst.msk [vmem:[#allocation2 + $0x20] sm:$0xff] %vm467, -inf
          %473 = vst.msk [vmem:[#allocation2 + $0x28] sm:$0xff] %vm467, -inf
          %474 = vst.msk [vmem:[#allocation2 + $0x30] sm:$0xff] %vm467, -inf
          %475 = vst.msk [vmem:[#allocation2 + $0x38] sm:$0xff] %vm467, -inf
          %476 = vst.msk [vmem:[#allocation2 + $0x40] sm:$0xff] %vm467, -inf
          %477 = vst.msk [vmem:[#allocation2 + $0x48] sm:$0xff] %vm467, -inf
          %478 = vst.msk [vmem:[#allocation2 + $0x50] sm:$0xff] %vm467, -inf
          %479 = vst.msk [vmem:[#allocation2 + $0x58] sm:$0xff] %vm467, -inf
          %480 = vst.msk [vmem:[#allocation2 + $0x60] sm:$0xff] %vm467, -inf
          %481 = vst.msk [vmem:[#allocation2 + $0x68] sm:$0xff] %vm467, -inf
          %482 = vst.msk [vmem:[#allocation2 + $0x70] sm:$0xff] %vm467, -inf
          %483 = vst.msk [vmem:[#allocation2 + $0x78] sm:$0xff] %vm467, -inf
          %484 = vst.msk [vmem:[#allocation3] sm:$0xff] %vm467, 0.0
          %485 = vst.msk [vmem:[#allocation3 + $0x8] sm:$0xff] %vm467, 0.0
          %486 = vst.msk [vmem:[#allocation3 + $0x10] sm:$0xff] %vm467, 0.0
          %487 = vst.msk [vmem:[#allocation3 + $0x18] sm:$0xff] %vm467, 0.0
          %488 = vst.msk [vmem:[#allocation3 + $0x20] sm:$0xff] %vm467, 0.0
          %489 = vst.msk [vmem:[#allocation3 + $0x28] sm:$0xff] %vm467, 0.0
          %490 = vst.msk [vmem:[#allocation3 + $0x30] sm:$0xff] %vm467, 0.0
          %491 = vst.msk [vmem:[#allocation3 + $0x38] sm:$0xff] %vm467, 0.0
          %492 = vst.msk [vmem:[#allocation3 + $0x40] sm:$0xff] %vm467, 0.0
          %493 = vst.msk [vmem:[#allocation3 + $0x48] sm:$0xff] %vm467, 0.0
          %494 = vst.msk [vmem:[#allocation3 + $0x50] sm:$0xff] %vm467, 0.0
          %495 = vst.msk [vmem:[#allocation3 + $0x58] sm:$0xff] %vm467, 0.0
          %496 = vst.msk [vmem:[#allocation3 + $0x60] sm:$0xff] %vm467, 0.0
          %497 = vst.msk [vmem:[#allocation3 + $0x68] sm:$0xff] %vm467, 0.0
          %498 = vst.msk [vmem:[#allocation3 + $0x70] sm:$0xff] %vm467, 0.0
          %499 = vst.msk [vmem:[#allocation3 + $0x78] sm:$0xff] %vm467, 0.0
          %500 = vst.msk [vmem:[#allocation4] sm:$0xff] %vm467, 0.0
          %501 = vst.msk [vmem:[#allocation4 + $0x8] sm:$0xff] %vm467, 0.0
          %502 = vst.msk [vmem:[#allocation4 + $0x10] sm:$0xff] %vm467, 0.0
          %503 = vst.msk [vmem:[#allocation4 + $0x18] sm:$0xff] %vm467, 0.0
          %504 = vst.msk [vmem:[#allocation4 + $0x20] sm:$0xff] %vm467, 0.0
          %505 = vst.msk [vmem:[#allocation4 + $0x28] sm:$0xff] %vm467, 0.0
          %506 = vst.msk [vmem:[#allocation4 + $0x30] sm:$0xff] %vm467, 0.0
          %507 = vst.msk [vmem:[#allocation4 + $0x38] sm:$0xff] %vm467, 0.0
          %508 = vst.msk [vmem:[#allocation4 + $0x40] sm:$0xff] %vm467, 0.0
          %509 = vst.msk [vmem:[#allocation4 + $0x48] sm:$0xff] %vm467, 0.0
          %510 = vst.msk [vmem:[#allocation4 + $0x50] sm:$0xff] %vm467, 0.0
          %511 = vst.msk [vmem:[#allocation4 + $0x58] sm:$0xff] %vm467, 0.0
          %512 = vst.msk [vmem:[#allocation4 + $0x60] sm:$0xff] %vm467, 0.0
          %513 = vst.msk [vmem:[#allocation4 + $0x68] sm:$0xff] %vm467, 0.0
          %514 = vst.msk [vmem:[#allocation4 + $0x70] sm:$0xff] %vm467, 0.0
          %515 = vst.msk [vmem:[#allocation4 + $0x78] sm:$0xff] %vm467, 0.0
        $region63: #{forward_packed_data.3} parent=54 // pred_fallthru
          _
        %v516 = vld [vmem:[%s441] sm:$0xff]
        %v517 = vld [vmem:[%s441 + $0x8] sm:$0xff]
        %v518 = vld [vmem:[%s441 + $0x10] sm:$0xff]
        %v519 = vld [vmem:[%s441 + $0x18] sm:$0xff]
        %v520 = vld [vmem:[%s441 + $0x20] sm:$0xff]
        %v521 = vld [vmem:[%s441 + $0x28] sm:$0xff]
        %v522 = vld [vmem:[%s441 + $0x30] sm:$0xff]
        %v523 = vld [vmem:[%s441 + $0x38] sm:$0xff]
        %v524 = vld [vmem:[%s441 + $0x40] sm:$0xff]
        %v525 = vld [vmem:[%s441 + $0x48] sm:$0xff]
        %v526 = vld [vmem:[%s441 + $0x50] sm:$0xff]
        %v527 = vld [vmem:[%s441 + $0x58] sm:$0xff]
        %v528 = vld [vmem:[%s441 + $0x60] sm:$0xff]
        %v529 = vld [vmem:[%s441 + $0x68] sm:$0xff]
        %v530 = vld [vmem:[%s441 + $0x70] sm:$0xff]
        %v531 = vld [vmem:[%s441 + $0x78] sm:$0xff]
        %v532 = vld [vmem:[%s393] sm:$0xff]
        %v533 = vld [vmem:[%s393 + $0x8] sm:$0xff]
        %v534 = vld [vmem:[%s393 + $0x10] sm:$0xff]
        %v535 = vld [vmem:[%s393 + $0x18] sm:$0xff]
        %v536 = vld [vmem:[%s393 + $0x20] sm:$0xff]
        %v537 = vld [vmem:[%s393 + $0x28] sm:$0xff]
        %v538 = vld [vmem:[%s393 + $0x30] sm:$0xff]
        %v539 = vld [vmem:[%s393 + $0x38] sm:$0xff]
        %v540 = vld [vmem:[%s393 + $0x40] sm:$0xff]
        %v541 = vld [vmem:[%s393 + $0x48] sm:$0xff]
        %v542 = vld [vmem:[%s393 + $0x50] sm:$0xff]
        %v543 = vld [vmem:[%s393 + $0x58] sm:$0xff]
        %v544 = vld [vmem:[%s393 + $0x60] sm:$0xff]
        %v545 = vld [vmem:[%s393 + $0x68] sm:$0xff]
        %v546 = vld [vmem:[%s393 + $0x70] sm:$0xff]
        %v547 = vld [vmem:[%s393 + $0x78] sm:$0xff]
        %v548 = vld [vmem:[%s393 + $0x80] sm:$0xff]
        %v549 = vld [vmem:[%s393 + $0x88] sm:$0xff]
        %v550 = vld [vmem:[%s393 + $0x90] sm:$0xff]
        %v551 = vld [vmem:[%s393 + $0x98] sm:$0xff]
        %v552 = vld [vmem:[%s393 + $0xa0] sm:$0xff]
        %v553 = vld [vmem:[%s393 + $0xa8] sm:$0xff]
        %v554 = vld [vmem:[%s393 + $0xb0] sm:$0xff]
        %v555 = vld [vmem:[%s393 + $0xb8] sm:$0xff]
        %v556 = vld [vmem:[%s393 + $0xc0] sm:$0xff]
        %v557 = vld [vmem:[%s393 + $0xc8] sm:$0xff]
        %v558 = vld [vmem:[%s393 + $0xd0] sm:$0xff]
        %v559 = vld [vmem:[%s393 + $0xd8] sm:$0xff]
        %v560 = vld [vmem:[%s393 + $0xe0] sm:$0xff]
        %v561 = vld [vmem:[%s393 + $0xe8] sm:$0xff]
        %v562 = vld [vmem:[%s393 + $0xf0] sm:$0xff]
        %v563 = vld [vmem:[%s393 + $0xf8] sm:$0xff]
        %v564 = vld [vmem:[%s393 + $0x100] sm:$0xff]
        %v565 = vld [vmem:[%s393 + $0x108] sm:$0xff]
        %v566 = vld [vmem:[%s393 + $0x110] sm:$0xff]
        %v567 = vld [vmem:[%s393 + $0x118] sm:$0xff]
        %v568 = vld [vmem:[%s393 + $0x120] sm:$0xff]
        %v569 = vld [vmem:[%s393 + $0x128] sm:$0xff]
        %v570 = vld [vmem:[%s393 + $0x130] sm:$0xff]
        %v571 = vld [vmem:[%s393 + $0x138] sm:$0xff]
        %v572 = vld [vmem:[%s393 + $0x140] sm:$0xff]
        %v573 = vld [vmem:[%s393 + $0x148] sm:$0xff]
        %v574 = vld [vmem:[%s393 + $0x150] sm:$0xff]
        %v575 = vld [vmem:[%s393 + $0x158] sm:$0xff]
        %v576 = vld [vmem:[%s393 + $0x160] sm:$0xff]
        %v577 = vld [vmem:[%s393 + $0x168] sm:$0xff]
        %v578 = vld [vmem:[%s393 + $0x170] sm:$0xff]
        %v579 = vld [vmem:[%s393 + $0x178] sm:$0xff]
        %v580 = vld [vmem:[%s393 + $0x180] sm:$0xff]
        %v581 = vld [vmem:[%s393 + $0x188] sm:$0xff]
        %v582 = vld [vmem:[%s393 + $0x190] sm:$0xff]
        %v583 = vld [vmem:[%s393 + $0x198] sm:$0xff]
        %v584 = vld [vmem:[%s393 + $0x1a0] sm:$0xff]
        %v585 = vld [vmem:[%s393 + $0x1a8] sm:$0xff]
        %v586 = vld [vmem:[%s393 + $0x1b0] sm:$0xff]
        %v587 = vld [vmem:[%s393 + $0x1b8] sm:$0xff]
        %v588 = vld [vmem:[%s393 + $0x1c0] sm:$0xff]
        %v589 = vld [vmem:[%s393 + $0x1c8] sm:$0xff]
        %v590 = vld [vmem:[%s393 + $0x1d0] sm:$0xff]
        %v591 = vld [vmem:[%s393 + $0x1d8] sm:$0xff]
        %v592 = vld [vmem:[%s393 + $0x1e0] sm:$0xff]
        %v593 = vld [vmem:[%s393 + $0x1e8] sm:$0xff]
        %v594 = vld [vmem:[%s393 + $0x1f0] sm:$0xff]
        %v595 = vld [vmem:[%s393 + $0x1f8] sm:$0xff]
        %v596 = vld [vmem:[%s453] sm:$0xf]
        %v598 = vlaneseq
        %v599 = vshrl.u32 %v598, 7
        %v600 = vsub.s32 0, %v599
        %v601 = vrot.slane %v596, %v600
        %v602 = vlaneseq
        %v603 = vshrl.u32 %v602, 7
        %v604 = vsub.s32 1, %v603
        %v605 = vrot.slane %v596, %v604
        %v606 = vlaneseq
        %v607 = vshrl.u32 %v606, 7
        %v608 = vsub.s32 2, %v607
        %v609 = vrot.slane %v596, %v608
        %v610 = vlaneseq
        %v611 = vshrl.u32 %v610, 7
        %v612 = vsub.s32 3, %v611
        %v613 = vrot.slane %v596, %v612
        %618 = vmatprep.subr.mxu0 %v533
        %619 = vmatpush1.msra.mxu0 %v532
        %620 = vmatprep.subr.mxu0 %v537
        %621 = vmatpush1.msra.mxu0 %v536
        %622 = vmatprep.subr.mxu0 %v541
        %623 = vmatpush1.msra.mxu0 %v540
        %624 = vmatprep.subr.mxu0 %v545
        %625 = vmatpush1.msra.mxu0 %v544
        %626 = vmatprep.subr.mxu0 %v549
        %627 = vmatpush1.msra.mxu0 %v548
        %628 = vmatprep.subr.mxu0 %v553
        %629 = vmatpush1.msra.mxu0 %v552
        %630 = vmatprep.subr.mxu0 %v557
        %631 = vmatpush1.msra.mxu0 %v556
        %632 = vmatprep.subr.mxu0 %v561
        %633 = vmatpush1.msra.mxu0 %v560
        %634 = vmatprep.subr.mxu0 %v565
        %635 = vmatpush1.msra.mxu0 %v564
        %636 = vmatprep.subr.mxu0 %v569
        %637 = vmatpush1.msra.mxu0 %v568
        %638 = vmatprep.subr.mxu0 %v573
        %639 = vmatpush1.msra.mxu0 %v572
        %640 = vmatprep.subr.mxu0 %v577
        %641 = vmatpush1.msra.mxu0 %v576
        %642 = vmatprep.subr.mxu0 %v581
        %643 = vmatpush1.msra.mxu0 %v580
        %644 = vmatprep.subr.mxu0 %v585
        %645 = vmatpush1.msra.mxu0 %v584
        %646 = vmatprep.subr.mxu0 %v589
        %647 = vmatpush1.msra.mxu0 %v588
        %648 = vmatprep.subr.mxu0 %v593
        %649 = vmatpush1.msra.mxu0 %v592
        %650 = vmatprep.subr.mxu0 0.0
        %651 = vmatpush1.msra.mxu0 0.0
        %652 = vmatprep.subr.mxu0 0.0
        %653 = vmatpush1.msra.mxu0 0.0
        %654 = vmatprep.subr.mxu0 0.0
        %655 = vmatpush1.msra.mxu0 0.0
        %656 = vmatprep.subr.mxu0 0.0
        %657 = vmatpush1.msra.mxu0 0.0
        %658 = vmatprep.subr.mxu0 0.0
        %659 = vmatpush1.msra.mxu0 0.0
        %660 = vmatprep.subr.mxu0 0.0
        %661 = vmatpush1.msra.mxu0 0.0
        %662 = vmatprep.subr.mxu0 0.0
        %663 = vmatpush1.msra.mxu0 0.0
        %664 = vmatprep.subr.mxu0 0.0
        %665 = vmatpush1.msra.mxu0 0.0
        %666 = vmatprep.subr.mxu0 0.0
        %667 = vmatpush1.msra.mxu0 0.0
        %668 = vmatprep.subr.mxu0 0.0
        %669 = vmatpush1.msra.mxu0 0.0
        %670 = vmatprep.subr.mxu0 0.0
        %671 = vmatpush1.msra.mxu0 0.0
        %672 = vmatprep.subr.mxu0 0.0
        %673 = vmatpush1.msra.mxu0 0.0
        %674 = vmatprep.subr.mxu0 0.0
        %675 = vmatpush1.msra.mxu0 0.0
        %676 = vmatprep.subr.mxu0 0.0
        %677 = vmatpush1.msra.mxu0 0.0
        %678 = vmatprep.subr.mxu0 0.0
        %679 = vmatpush1.msra.mxu0 0.0
        %680 = vmatprep.subr.mxu0 0.0
        %681 = vmatpush1.msra.mxu0 0.0
        %682 = vmatprep.mubr.f32.mxu0 0.0
        %683 = vmatmul.mubr.f32.gmra.mrb[0].mxu0 %v516
        %v684 = vpop.f32.mrb[0].mxu0
        %v685 = vadd.f32 %v601, %v684
        %v686 = vpop.f32.mrb[0].mxu0
        %v687 = vadd.f32 %v605, %v686
        %688 = vmatprep.mubr.f32.mxu0 0.0
        %689 = vmatmul.mubr.f32.gmra.mrb[0].mxu0 %v517
        %v690 = vpop.f32.mrb[0].mxu0
        %v691 = vadd.f32 %v601, %v690
        %v692 = vpop.f32.mrb[0].mxu0
        %v693 = vadd.f32 %v605, %v692
        %694 = vmatprep.mubr.f32.mxu0 0.0
        %695 = vmatmul.mubr.f32.gmra.mrb[0].mxu0 %v518
        %v696 = vpop.f32.mrb[0].mxu0
        %v697 = vadd.f32 %v601, %v696
        %v698 = vpop.f32.mrb[0].mxu0
        %v699 = vadd.f32 %v605, %v698
        %700 = vmatprep.mubr.f32.mxu0 0.0
        %701 = vmatmul.mubr.f32.gmra.mrb[0].mxu0 %v519
        %v702 = vpop.f32.mrb[0].mxu0
        %v703 = vadd.f32 %v601, %v702
        %v704 = vpop.f32.mrb[0].mxu0
        %v705 = vadd.f32 %v605, %v704
        %706 = vmatprep.mubr.f32.mxu0 0.0
        %707 = vmatmul.mubr.f32.gmra.mrb[0].mxu0 %v520
        %v708 = vpop.f32.mrb[0].mxu0
        %v709 = vadd.f32 %v601, %v708
        %v710 = vpop.f32.mrb[0].mxu0
        %v711 = vadd.f32 %v605, %v710
        %712 = vmatprep.mubr.f32.mxu0 0.0
        %713 = vmatmul.mubr.f32.gmra.mrb[0].mxu0 %v521
        %v714 = vpop.f32.mrb[0].mxu0
        %v715 = vadd.f32 %v601, %v714
        %v716 = vpop.f32.mrb[0].mxu0
        %v717 = vadd.f32 %v605, %v716
        %718 = vmatprep.mubr.f32.mxu0 0.0
        %719 = vmatmul.mubr.f32.gmra.mrb[0].mxu0 %v522
        %v720 = vpop.f32.mrb[0].mxu0
        %v721 = vadd.f32 %v601, %v720
        %v722 = vpop.f32.mrb[0].mxu0
        %v723 = vadd.f32 %v605, %v722
        %724 = vmatprep.mubr.f32.mxu0 0.0
        %725 = vmatmul.mubr.f32.gmra.mrb[0].mxu0 %v523
        %v726 = vpop.f32.mrb[0].mxu0
        %v727 = vadd.f32 %v601, %v726
        %v728 = vpop.f32.mrb[0].mxu0
        %v729 = vadd.f32 %v605, %v728
        %730 = vmatprep.mubr.f32.mxu0 0.0
        %731 = vmatmul.mubr.f32.gmra.mrb[0].mxu0 %v524
        %v732 = vpop.f32.mrb[0].mxu0
        %v733 = vadd.f32 %v601, %v732
        %v734 = vpop.f32.mrb[0].mxu0
        %v735 = vadd.f32 %v605, %v734
        %736 = vmatprep.mubr.f32.mxu0 0.0
        %737 = vmatmul.mubr.f32.gmra.mrb[0].mxu0 %v525
        %v738 = vpop.f32.mrb[0].mxu0
        %v739 = vadd.f32 %v601, %v738
        %v740 = vpop.f32.mrb[0].mxu0
        %v741 = vadd.f32 %v605, %v740
        %742 = vmatprep.mubr.f32.mxu0 0.0
        %743 = vmatmul.mubr.f32.gmra.mrb[0].mxu0 %v526
        %v744 = vpop.f32.mrb[0].mxu0
        %v745 = vadd.f32 %v601, %v744
        %v746 = vpop.f32.mrb[0].mxu0
        %v747 = vadd.f32 %v605, %v746
        %748 = vmatprep.mubr.f32.mxu0 0.0
        %749 = vmatmul.mubr.f32.gmra.mrb[0].mxu0 %v527
        %v750 = vpop.f32.mrb[0].mxu0
        %v751 = vadd.f32 %v601, %v750
        %v752 = vpop.f32.mrb[0].mxu0
        %v753 = vadd.f32 %v605, %v752
        %754 = vmatprep.mubr.f32.mxu0 0.0
        %755 = vmatmul.mubr.f32.gmra.mrb[0].mxu0 %v528
        %v756 = vpop.f32.mrb[0].mxu0
        %v757 = vadd.f32 %v601, %v756
        %v758 = vpop.f32.mrb[0].mxu0
        %v759 = vadd.f32 %v605, %v758
        %760 = vmatprep.mubr.f32.mxu0 0.0
        %761 = vmatmul.mubr.f32.gmra.mrb[0].mxu0 %v529
        %v762 = vpop.f32.mrb[0].mxu0
        %v763 = vadd.f32 %v601, %v762
        %v764 = vpop.f32.mrb[0].mxu0
        %v765 = vadd.f32 %v605, %v764
        %766 = vmatprep.mubr.f32.mxu0 0.0
        %767 = vmatmul.mubr.f32.gmra.mrb[0].mxu0 %v530
        %v768 = vpop.f32.mrb[0].mxu0
        %v769 = vadd.f32 %v601, %v768
        %v770 = vpop.f32.mrb[0].mxu0
        %v771 = vadd.f32 %v605, %v770
        %772 = vmatprep.mubr.f32.mxu0 0.0
        %773 = vmatmul.mubr.f32.gmra.mrb[0].mxu0 %v531
        %v774 = vpop.f32.mrb[0].mxu0
        %v775 = vadd.f32 %v601, %v774
        %v776 = vpop.f32.mrb[0].mxu0
        %v777 = vadd.f32 %v605, %v776
        %778 = vdwg.mxu0
        %779 = vmatprep.subr.mxu0 %v535
        %780 = vmatpush1.msra.mxu0 %v534
        %781 = vmatprep.subr.mxu0 %v539
        %782 = vmatpush1.msra.mxu0 %v538
        %783 = vmatprep.subr.mxu0 %v543
        %784 = vmatpush1.msra.mxu0 %v542
        %785 = vmatprep.subr.mxu0 %v547
        %786 = vmatpush1.msra.mxu0 %v546
        %787 = vmatprep.subr.mxu0 %v551
        %788 = vmatpush1.msra.mxu0 %v550
        %789 = vmatprep.subr.mxu0 %v555
        %790 = vmatpush1.msra.mxu0 %v554
        %791 = vmatprep.subr.mxu0 %v559
        %792 = vmatpush1.msra.mxu0 %v558
        %793 = vmatprep.subr.mxu0 %v563
        %794 = vmatpush1.msra.mxu0 %v562
        %795 = vmatprep.subr.mxu0 %v567
        %796 = vmatpush1.msra.mxu0 %v566
        %797 = vmatprep.subr.mxu0 %v571
        %798 = vmatpush1.msra.mxu0 %v570
        %799 = vmatprep.subr.mxu0 %v575
        %800 = vmatpush1.msra.mxu0 %v574
        %801 = vmatprep.subr.mxu0 %v579
        %802 = vmatpush1.msra.mxu0 %v578
        %803 = vmatprep.subr.mxu0 %v583
        %804 = vmatpush1.msra.mxu0 %v582
        %805 = vmatprep.subr.mxu0 %v587
        %806 = vmatpush1.msra.mxu0 %v586
        %807 = vmatprep.subr.mxu0 %v591
        %808 = vmatpush1.msra.mxu0 %v590
        %809 = vmatprep.subr.mxu0 %v595
        %810 = vmatpush1.msra.mxu0 %v594
        %811 = vmatprep.subr.mxu0 0.0
        %812 = vmatpush1.msra.mxu0 0.0
        %813 = vmatprep.subr.mxu0 0.0
        %814 = vmatpush1.msra.mxu0 0.0
        %815 = vmatprep.subr.mxu0 0.0
        %816 = vmatpush1.msra.mxu0 0.0
        %817 = vmatprep.subr.mxu0 0.0
        %818 = vmatpush1.msra.mxu0 0.0
        %819 = vmatprep.subr.mxu0 0.0
        %820 = vmatpush1.msra.mxu0 0.0
        %821 = vmatprep.subr.mxu0 0.0
        %822 = vmatpush1.msra.mxu0 0.0
        %823 = vmatprep.subr.mxu0 0.0
        %824 = vmatpush1.msra.mxu0 0.0
        %825 = vmatprep.subr.mxu0 0.0
        %826 = vmatpush1.msra.mxu0 0.0
        %827 = vmatprep.subr.mxu0 0.0
        %828 = vmatpush1.msra.mxu0 0.0
        %829 = vmatprep.subr.mxu0 0.0
        %830 = vmatpush1.msra.mxu0 0.0
        %831 = vmatprep.subr.mxu0 0.0
        %832 = vmatpush1.msra.mxu0 0.0
        %833 = vmatprep.subr.mxu0 0.0
        %834 = vmatpush1.msra.mxu0 0.0
        %835 = vmatprep.subr.mxu0 0.0
        %836 = vmatpush1.msra.mxu0 0.0
        %837 = vmatprep.subr.mxu0 0.0
        %838 = vmatpush1.msra.mxu0 0.0
        %839 = vmatprep.subr.mxu0 0.0
        %840 = vmatpush1.msra.mxu0 0.0
        %841 = vmatprep.subr.mxu0 0.0
        %842 = vmatpush1.msra.mxu0 0.0
        %843 = vmatprep.mubr.f32.mxu0 0.0
        %844 = vmatmul.mubr.f32.gmra.mrb[0].mxu0 %v516
        %v845 = vpop.f32.mrb[0].mxu0
        %v846 = vadd.f32 %v609, %v845
        %v847 = vpop.f32.mrb[0].mxu0
        %v848 = vadd.f32 %v613, %v847
        %849 = vmatprep.mubr.f32.mxu0 0.0
        %850 = vmatmul.mubr.f32.gmra.mrb[0].mxu0 %v517
        %v851 = vpop.f32.mrb[0].mxu0
        %v852 = vadd.f32 %v609, %v851
        %v853 = vpop.f32.mrb[0].mxu0
        %v854 = vadd.f32 %v613, %v853
        %855 = vmatprep.mubr.f32.mxu0 0.0
        %856 = vmatmul.mubr.f32.gmra.mrb[0].mxu0 %v518
        %v857 = vpop.f32.mrb[0].mxu0
        %v858 = vadd.f32 %v609, %v857
        %v859 = vpop.f32.mrb[0].mxu0
        %v860 = vadd.f32 %v613, %v859
        %861 = vmatprep.mubr.f32.mxu0 0.0
        %862 = vmatmul.mubr.f32.gmra.mrb[0].mxu0 %v519
        %v863 = vpop.f32.mrb[0].mxu0
        %v864 = vadd.f32 %v609, %v863
        %v865 = vpop.f32.mrb[0].mxu0
        %v866 = vadd.f32 %v613, %v865
        %867 = vmatprep.mubr.f32.mxu0 0.0
        %868 = vmatmul.mubr.f32.gmra.mrb[0].mxu0 %v520
        %v869 = vpop.f32.mrb[0].mxu0
        %v870 = vadd.f32 %v609, %v869
        %v871 = vpop.f32.mrb[0].mxu0
        %v872 = vadd.f32 %v613, %v871
        %873 = vmatprep.mubr.f32.mxu0 0.0
        %874 = vmatmul.mubr.f32.gmra.mrb[0].mxu0 %v521
        %v875 = vpop.f32.mrb[0].mxu0
        %v876 = vadd.f32 %v609, %v875
        %v877 = vpop.f32.mrb[0].mxu0
        %v878 = vadd.f32 %v613, %v877
        %879 = vmatprep.mubr.f32.mxu0 0.0
        %880 = vmatmul.mubr.f32.gmra.mrb[0].mxu0 %v522
        %v881 = vpop.f32.mrb[0].mxu0
        %v882 = vadd.f32 %v609, %v881
        %v883 = vpop.f32.mrb[0].mxu0
        %v884 = vadd.f32 %v613, %v883
        %885 = vmatprep.mubr.f32.mxu0 0.0
        %886 = vmatmul.mubr.f32.gmra.mrb[0].mxu0 %v523
        %v887 = vpop.f32.mrb[0].mxu0
        %v888 = vadd.f32 %v609, %v887
        %v889 = vpop.f32.mrb[0].mxu0
        %v890 = vadd.f32 %v613, %v889
        %891 = vmatprep.mubr.f32.mxu0 0.0
        %892 = vmatmul.mubr.f32.gmra.mrb[0].mxu0 %v524
        %v893 = vpop.f32.mrb[0].mxu0
        %v894 = vadd.f32 %v609, %v893
        %v895 = vpop.f32.mrb[0].mxu0
        %v896 = vadd.f32 %v613, %v895
        %897 = vmatprep.mubr.f32.mxu0 0.0
        %898 = vmatmul.mubr.f32.gmra.mrb[0].mxu0 %v525
        %v899 = vpop.f32.mrb[0].mxu0
        %v900 = vadd.f32 %v609, %v899
        %v901 = vpop.f32.mrb[0].mxu0
        %v902 = vadd.f32 %v613, %v901
        %903 = vmatprep.mubr.f32.mxu0 0.0
        %904 = vmatmul.mubr.f32.gmra.mrb[0].mxu0 %v526
        %v905 = vpop.f32.mrb[0].mxu0
        %v906 = vadd.f32 %v609, %v905
        %v907 = vpop.f32.mrb[0].mxu0
        %v908 = vadd.f32 %v613, %v907
        %909 = vmatprep.mubr.f32.mxu0 0.0
        %910 = vmatmul.mubr.f32.gmra.mrb[0].mxu0 %v527
        %v911 = vpop.f32.mrb[0].mxu0
        %v912 = vadd.f32 %v609, %v911
        %v913 = vpop.f32.mrb[0].mxu0
        %v914 = vadd.f32 %v613, %v913
        %915 = vmatprep.mubr.f32.mxu0 0.0
        %916 = vmatmul.mubr.f32.gmra.mrb[0].mxu0 %v528
        %v917 = vpop.f32.mrb[0].mxu0
        %v918 = vadd.f32 %v609, %v917
        %v919 = vpop.f32.mrb[0].mxu0
        %v920 = vadd.f32 %v613, %v919
        %921 = vmatprep.mubr.f32.mxu0 0.0
        %922 = vmatmul.mubr.f32.gmra.mrb[0].mxu0 %v529
        %v923 = vpop.f32.mrb[0].mxu0
        %v924 = vadd.f32 %v609, %v923
        %v925 = vpop.f32.mrb[0].mxu0
        %v926 = vadd.f32 %v613, %v925
        %927 = vmatprep.mubr.f32.mxu0 0.0
        %928 = vmatmul.mubr.f32.gmra.mrb[0].mxu0 %v530
        %v929 = vpop.f32.mrb[0].mxu0
        %v930 = vadd.f32 %v609, %v929
        %v931 = vpop.f32.mrb[0].mxu0
        %v932 = vadd.f32 %v613, %v931
        %933 = vmatprep.mubr.f32.mxu0 0.0
        %934 = vmatmul.mubr.f32.gmra.mrb[0].mxu0 %v531
        %v935 = vpop.f32.mrb[0].mxu0
        %v936 = vadd.f32 %v609, %v935
        %v937 = vpop.f32.mrb[0].mxu0
        %v938 = vadd.f32 %v613, %v937
        %939 = vdwg.mxu0
        %940 = vst [vmem:[%s429] sm:$0xff] %v685
        %941 = vst [vmem:[%s429 + $0x8] sm:$0xff] %v687
        %942 = vst [vmem:[%s429 + $0x10] sm:$0xff] %v846
        %943 = vst [vmem:[%s429 + $0x18] sm:$0xff] %v848
        %944 = vst [vmem:[%s429 + $0x20] sm:$0xff] %v691
        %945 = vst [vmem:[%s429 + $0x28] sm:$0xff] %v693
        %946 = vst [vmem:[%s429 + $0x30] sm:$0xff] %v852
        %947 = vst [vmem:[%s429 + $0x38] sm:$0xff] %v854
        %948 = vst [vmem:[%s429 + $0x40] sm:$0xff] %v697
        %949 = vst [vmem:[%s429 + $0x48] sm:$0xff] %v699
        %950 = vst [vmem:[%s429 + $0x50] sm:$0xff] %v858
        %951 = vst [vmem:[%s429 + $0x58] sm:$0xff] %v860
        %952 = vst [vmem:[%s429 + $0x60] sm:$0xff] %v703
        %953 = vst [vmem:[%s429 + $0x68] sm:$0xff] %v705
        %954 = vst [vmem:[%s429 + $0x70] sm:$0xff] %v864
        %955 = vst [vmem:[%s429 + $0x78] sm:$0xff] %v866
        %956 = vst [vmem:[%s429 + $0x80] sm:$0xff] %v709
        %957 = vst [vmem:[%s429 + $0x88] sm:$0xff] %v711
        %958 = vst [vmem:[%s429 + $0x90] sm:$0xff] %v870
        %959 = vst [vmem:[%s429 + $0x98] sm:$0xff] %v872
        %960 = vst [vmem:[%s429 + $0xa0] sm:$0xff] %v715
        %961 = vst [vmem:[%s429 + $0xa8] sm:$0xff] %v717
        %962 = vst [vmem:[%s429 + $0xb0] sm:$0xff] %v876
        %963 = vst [vmem:[%s429 + $0xb8] sm:$0xff] %v878
        %964 = vst [vmem:[%s429 + $0xc0] sm:$0xff] %v721
        %965 = vst [vmem:[%s429 + $0xc8] sm:$0xff] %v723
        %966 = vst [vmem:[%s429 + $0xd0] sm:$0xff] %v882
        %967 = vst [vmem:[%s429 + $0xd8] sm:$0xff] %v884
        %968 = vst [vmem:[%s429 + $0xe0] sm:$0xff] %v727
        %969 = vst [vmem:[%s429 + $0xe8] sm:$0xff] %v729
        %970 = vst [vmem:[%s429 + $0xf0] sm:$0xff] %v888
        %971 = vst [vmem:[%s429 + $0xf8] sm:$0xff] %v890
        %972 = vst [vmem:[%s429 + $0x100] sm:$0xff] %v733
        %973 = vst [vmem:[%s429 + $0x108] sm:$0xff] %v735
        %974 = vst [vmem:[%s429 + $0x110] sm:$0xff] %v894
        %975 = vst [vmem:[%s429 + $0x118] sm:$0xff] %v896
        %976 = vst [vmem:[%s429 + $0x120] sm:$0xff] %v739
        %977 = vst [vmem:[%s429 + $0x128] sm:$0xff] %v741
        %978 = vst [vmem:[%s429 + $0x130] sm:$0xff] %v900
        %979 = vst [vmem:[%s429 + $0x138] sm:$0xff] %v902
        %980 = vst [vmem:[%s429 + $0x140] sm:$0xff] %v745
        %981 = vst [vmem:[%s429 + $0x148] sm:$0xff] %v747
        %982 = vst [vmem:[%s429 + $0x150] sm:$0xff] %v906
        %983 = vst [vmem:[%s429 + $0x158] sm:$0xff] %v908
        %984 = vst [vmem:[%s429 + $0x160] sm:$0xff] %v751
        %985 = vst [vmem:[%s429 + $0x168] sm:$0xff] %v753
        %986 = vst [vmem:[%s429 + $0x170] sm:$0xff] %v912
        %987 = vst [vmem:[%s429 + $0x178] sm:$0xff] %v914
        %988 = vst [vmem:[%s429 + $0x180] sm:$0xff] %v757
        %989 = vst [vmem:[%s429 + $0x188] sm:$0xff] %v759
        %990 = vst [vmem:[%s429 + $0x190] sm:$0xff] %v918
        %991 = vst [vmem:[%s429 + $0x198] sm:$0xff] %v920
        %992 = vst [vmem:[%s429 + $0x1a0] sm:$0xff] %v763
        %993 = vst [vmem:[%s429 + $0x1a8] sm:$0xff] %v765
        %994 = vst [vmem:[%s429 + $0x1b0] sm:$0xff] %v924
        %995 = vst [vmem:[%s429 + $0x1b8] sm:$0xff] %v926
        %996 = vst [vmem:[%s429 + $0x1c0] sm:$0xff] %v769
        %997 = vst [vmem:[%s429 + $0x1c8] sm:$0xff] %v771
        %998 = vst [vmem:[%s429 + $0x1d0] sm:$0xff] %v930
        %999 = vst [vmem:[%s429 + $0x1d8] sm:$0xff] %v932
        %1000 = vst [vmem:[%s429 + $0x1e0] sm:$0xff] %v775
        %1001 = vst [vmem:[%s429 + $0x1e8] sm:$0xff] %v777
        %1002 = vst [vmem:[%s429 + $0x1f0] sm:$0xff] %v936
        %1003 = vst [vmem:[%s429 + $0x1f8] sm:$0xff] %v938
        %v1004 = vld [vmem:[%s447] sm:$0xff]
        %v1005 = vld [vmem:[%s447 + $0x8] sm:$0xff]
        %v1006 = vld [vmem:[%s447 + $0x10] sm:$0xff]
        %v1007 = vld [vmem:[%s447 + $0x18] sm:$0xff]
        %v1008 = vld [vmem:[%s447 + $0x20] sm:$0xff]
        %v1009 = vld [vmem:[%s447 + $0x28] sm:$0xff]
        %v1010 = vld [vmem:[%s447 + $0x30] sm:$0xff]
        %v1011 = vld [vmem:[%s447 + $0x38] sm:$0xff]
        %v1012 = vld [vmem:[%s447 + $0x40] sm:$0xff]
        %v1013 = vld [vmem:[%s447 + $0x48] sm:$0xff]
        %v1014 = vld [vmem:[%s447 + $0x50] sm:$0xff]
        %v1015 = vld [vmem:[%s447 + $0x58] sm:$0xff]
        %v1016 = vld [vmem:[%s447 + $0x60] sm:$0xff]
        %v1017 = vld [vmem:[%s447 + $0x68] sm:$0xff]
        %v1018 = vld [vmem:[%s447 + $0x70] sm:$0xff]
        %v1019 = vld [vmem:[%s447 + $0x78] sm:$0xff]
        %v1020 = vlaneseq
        %v1021 = vand.u32 %v1020, 127
        %v1022 = vadd.s32 %v1021, 128
        %v1023 = vadd.s32 %v1021, 256
        %v1024 = vadd.s32 %v1021, 384
        %s1025 = smul.u32 %s25, 512
        %v1026 = vstv %s1025
        %v1027 = vadd.s32 %v1021, %v1026
        %v1028 = vadd.s32 %v1022, %v1026
        %v1029 = vadd.s32 %v1023, %v1026
        %v1030 = vadd.s32 %v1024, %v1026
        %v1031 = vld [vmem:[#allocation4] sm:$0xff]
        %v1032 = vld [vmem:[#allocation4 + $0x8] sm:$0xff]
        %v1033 = vld [vmem:[#allocation4 + $0x10] sm:$0xff]
        %v1034 = vld [vmem:[#allocation4 + $0x18] sm:$0xff]
        %v1035 = vld [vmem:[#allocation4 + $0x20] sm:$0xff]
        %v1036 = vld [vmem:[#allocation4 + $0x28] sm:$0xff]
        %v1037 = vld [vmem:[#allocation4 + $0x30] sm:$0xff]
        %v1038 = vld [vmem:[#allocation4 + $0x38] sm:$0xff]
        %v1039 = vld [vmem:[#allocation4 + $0x40] sm:$0xff]
        %v1040 = vld [vmem:[#allocation4 + $0x48] sm:$0xff]
        %v1041 = vld [vmem:[#allocation4 + $0x50] sm:$0xff]
        %v1042 = vld [vmem:[#allocation4 + $0x58] sm:$0xff]
        %v1043 = vld [vmem:[#allocation4 + $0x60] sm:$0xff]
        %v1044 = vld [vmem:[#allocation4 + $0x68] sm:$0xff]
        %v1045 = vld [vmem:[#allocation4 + $0x70] sm:$0xff]
        %v1046 = vld [vmem:[#allocation4 + $0x78] sm:$0xff]
        %1047 = vset.pattern.permute.xlu0 0
        %1048 = vperm.xlu0 %1047, %v1004
        %v1049 = vpop.permute.xlu0 %1048
        %1050 = vset.pattern.permute.xlu0 0
        %1051 = vperm.xlu0 %1050, %v1005
        %v1052 = vpop.permute.xlu0 %1051
        %1053 = vset.pattern.permute.xlu0 0
        %1054 = vperm.xlu0 %1053, %v1006
        %v1055 = vpop.permute.xlu0 %1054
        %1056 = vset.pattern.permute.xlu0 0
        %1057 = vperm.xlu0 %1056, %v1007
        %v1058 = vpop.permute.xlu0 %1057
        %1059 = vset.pattern.permute.xlu0 0
        %1060 = vperm.xlu0 %1059, %v1008
        %v1061 = vpop.permute.xlu0 %1060
        %1062 = vset.pattern.permute.xlu0 0
        %1063 = vperm.xlu0 %1062, %v1009
        %v1064 = vpop.permute.xlu0 %1063
        %1065 = vset.pattern.permute.xlu0 0
        %1066 = vperm.xlu0 %1065, %v1010
        %v1067 = vpop.permute.xlu0 %1066
        %1068 = vset.pattern.permute.xlu0 0
        %1069 = vperm.xlu0 %1068, %v1011
        %v1070 = vpop.permute.xlu0 %1069
        %1071 = vset.pattern.permute.xlu0 0
        %1072 = vperm.xlu0 %1071, %v1012
        %v1073 = vpop.permute.xlu0 %1072
        %1074 = vset.pattern.permute.xlu0 0
        %1075 = vperm.xlu0 %1074, %v1013
        %v1076 = vpop.permute.xlu0 %1075
        %1077 = vset.pattern.permute.xlu0 0
        %1078 = vperm.xlu0 %1077, %v1014
        %v1079 = vpop.permute.xlu0 %1078
        %1080 = vset.pattern.permute.xlu0 0
        %1081 = vperm.xlu0 %1080, %v1015
        %v1082 = vpop.permute.xlu0 %1081
        %1083 = vset.pattern.permute.xlu0 0
        %1084 = vperm.xlu0 %1083, %v1016
        %v1085 = vpop.permute.xlu0 %1084
        %1086 = vset.pattern.permute.xlu0 0
        %1087 = vperm.xlu0 %1086, %v1017
        %v1088 = vpop.permute.xlu0 %1087
        %1089 = vset.pattern.permute.xlu0 0
        %1090 = vperm.xlu0 %1089, %v1018
        %v1091 = vpop.permute.xlu0 %1090
        %1092 = vset.pattern.permute.xlu0 0
        %1093 = vperm.xlu0 %1092, %v1019
        %v1094 = vpop.permute.xlu0 %1093
        %vm1095 = vcmp.eq.s32.totalorder %v1049, %v1027
        %vm1096 = vcmp.eq.s32.totalorder %v1049, %v1028
        %vm1097 = vcmp.eq.s32.totalorder %v1049, %v1029
        %vm1098 = vcmp.eq.s32.totalorder %v1049, %v1030
        %vm1099 = vcmp.eq.s32.totalorder %v1052, %v1027
        %vm1100 = vcmp.eq.s32.totalorder %v1052, %v1028
        %vm1101 = vcmp.eq.s32.totalorder %v1052, %v1029
        %vm1102 = vcmp.eq.s32.totalorder %v1052, %v1030
        %vm1103 = vcmp.eq.s32.totalorder %v1055, %v1027
        %vm1104 = vcmp.eq.s32.totalorder %v1055, %v1028
        %vm1105 = vcmp.eq.s32.totalorder %v1055, %v1029
        %vm1106 = vcmp.eq.s32.totalorder %v1055, %v1030
        %vm1107 = vcmp.eq.s32.totalorder %v1058, %v1027
        %vm1108 = vcmp.eq.s32.totalorder %v1058, %v1028
        %vm1109 = vcmp.eq.s32.totalorder %v1058, %v1029
        %vm1110 = vcmp.eq.s32.totalorder %v1058, %v1030
        %vm1111 = vcmp.eq.s32.totalorder %v1061, %v1027
        %vm1112 = vcmp.eq.s32.totalorder %v1061, %v1028
        %vm1113 = vcmp.eq.s32.totalorder %v1061, %v1029
        %vm1114 = vcmp.eq.s32.totalorder %v1061, %v1030
        %vm1115 = vcmp.eq.s32.totalorder %v1064, %v1027
        %vm1116 = vcmp.eq.s32.totalorder %v1064, %v1028
        %vm1117 = vcmp.eq.s32.totalorder %v1064, %v1029
        %vm1118 = vcmp.eq.s32.totalorder %v1064, %v1030
        %vm1119 = vcmp.eq.s32.totalorder %v1067, %v1027
        %vm1120 = vcmp.eq.s32.totalorder %v1067, %v1028
        %vm1121 = vcmp.eq.s32.totalorder %v1067, %v1029
        %vm1122 = vcmp.eq.s32.totalorder %v1067, %v1030
        %vm1123 = vcmp.eq.s32.totalorder %v1070, %v1027
        %vm1124 = vcmp.eq.s32.totalorder %v1070, %v1028
        %vm1125 = vcmp.eq.s32.totalorder %v1070, %v1029
        %vm1126 = vcmp.eq.s32.totalorder %v1070, %v1030
        %vm1127 = vcmp.eq.s32.totalorder %v1073, %v1027
        %vm1128 = vcmp.eq.s32.totalorder %v1073, %v1028
        %vm1129 = vcmp.eq.s32.totalorder %v1073, %v1029
        %vm1130 = vcmp.eq.s32.totalorder %v1073, %v1030
        %vm1131 = vcmp.eq.s32.totalorder %v1076, %v1027
        %vm1132 = vcmp.eq.s32.totalorder %v1076, %v1028
        %vm1133 = vcmp.eq.s32.totalorder %v1076, %v1029
        %vm1134 = vcmp.eq.s32.totalorder %v1076, %v1030
        %vm1135 = vcmp.eq.s32.totalorder %v1079, %v1027
        %vm1136 = vcmp.eq.s32.totalorder %v1079, %v1028
        %vm1137 = vcmp.eq.s32.totalorder %v1079, %v1029
        %vm1138 = vcmp.eq.s32.totalorder %v1079, %v1030
        %vm1139 = vcmp.eq.s32.totalorder %v1082, %v1027
        %vm1140 = vcmp.eq.s32.totalorder %v1082, %v1028
        %vm1141 = vcmp.eq.s32.totalorder %v1082, %v1029
        %vm1142 = vcmp.eq.s32.totalorder %v1082, %v1030
        %vm1143 = vcmp.eq.s32.totalorder %v1085, %v1027
        %vm1144 = vcmp.eq.s32.totalorder %v1085, %v1028
        %vm1145 = vcmp.eq.s32.totalorder %v1085, %v1029
        %vm1146 = vcmp.eq.s32.totalorder %v1085, %v1030
        %vm1147 = vcmp.eq.s32.totalorder %v1088, %v1027
        %vm1148 = vcmp.eq.s32.totalorder %v1088, %v1028
        %vm1149 = vcmp.eq.s32.totalorder %v1088, %v1029
        %vm1150 = vcmp.eq.s32.totalorder %v1088, %v1030
        %vm1151 = vcmp.eq.s32.totalorder %v1091, %v1027
        %vm1152 = vcmp.eq.s32.totalorder %v1091, %v1028
        %vm1153 = vcmp.eq.s32.totalorder %v1091, %v1029
        %vm1154 = vcmp.eq.s32.totalorder %v1091, %v1030
        %vm1155 = vcmp.eq.s32.totalorder %v1094, %v1027
        %vm1156 = vcmp.eq.s32.totalorder %v1094, %v1028
        %vm1157 = vcmp.eq.s32.totalorder %v1094, %v1029
        %vm1158 = vcmp.eq.s32.totalorder %v1094, %v1030
        %v1159 = vsel %vm1095, %v685, 0.0
        %v1160 = vsel %vm1096, %v687, 0.0
        %v1161 = vsel %vm1097, %v846, 0.0
        %v1162 = vsel %vm1098, %v848, 0.0
        %v1163 = vsel %vm1099, %v691, 0.0
        %v1164 = vsel %vm1100, %v693, 0.0
        %v1165 = vsel %vm1101, %v852, 0.0
        %v1166 = vsel %vm1102, %v854, 0.0
        %v1167 = vsel %vm1103, %v697, 0.0
        %v1168 = vsel %vm1104, %v699, 0.0
        %v1169 = vsel %vm1105, %v858, 0.0
        %v1170 = vsel %vm1106, %v860, 0.0
        %v1171 = vsel %vm1107, %v703, 0.0
        %v1172 = vsel %vm1108, %v705, 0.0
        %v1173 = vsel %vm1109, %v864, 0.0
        %v1174 = vsel %vm1110, %v866, 0.0
        %v1175 = vsel %vm1111, %v709, 0.0
        %v1176 = vsel %vm1112, %v711, 0.0
        %v1177 = vsel %vm1113, %v870, 0.0
        %v1178 = vsel %vm1114, %v872, 0.0
        %v1179 = vsel %vm1115, %v715, 0.0
        %v1180 = vsel %vm1116, %v717, 0.0
        %v1181 = vsel %vm1117, %v876, 0.0
        %v1182 = vsel %vm1118, %v878, 0.0
        %v1183 = vsel %vm1119, %v721, 0.0
        %v1184 = vsel %vm1120, %v723, 0.0
        %v1185 = vsel %vm1121, %v882, 0.0
        %v1186 = vsel %vm1122, %v884, 0.0
        %v1187 = vsel %vm1123, %v727, 0.0
        %v1188 = vsel %vm1124, %v729, 0.0
        %v1189 = vsel %vm1125, %v888, 0.0
        %v1190 = vsel %vm1126, %v890, 0.0
        %v1191 = vsel %vm1127, %v733, 0.0
        %v1192 = vsel %vm1128, %v735, 0.0
        %v1193 = vsel %vm1129, %v894, 0.0
        %v1194 = vsel %vm1130, %v896, 0.0
        %v1195 = vsel %vm1131, %v739, 0.0
        %v1196 = vsel %vm1132, %v741, 0.0
        %v1197 = vsel %vm1133, %v900, 0.0
        %v1198 = vsel %vm1134, %v902, 0.0
        %v1199 = vsel %vm1135, %v745, 0.0
        %v1200 = vsel %vm1136, %v747, 0.0
        %v1201 = vsel %vm1137, %v906, 0.0
        %v1202 = vsel %vm1138, %v908, 0.0
        %v1203 = vsel %vm1139, %v751, 0.0
        %v1204 = vsel %vm1140, %v753, 0.0
        %v1205 = vsel %vm1141, %v912, 0.0
        %v1206 = vsel %vm1142, %v914, 0.0
        %v1207 = vsel %vm1143, %v757, 0.0
        %v1208 = vsel %vm1144, %v759, 0.0
        %v1209 = vsel %vm1145, %v918, 0.0
        %v1210 = vsel %vm1146, %v920, 0.0
        %v1211 = vsel %vm1147, %v763, 0.0
        %v1212 = vsel %vm1148, %v765, 0.0
        %v1213 = vsel %vm1149, %v924, 0.0
        %v1214 = vsel %vm1150, %v926, 0.0
        %v1215 = vsel %vm1151, %v769, 0.0
        %v1216 = vsel %vm1152, %v771, 0.0
        %v1217 = vsel %vm1153, %v930, 0.0
        %v1218 = vsel %vm1154, %v932, 0.0
        %v1219 = vsel %vm1155, %v775, 0.0
        %v1220 = vsel %vm1156, %v777, 0.0
        %v1221 = vsel %vm1157, %v936, 0.0
        %v1222 = vsel %vm1158, %v938, 0.0
        %v1223 = vadd.f32 %v1159, %v1160
        %v1224 = vadd.f32 %v1223, %v1161
        %v1225 = vadd.f32 %v1224, %v1162
        %1226 = vadd.xlane.f32.xlu0 %v1225
        %v1227 = vpop.xlane.xlu0 %1226
        %v1228 = vadd.f32 %v1163, %v1164
        %v1229 = vadd.f32 %v1228, %v1165
        %v1230 = vadd.f32 %v1229, %v1166
        %1231 = vadd.xlane.f32.xlu0 %v1230
        %v1232 = vpop.xlane.xlu0 %1231
        %v1233 = vadd.f32 %v1167, %v1168
        %v1234 = vadd.f32 %v1233, %v1169
        %v1235 = vadd.f32 %v1234, %v1170
        %1236 = vadd.xlane.f32.xlu0 %v1235
        %v1237 = vpop.xlane.xlu0 %1236
        %v1238 = vadd.f32 %v1171, %v1172
        %v1239 = vadd.f32 %v1238, %v1173
        %v1240 = vadd.f32 %v1239, %v1174
        %1241 = vadd.xlane.f32.xlu0 %v1240
        %v1242 = vpop.xlane.xlu0 %1241
        %v1243 = vadd.f32 %v1175, %v1176
        %v1244 = vadd.f32 %v1243, %v1177
        %v1245 = vadd.f32 %v1244, %v1178
        %1246 = vadd.xlane.f32.xlu0 %v1245
        %v1247 = vpop.xlane.xlu0 %1246
        %v1248 = vadd.f32 %v1179, %v1180
        %v1249 = vadd.f32 %v1248, %v1181
        %v1250 = vadd.f32 %v1249, %v1182
        %1251 = vadd.xlane.f32.xlu0 %v1250
        %v1252 = vpop.xlane.xlu0 %1251
        %v1253 = vadd.f32 %v1183, %v1184
        %v1254 = vadd.f32 %v1253, %v1185
        %v1255 = vadd.f32 %v1254, %v1186
        %1256 = vadd.xlane.f32.xlu0 %v1255
        %v1257 = vpop.xlane.xlu0 %1256
        %v1258 = vadd.f32 %v1187, %v1188
        %v1259 = vadd.f32 %v1258, %v1189
        %v1260 = vadd.f32 %v1259, %v1190
        %1261 = vadd.xlane.f32.xlu0 %v1260
        %v1262 = vpop.xlane.xlu0 %1261
        %v1263 = vadd.f32 %v1191, %v1192
        %v1264 = vadd.f32 %v1263, %v1193
        %v1265 = vadd.f32 %v1264, %v1194
        %1266 = vadd.xlane.f32.xlu0 %v1265
        %v1267 = vpop.xlane.xlu0 %1266
        %v1268 = vadd.f32 %v1195, %v1196
        %v1269 = vadd.f32 %v1268, %v1197
        %v1270 = vadd.f32 %v1269, %v1198
        %1271 = vadd.xlane.f32.xlu0 %v1270
        %v1272 = vpop.xlane.xlu0 %1271
        %v1273 = vadd.f32 %v1199, %v1200
        %v1274 = vadd.f32 %v1273, %v1201
        %v1275 = vadd.f32 %v1274, %v1202
        %1276 = vadd.xlane.f32.xlu0 %v1275
        %v1277 = vpop.xlane.xlu0 %1276
        %v1278 = vadd.f32 %v1203, %v1204
        %v1279 = vadd.f32 %v1278, %v1205
        %v1280 = vadd.f32 %v1279, %v1206
        %1281 = vadd.xlane.f32.xlu0 %v1280
        %v1282 = vpop.xlane.xlu0 %1281
        %v1283 = vadd.f32 %v1207, %v1208
        %v1284 = vadd.f32 %v1283, %v1209
        %v1285 = vadd.f32 %v1284, %v1210
        %1286 = vadd.xlane.f32.xlu0 %v1285
        %v1287 = vpop.xlane.xlu0 %1286
        %v1288 = vadd.f32 %v1211, %v1212
        %v1289 = vadd.f32 %v1288, %v1213
        %v1290 = vadd.f32 %v1289, %v1214
        %1291 = vadd.xlane.f32.xlu0 %v1290
        %v1292 = vpop.xlane.xlu0 %1291
        %v1293 = vadd.f32 %v1215, %v1216
        %v1294 = vadd.f32 %v1293, %v1217
        %v1295 = vadd.f32 %v1294, %v1218
        %1296 = vadd.xlane.f32.xlu0 %v1295
        %v1297 = vpop.xlane.xlu0 %1296
        %v1298 = vadd.f32 %v1219, %v1220
        %v1299 = vadd.f32 %v1298, %v1221
        %v1300 = vadd.f32 %v1299, %v1222
        %1301 = vadd.xlane.f32.xlu0 %v1300
        %v1302 = vpop.xlane.xlu0 %1301
        %v1303 = vadd.f32 %v1031, %v1227
        %v1304 = vadd.f32 %v1032, %v1232
        %v1305 = vadd.f32 %v1033, %v1237
        %v1306 = vadd.f32 %v1034, %v1242
        %v1307 = vadd.f32 %v1035, %v1247
        %v1308 = vadd.f32 %v1036, %v1252
        %v1309 = vadd.f32 %v1037, %v1257
        %v1310 = vadd.f32 %v1038, %v1262
        %v1311 = vadd.f32 %v1039, %v1267
        %v1312 = vadd.f32 %v1040, %v1272
        %v1313 = vadd.f32 %v1041, %v1277
        %v1314 = vadd.f32 %v1042, %v1282
        %v1315 = vadd.f32 %v1043, %v1287
        %v1316 = vadd.f32 %v1044, %v1292
        %v1317 = vadd.f32 %v1045, %v1297
        %v1318 = vadd.f32 %v1046, %v1302
        %vm1319 = vcmask 7168
        %1320 = vst.msk [vmem:[#allocation4] sm:$0xff] %vm1319, %v1303
        %1321 = vst.msk [vmem:[#allocation4 + $0x8] sm:$0xff] %vm1319, %v1304
        %1322 = vst.msk [vmem:[#allocation4 + $0x10] sm:$0xff] %vm1319, %v1305
        %1323 = vst.msk [vmem:[#allocation4 + $0x18] sm:$0xff] %vm1319, %v1306
        %1324 = vst.msk [vmem:[#allocation4 + $0x20] sm:$0xff] %vm1319, %v1307
        %1325 = vst.msk [vmem:[#allocation4 + $0x28] sm:$0xff] %vm1319, %v1308
        %1326 = vst.msk [vmem:[#allocation4 + $0x30] sm:$0xff] %vm1319, %v1309
        %1327 = vst.msk [vmem:[#allocation4 + $0x38] sm:$0xff] %vm1319, %v1310
        %1328 = vst.msk [vmem:[#allocation4 + $0x40] sm:$0xff] %vm1319, %v1311
        %1329 = vst.msk [vmem:[#allocation4 + $0x48] sm:$0xff] %vm1319, %v1312
        %1330 = vst.msk [vmem:[#allocation4 + $0x50] sm:$0xff] %vm1319, %v1313
        %1331 = vst.msk [vmem:[#allocation4 + $0x58] sm:$0xff] %vm1319, %v1314
        %1332 = vst.msk [vmem:[#allocation4 + $0x60] sm:$0xff] %vm1319, %v1315
        %1333 = vst.msk [vmem:[#allocation4 + $0x68] sm:$0xff] %vm1319, %v1316
        %1334 = vst.msk [vmem:[#allocation4 + $0x70] sm:$0xff] %vm1319, %v1317
        %1335 = vst.msk [vmem:[#allocation4 + $0x78] sm:$0xff] %vm1319, %v1318
        %v1336 = vld [vmem:[#allocation2] sm:$0xff]
        %v1337 = vld [vmem:[#allocation2 + $0x8] sm:$0xff]
        %v1338 = vld [vmem:[#allocation2 + $0x10] sm:$0xff]
        %v1339 = vld [vmem:[#allocation2 + $0x18] sm:$0xff]
        %v1340 = vld [vmem:[#allocation2 + $0x20] sm:$0xff]
        %v1341 = vld [vmem:[#allocation2 + $0x28] sm:$0xff]
        %v1342 = vld [vmem:[#allocation2 + $0x30] sm:$0xff]
        %v1343 = vld [vmem:[#allocation2 + $0x38] sm:$0xff]
        %v1344 = vld [vmem:[#allocation2 + $0x40] sm:$0xff]
        %v1345 = vld [vmem:[#allocation2 + $0x48] sm:$0xff]
        %v1346 = vld [vmem:[#allocation2 + $0x50] sm:$0xff]
        %v1347 = vld [vmem:[#allocation2 + $0x58] sm:$0xff]
        %v1348 = vld [vmem:[#allocation2 + $0x60] sm:$0xff]
        %v1349 = vld [vmem:[#allocation2 + $0x68] sm:$0xff]
        %v1350 = vld [vmem:[#allocation2 + $0x70] sm:$0xff]
        %v1351 = vld [vmem:[#allocation2 + $0x78] sm:$0xff]
        %v1352 = vmax.f32 %v685, %v687
        %v1353 = vmax.f32 %v1352, %v846
        %v1354 = vmax.f32 %v1353, %v848
        %1355 = vmax.xlane.f32.xlu0 %v1354
        %v1356 = vpop.xlane.xlu0 %1355
        %v1357 = vmax.f32 %v691, %v693
        %v1358 = vmax.f32 %v1357, %v852
        %v1359 = vmax.f32 %v1358, %v854
        %1360 = vmax.xlane.f32.xlu0 %v1359
        %v1361 = vpop.xlane.xlu0 %1360
        %v1362 = vmax.f32 %v697, %v699
        %v1363 = vmax.f32 %v1362, %v858
        %v1364 = vmax.f32 %v1363, %v860
        %1365 = vmax.xlane.f32.xlu0 %v1364
        %v1366 = vpop.xlane.xlu0 %1365
        %v1367 = vmax.f32 %v703, %v705
        %v1368 = vmax.f32 %v1367, %v864
        %v1369 = vmax.f32 %v1368, %v866
        %1370 = vmax.xlane.f32.xlu0 %v1369
        %v1371 = vpop.xlane.xlu0 %1370
        %v1372 = vmax.f32 %v709, %v711
        %v1373 = vmax.f32 %v1372, %v870
        %v1374 = vmax.f32 %v1373, %v872
        %1375 = vmax.xlane.f32.xlu0 %v1374
        %v1376 = vpop.xlane.xlu0 %1375
        %v1377 = vmax.f32 %v715, %v717
        %v1378 = vmax.f32 %v1377, %v876
        %v1379 = vmax.f32 %v1378, %v878
        %1380 = vmax.xlane.f32.xlu0 %v1379
        %v1381 = vpop.xlane.xlu0 %1380
        %v1382 = vmax.f32 %v721, %v723
        %v1383 = vmax.f32 %v1382, %v882
        %v1384 = vmax.f32 %v1383, %v884
        %1385 = vmax.xlane.f32.xlu0 %v1384
        %v1386 = vpop.xlane.xlu0 %1385
        %v1387 = vmax.f32 %v727, %v729
        %v1388 = vmax.f32 %v1387, %v888
        %v1389 = vmax.f32 %v1388, %v890
        %1390 = vmax.xlane.f32.xlu0 %v1389
        %v1391 = vpop.xlane.xlu0 %1390
        %v1392 = vmax.f32 %v733, %v735
        %v1393 = vmax.f32 %v1392, %v894
        %v1394 = vmax.f32 %v1393, %v896
        %1395 = vmax.xlane.f32.xlu0 %v1394
        %v1396 = vpop.xlane.xlu0 %1395
        %v1397 = vmax.f32 %v739, %v741
        %v1398 = vmax.f32 %v1397, %v900
        %v1399 = vmax.f32 %v1398, %v902
        %1400 = vmax.xlane.f32.xlu0 %v1399
        %v1401 = vpop.xlane.xlu0 %1400
        %v1402 = vmax.f32 %v745, %v747
        %v1403 = vmax.f32 %v1402, %v906
        %v1404 = vmax.f32 %v1403, %v908
        %1405 = vmax.xlane.f32.xlu0 %v1404
        %v1406 = vpop.xlane.xlu0 %1405
        %v1407 = vmax.f32 %v751, %v753
        %v1408 = vmax.f32 %v1407, %v912
        %v1409 = vmax.f32 %v1408, %v914
        %1410 = vmax.xlane.f32.xlu0 %v1409
        %v1411 = vpop.xlane.xlu0 %1410
        %v1412 = vmax.f32 %v757, %v759
        %v1413 = vmax.f32 %v1412, %v918
        %v1414 = vmax.f32 %v1413, %v920
        %1415 = vmax.xlane.f32.xlu0 %v1414
        %v1416 = vpop.xlane.xlu0 %1415
        %v1417 = vmax.f32 %v763, %v765
        %v1418 = vmax.f32 %v1417, %v924
        %v1419 = vmax.f32 %v1418, %v926
        %1420 = vmax.xlane.f32.xlu0 %v1419
        %v1421 = vpop.xlane.xlu0 %1420
        %v1422 = vmax.f32 %v769, %v771
        %v1423 = vmax.f32 %v1422, %v930
        %v1424 = vmax.f32 %v1423, %v932
        %1425 = vmax.xlane.f32.xlu0 %v1424
        %v1426 = vpop.xlane.xlu0 %1425
        %v1427 = vmax.f32 %v775, %v777
        %v1428 = vmax.f32 %v1427, %v936
        %v1429 = vmax.f32 %v1428, %v938
        %1430 = vmax.xlane.f32.xlu0 %v1429
        %v1431 = vpop.xlane.xlu0 %1430
        %v1432 = vmax.f32 %v1336, %v1356
        %v1433 = vmax.f32 %v1337, %v1361
        %v1434 = vmax.f32 %v1338, %v1366
        %v1435 = vmax.f32 %v1339, %v1371
        %v1436 = vmax.f32 %v1340, %v1376
        %v1437 = vmax.f32 %v1341, %v1381
        %v1438 = vmax.f32 %v1342, %v1386
        %v1439 = vmax.f32 %v1343, %v1391
        %v1440 = vmax.f32 %v1344, %v1396
        %v1441 = vmax.f32 %v1345, %v1401
        %v1442 = vmax.f32 %v1346, %v1406
        %v1443 = vmax.f32 %v1347, %v1411
        %v1444 = vmax.f32 %v1348, %v1416
        %v1445 = vmax.f32 %v1349, %v1421
        %v1446 = vmax.f32 %v1350, %v1426
        %v1447 = vmax.f32 %v1351, %v1431
        %v1448 = vld [vmem:[#allocation3] sm:$0xff]
        %v1449 = vld [vmem:[#allocation3 + $0x8] sm:$0xff]
        %v1450 = vld [vmem:[#allocation3 + $0x10] sm:$0xff]
        %v1451 = vld [vmem:[#allocation3 + $0x18] sm:$0xff]
        %v1452 = vld [vmem:[#allocation3 + $0x20] sm:$0xff]
        %v1453 = vld [vmem:[#allocation3 + $0x28] sm:$0xff]
        %v1454 = vld [vmem:[#allocation3 + $0x30] sm:$0xff]
        %v1455 = vld [vmem:[#allocation3 + $0x38] sm:$0xff]
        %v1456 = vld [vmem:[#allocation3 + $0x40] sm:$0xff]
        %v1457 = vld [vmem:[#allocation3 + $0x48] sm:$0xff]
        %v1458 = vld [vmem:[#allocation3 + $0x50] sm:$0xff]
        %v1459 = vld [vmem:[#allocation3 + $0x58] sm:$0xff]
        %v1460 = vld [vmem:[#allocation3 + $0x60] sm:$0xff]
        %v1461 = vld [vmem:[#allocation3 + $0x68] sm:$0xff]
        %v1462 = vld [vmem:[#allocation3 + $0x70] sm:$0xff]
        %v1463 = vld [vmem:[#allocation3 + $0x78] sm:$0xff]
        %v1464 = vsub.f32 %v1336, %v1432
        %v1465 = vsub.f32 %v1337, %v1433
        %v1466 = vsub.f32 %v1338, %v1434
        %v1467 = vsub.f32 %v1339, %v1435
        %v1468 = vsub.f32 %v1340, %v1436
        %v1469 = vsub.f32 %v1341, %v1437
        %v1470 = vsub.f32 %v1342, %v1438
        %v1471 = vsub.f32 %v1343, %v1439
        %v1472 = vsub.f32 %v1344, %v1440
        %v1473 = vsub.f32 %v1345, %v1441
        %v1474 = vsub.f32 %v1346, %v1442
        %v1475 = vsub.f32 %v1347, %v1443
        %v1476 = vsub.f32 %v1348, %v1444
        %v1477 = vsub.f32 %v1349, %v1445
        %v1478 = vsub.f32 %v1350, %v1446
        %v1479 = vsub.f32 %v1351, %v1447
        %v1480 = vmul.f32 %v1464, 1.442695
        %v1481 = vpow.pop %v1480
        %v1482 = vmul.f32 %v1465, 1.442695
        %v1483 = vpow.pop %v1482
        %v1484 = vmul.f32 %v1466, 1.442695
        %v1485 = vpow.pop %v1484
        %v1486 = vmul.f32 %v1467, 1.442695
        %v1487 = vpow.pop %v1486
        %v1488 = vmul.f32 %v1468, 1.442695
        %v1489 = vpow.pop %v1488
        %v1490 = vmul.f32 %v1469, 1.442695
        %v1491 = vpow.pop %v1490
        %v1492 = vmul.f32 %v1470, 1.442695
        %v1493 = vpow.pop %v1492
        %v1494 = vmul.f32 %v1471, 1.442695
        %v1495 = vpow.pop %v1494
        %v1496 = vmul.f32 %v1472, 1.442695
        %v1497 = vpow.pop %v1496
        %v1498 = vmul.f32 %v1473, 1.442695
        %v1499 = vpow.pop %v1498
        %v1500 = vmul.f32 %v1474, 1.442695
        %v1501 = vpow.pop %v1500
        %v1502 = vmul.f32 %v1475, 1.442695
        %v1503 = vpow.pop %v1502
        %v1504 = vmul.f32 %v1476, 1.442695
        %v1505 = vpow.pop %v1504
        %v1506 = vmul.f32 %v1477, 1.442695
        %v1507 = vpow.pop %v1506
        %v1508 = vmul.f32 %v1478, 1.442695
        %v1509 = vpow.pop %v1508
        %v1510 = vmul.f32 %v1479, 1.442695
        %v1511 = vpow.pop %v1510
        %v1512 = vmul.f32 %v1448, %v1481
        %v1513 = vmul.f32 %v1449, %v1483
        %v1514 = vmul.f32 %v1450, %v1485
        %v1515 = vmul.f32 %v1451, %v1487
        %v1516 = vmul.f32 %v1452, %v1489
        %v1517 = vmul.f32 %v1453, %v1491
        %v1518 = vmul.f32 %v1454, %v1493
        %v1519 = vmul.f32 %v1455, %v1495
        %v1520 = vmul.f32 %v1456, %v1497
        %v1521 = vmul.f32 %v1457, %v1499
        %v1522 = vmul.f32 %v1458, %v1501
        %v1523 = vmul.f32 %v1459, %v1503
        %v1524 = vmul.f32 %v1460, %v1505
        %v1525 = vmul.f32 %v1461, %v1507
        %v1526 = vmul.f32 %v1462, %v1509
        %v1527 = vmul.f32 %v1463, %v1511
        %1529 = vset.pattern.permute.xlu0 0
        %1530 = vperm.xlu0 %1529, %v1432
        %v1531 = vpop.permute.xlu0 %1530
        %1534 = vset.pattern.permute.xlu0 0
        %1535 = vperm.xlu0 %1534, %v1433
        %v1536 = vpop.permute.xlu0 %1535
        %1539 = vset.pattern.permute.xlu0 0
        %1540 = vperm.xlu0 %1539, %v1434
        %v1541 = vpop.permute.xlu0 %1540
        %1544 = vset.pattern.permute.xlu0 0
        %1545 = vperm.xlu0 %1544, %v1435
        %v1546 = vpop.permute.xlu0 %1545
        %1549 = vset.pattern.permute.xlu0 0
        %1550 = vperm.xlu0 %1549, %v1436
        %v1551 = vpop.permute.xlu0 %1550
        %1554 = vset.pattern.permute.xlu0 0
        %1555 = vperm.xlu0 %1554, %v1437
        %v1556 = vpop.permute.xlu0 %1555
        %1559 = vset.pattern.permute.xlu0 0
        %1560 = vperm.xlu0 %1559, %v1438
        %v1561 = vpop.permute.xlu0 %1560
        %1564 = vset.pattern.permute.xlu0 0
        %1565 = vperm.xlu0 %1564, %v1439
        %v1566 = vpop.permute.xlu0 %1565
        %1569 = vset.pattern.permute.xlu0 0
        %1570 = vperm.xlu0 %1569, %v1440
        %v1571 = vpop.permute.xlu0 %1570
        %1574 = vset.pattern.permute.xlu0 0
        %1575 = vperm.xlu0 %1574, %v1441
        %v1576 = vpop.permute.xlu0 %1575
        %1579 = vset.pattern.permute.xlu0 0
        %1580 = vperm.xlu0 %1579, %v1442
        %v1581 = vpop.permute.xlu0 %1580
        %1584 = vset.pattern.permute.xlu0 0
        %1585 = vperm.xlu0 %1584, %v1443
        %v1586 = vpop.permute.xlu0 %1585
        %1589 = vset.pattern.permute.xlu0 0
        %1590 = vperm.xlu0 %1589, %v1444
        %v1591 = vpop.permute.xlu0 %1590
        %1594 = vset.pattern.permute.xlu0 0
        %1595 = vperm.xlu0 %1594, %v1445
        %v1596 = vpop.permute.xlu0 %1595
        %1599 = vset.pattern.permute.xlu0 0
        %1600 = vperm.xlu0 %1599, %v1446
        %v1601 = vpop.permute.xlu0 %1600
        %1604 = vset.pattern.permute.xlu0 0
        %1605 = vperm.xlu0 %1604, %v1447
        %v1606 = vpop.permute.xlu0 %1605
        %v1608 = vsub.f32 %v685, %v1531
        %v1609 = vsub.f32 %v687, %v1531
        %v1610 = vsub.f32 %v846, %v1531
        %v1611 = vsub.f32 %v848, %v1531
        %v1612 = vsub.f32 %v691, %v1536
        %v1613 = vsub.f32 %v693, %v1536
        %v1614 = vsub.f32 %v852, %v1536
        %v1615 = vsub.f32 %v854, %v1536
        %v1616 = vsub.f32 %v697, %v1541
        %v1617 = vsub.f32 %v699, %v1541
        %v1618 = vsub.f32 %v858, %v1541
        %v1619 = vsub.f32 %v860, %v1541
        %v1620 = vsub.f32 %v703, %v1546
        %v1621 = vsub.f32 %v705, %v1546
        %v1622 = vsub.f32 %v864, %v1546
        %v1623 = vsub.f32 %v866, %v1546
        %v1624 = vsub.f32 %v709, %v1551
        %v1625 = vsub.f32 %v711, %v1551
        %v1626 = vsub.f32 %v870, %v1551
        %v1627 = vsub.f32 %v872, %v1551
        %v1628 = vsub.f32 %v715, %v1556
        %v1629 = vsub.f32 %v717, %v1556
        %v1630 = vsub.f32 %v876, %v1556
        %v1631 = vsub.f32 %v878, %v1556
        %v1632 = vsub.f32 %v721, %v1561
        %v1633 = vsub.f32 %v723, %v1561
        %v1634 = vsub.f32 %v882, %v1561
        %v1635 = vsub.f32 %v884, %v1561
        %v1636 = vsub.f32 %v727, %v1566
        %v1637 = vsub.f32 %v729, %v1566
        %v1638 = vsub.f32 %v888, %v1566
        %v1639 = vsub.f32 %v890, %v1566
        %v1640 = vsub.f32 %v733, %v1571
        %v1641 = vsub.f32 %v735, %v1571
        %v1642 = vsub.f32 %v894, %v1571
        %v1643 = vsub.f32 %v896, %v1571
        %v1644 = vsub.f32 %v739, %v1576
        %v1645 = vsub.f32 %v741, %v1576
        %v1646 = vsub.f32 %v900, %v1576
        %v1647 = vsub.f32 %v902, %v1576
        %v1648 = vsub.f32 %v745, %v1581
        %v1649 = vsub.f32 %v747, %v1581
        %v1650 = vsub.f32 %v906, %v1581
        %v1651 = vsub.f32 %v908, %v1581
        %v1652 = vsub.f32 %v751, %v1586
        %v1653 = vsub.f32 %v753, %v1586
        %v1654 = vsub.f32 %v912, %v1586
        %v1655 = vsub.f32 %v914, %v1586
        %v1656 = vsub.f32 %v757, %v1591
        %v1657 = vsub.f32 %v759, %v1591
        %v1658 = vsub.f32 %v918, %v1591
        %v1659 = vsub.f32 %v920, %v1591
        %v1660 = vsub.f32 %v763, %v1596
        %v1661 = vsub.f32 %v765, %v1596
        %v1662 = vsub.f32 %v924, %v1596
        %v1663 = vsub.f32 %v926, %v1596
        %v1664 = vsub.f32 %v769, %v1601
        %v1665 = vsub.f32 %v771, %v1601
        %v1666 = vsub.f32 %v930, %v1601
        %v1667 = vsub.f32 %v932, %v1601
        %v1668 = vsub.f32 %v775, %v1606
        %v1669 = vsub.f32 %v777, %v1606
        %v1670 = vsub.f32 %v936, %v1606
        %v1671 = vsub.f32 %v938, %v1606
        %v1672 = vmul.f32 %v1608, 1.442695
        %v1673 = vpow.pop %v1672
        %v1674 = vmul.f32 %v1609, 1.442695
        %v1675 = vpow.pop %v1674
        %v1676 = vmul.f32 %v1610, 1.442695
        %v1677 = vpow.pop %v1676
        %v1678 = vmul.f32 %v1611, 1.442695
        %v1679 = vpow.pop %v1678
        %v1680 = vmul.f32 %v1612, 1.442695
        %v1681 = vpow.pop %v1680
        %v1682 = vmul.f32 %v1613, 1.442695
        %v1683 = vpow.pop %v1682
        %v1684 = vmul.f32 %v1614, 1.442695
        %v1685 = vpow.pop %v1684
        %v1686 = vmul.f32 %v1615, 1.442695
        %v1687 = vpow.pop %v1686
        %v1688 = vmul.f32 %v1616, 1.442695
        %v1689 = vpow.pop %v1688
        %v1690 = vmul.f32 %v1617, 1.442695
        %v1691 = vpow.pop %v1690
        %v1692 = vmul.f32 %v1618, 1.442695
        %v1693 = vpow.pop %v1692
        %v1694 = vmul.f32 %v1619, 1.442695
        %v1695 = vpow.pop %v1694
        %v1696 = vmul.f32 %v1620, 1.442695
        %v1697 = vpow.pop %v1696
        %v1698 = vmul.f32 %v1621, 1.442695
        %v1699 = vpow.pop %v1698
        %v1700 = vmul.f32 %v1622, 1.442695
        %v1701 = vpow.pop %v1700
        %v1702 = vmul.f32 %v1623, 1.442695
        %v1703 = vpow.pop %v1702
        %v1704 = vmul.f32 %v1624, 1.442695
        %v1705 = vpow.pop %v1704
        %v1706 = vmul.f32 %v1625, 1.442695
        %v1707 = vpow.pop %v1706
        %v1708 = vmul.f32 %v1626, 1.442695
        %v1709 = vpow.pop %v1708
        %v1710 = vmul.f32 %v1627, 1.442695
        %v1711 = vpow.pop %v1710
        %v1712 = vmul.f32 %v1628, 1.442695
        %v1713 = vpow.pop %v1712
        %v1714 = vmul.f32 %v1629, 1.442695
        %v1715 = vpow.pop %v1714
        %v1716 = vmul.f32 %v1630, 1.442695
        %v1717 = vpow.pop %v1716
        %v1718 = vmul.f32 %v1631, 1.442695
        %v1719 = vpow.pop %v1718
        %v1720 = vmul.f32 %v1632, 1.442695
        %v1721 = vpow.pop %v1720
        %v1722 = vmul.f32 %v1633, 1.442695
        %v1723 = vpow.pop %v1722
        %v1724 = vmul.f32 %v1634, 1.442695
        %v1725 = vpow.pop %v1724
        %v1726 = vmul.f32 %v1635, 1.442695
        %v1727 = vpow.pop %v1726
        %v1728 = vmul.f32 %v1636, 1.442695
        %v1729 = vpow.pop %v1728
        %v1730 = vmul.f32 %v1637, 1.442695
        %v1731 = vpow.pop %v1730
        %v1732 = vmul.f32 %v1638, 1.442695
        %v1733 = vpow.pop %v1732
        %v1734 = vmul.f32 %v1639, 1.442695
        %v1735 = vpow.pop %v1734
        %v1736 = vmul.f32 %v1640, 1.442695
        %v1737 = vpow.pop %v1736
        %v1738 = vmul.f32 %v1641, 1.442695
        %v1739 = vpow.pop %v1738
        %v1740 = vmul.f32 %v1642, 1.442695
        %v1741 = vpow.pop %v1740
        %v1742 = vmul.f32 %v1643, 1.442695
        %v1743 = vpow.pop %v1742
        %v1744 = vmul.f32 %v1644, 1.442695
        %v1745 = vpow.pop %v1744
        %v1746 = vmul.f32 %v1645, 1.442695
        %v1747 = vpow.pop %v1746
        %v1748 = vmul.f32 %v1646, 1.442695
        %v1749 = vpow.pop %v1748
        %v1750 = vmul.f32 %v1647, 1.442695
        %v1751 = vpow.pop %v1750
        %v1752 = vmul.f32 %v1648, 1.442695
        %v1753 = vpow.pop %v1752
        %v1754 = vmul.f32 %v1649, 1.442695
        %v1755 = vpow.pop %v1754
        %v1756 = vmul.f32 %v1650, 1.442695
        %v1757 = vpow.pop %v1756
        %v1758 = vmul.f32 %v1651, 1.442695
        %v1759 = vpow.pop %v1758
        %v1760 = vmul.f32 %v1652, 1.442695
        %v1761 = vpow.pop %v1760
        %v1762 = vmul.f32 %v1653, 1.442695
        %v1763 = vpow.pop %v1762
        %v1764 = vmul.f32 %v1654, 1.442695
        %v1765 = vpow.pop %v1764
        %v1766 = vmul.f32 %v1655, 1.442695
        %v1767 = vpow.pop %v1766
        %v1768 = vmul.f32 %v1656, 1.442695
        %v1769 = vpow.pop %v1768
        %v1770 = vmul.f32 %v1657, 1.442695
        %v1771 = vpow.pop %v1770
        %v1772 = vmul.f32 %v1658, 1.442695
        %v1773 = vpow.pop %v1772
        %v1774 = vmul.f32 %v1659, 1.442695
        %v1775 = vpow.pop %v1774
        %v1776 = vmul.f32 %v1660, 1.442695
        %v1777 = vpow.pop %v1776
        %v1778 = vmul.f32 %v1661, 1.442695
        %v1779 = vpow.pop %v1778
        %v1780 = vmul.f32 %v1662, 1.442695
        %v1781 = vpow.pop %v1780
        %v1782 = vmul.f32 %v1663, 1.442695
        %v1783 = vpow.pop %v1782
        %v1784 = vmul.f32 %v1664, 1.442695
        %v1785 = vpow.pop %v1784
        %v1786 = vmul.f32 %v1665, 1.442695
        %v1787 = vpow.pop %v1786
        %v1788 = vmul.f32 %v1666, 1.442695
        %v1789 = vpow.pop %v1788
        %v1790 = vmul.f32 %v1667, 1.442695
        %v1791 = vpow.pop %v1790
        %v1792 = vmul.f32 %v1668, 1.442695
        %v1793 = vpow.pop %v1792
        %v1794 = vmul.f32 %v1669, 1.442695
        %v1795 = vpow.pop %v1794
        %v1796 = vmul.f32 %v1670, 1.442695
        %v1797 = vpow.pop %v1796
        %v1798 = vmul.f32 %v1671, 1.442695
        %v1799 = vpow.pop %v1798
        %v1800 = vadd.f32 %v1673, %v1675
        %v1801 = vadd.f32 %v1800, %v1677
        %v1802 = vadd.f32 %v1801, %v1679
        %1803 = vadd.xlane.f32.xlu0 %v1802
        %v1804 = vpop.xlane.xlu0 %1803
        %v1805 = vadd.f32 %v1681, %v1683
        %v1806 = vadd.f32 %v1805, %v1685
        %v1807 = vadd.f32 %v1806, %v1687
        %1808 = vadd.xlane.f32.xlu0 %v1807
        %v1809 = vpop.xlane.xlu0 %1808
        %v1810 = vadd.f32 %v1689, %v1691
        %v1811 = vadd.f32 %v1810, %v1693
        %v1812 = vadd.f32 %v1811, %v1695
        %1813 = vadd.xlane.f32.xlu0 %v1812
        %v1814 = vpop.xlane.xlu0 %1813
        %v1815 = vadd.f32 %v1697, %v1699
        %v1816 = vadd.f32 %v1815, %v1701
        %v1817 = vadd.f32 %v1816, %v1703
        %1818 = vadd.xlane.f32.xlu0 %v1817
        %v1819 = vpop.xlane.xlu0 %1818
        %v1820 = vadd.f32 %v1705, %v1707
        %v1821 = vadd.f32 %v1820, %v1709
        %v1822 = vadd.f32 %v1821, %v1711
        %1823 = vadd.xlane.f32.xlu0 %v1822
        %v1824 = vpop.xlane.xlu0 %1823
        %v1825 = vadd.f32 %v1713, %v1715
        %v1826 = vadd.f32 %v1825, %v1717
        %v1827 = vadd.f32 %v1826, %v1719
        %1828 = vadd.xlane.f32.xlu0 %v1827
        %v1829 = vpop.xlane.xlu0 %1828
        %v1830 = vadd.f32 %v1721, %v1723
        %v1831 = vadd.f32 %v1830, %v1725
        %v1832 = vadd.f32 %v1831, %v1727
        %1833 = vadd.xlane.f32.xlu0 %v1832
        %v1834 = vpop.xlane.xlu0 %1833
        %v1835 = vadd.f32 %v1729, %v1731
        %v1836 = vadd.f32 %v1835, %v1733
        %v1837 = vadd.f32 %v1836, %v1735
        %1838 = vadd.xlane.f32.xlu0 %v1837
        %v1839 = vpop.xlane.xlu0 %1838
        %v1840 = vadd.f32 %v1737, %v1739
        %v1841 = vadd.f32 %v1840, %v1741
        %v1842 = vadd.f32 %v1841, %v1743
        %1843 = vadd.xlane.f32.xlu0 %v1842
        %v1844 = vpop.xlane.xlu0 %1843
        %v1845 = vadd.f32 %v1745, %v1747
        %v1846 = vadd.f32 %v1845, %v1749
        %v1847 = vadd.f32 %v1846, %v1751
        %1848 = vadd.xlane.f32.xlu0 %v1847
        %v1849 = vpop.xlane.xlu0 %1848
        %v1850 = vadd.f32 %v1753, %v1755
        %v1851 = vadd.f32 %v1850, %v1757
        %v1852 = vadd.f32 %v1851, %v1759
        %1853 = vadd.xlane.f32.xlu0 %v1852
        %v1854 = vpop.xlane.xlu0 %1853
        %v1855 = vadd.f32 %v1761, %v1763
        %v1856 = vadd.f32 %v1855, %v1765
        %v1857 = vadd.f32 %v1856, %v1767
        %1858 = vadd.xlane.f32.xlu0 %v1857
        %v1859 = vpop.xlane.xlu0 %1858
        %v1860 = vadd.f32 %v1769, %v1771
        %v1861 = vadd.f32 %v1860, %v1773
        %v1862 = vadd.f32 %v1861, %v1775
        %1863 = vadd.xlane.f32.xlu0 %v1862
        %v1864 = vpop.xlane.xlu0 %1863
        %v1865 = vadd.f32 %v1777, %v1779
        %v1866 = vadd.f32 %v1865, %v1781
        %v1867 = vadd.f32 %v1866, %v1783
        %1868 = vadd.xlane.f32.xlu0 %v1867
        %v1869 = vpop.xlane.xlu0 %1868
        %v1870 = vadd.f32 %v1785, %v1787
        %v1871 = vadd.f32 %v1870, %v1789
        %v1872 = vadd.f32 %v1871, %v1791
        %1873 = vadd.xlane.f32.xlu0 %v1872
        %v1874 = vpop.xlane.xlu0 %1873
        %v1875 = vadd.f32 %v1793, %v1795
        %v1876 = vadd.f32 %v1875, %v1797
        %v1877 = vadd.f32 %v1876, %v1799
        %1878 = vadd.xlane.f32.xlu0 %v1877
        %v1879 = vpop.xlane.xlu0 %1878
        %v1880 = vadd.f32 %v1512, %v1804
        %v1881 = vadd.f32 %v1513, %v1809
        %v1882 = vadd.f32 %v1514, %v1814
        %v1883 = vadd.f32 %v1515, %v1819
        %v1884 = vadd.f32 %v1516, %v1824
        %v1885 = vadd.f32 %v1517, %v1829
        %v1886 = vadd.f32 %v1518, %v1834
        %v1887 = vadd.f32 %v1519, %v1839
        %v1888 = vadd.f32 %v1520, %v1844
        %v1889 = vadd.f32 %v1521, %v1849
        %v1890 = vadd.f32 %v1522, %v1854
        %v1891 = vadd.f32 %v1523, %v1859
        %v1892 = vadd.f32 %v1524, %v1864
        %v1893 = vadd.f32 %v1525, %v1869
        %v1894 = vadd.f32 %v1526, %v1874
        %v1895 = vadd.f32 %v1527, %v1879
        %1896 = vst.msk [vmem:[#allocation3] sm:$0xff] %vm1319, %v1880
        %1897 = vst.msk [vmem:[#allocation3 + $0x8] sm:$0xff] %vm1319, %v1881
        %1898 = vst.msk [vmem:[#allocation3 + $0x10] sm:$0xff] %vm1319, %v1882
        %1899 = vst.msk [vmem:[#allocation3 + $0x18] sm:$0xff] %vm1319, %v1883
        %1900 = vst.msk [vmem:[#allocation3 + $0x20] sm:$0xff] %vm1319, %v1884
        %1901 = vst.msk [vmem:[#allocation3 + $0x28] sm:$0xff] %vm1319, %v1885
        %1902 = vst.msk [vmem:[#allocation3 + $0x30] sm:$0xff] %vm1319, %v1886
        %1903 = vst.msk [vmem:[#allocation3 + $0x38] sm:$0xff] %vm1319, %v1887
        %1904 = vst.msk [vmem:[#allocation3 + $0x40] sm:$0xff] %vm1319, %v1888
        %1905 = vst.msk [vmem:[#allocation3 + $0x48] sm:$0xff] %vm1319, %v1889
        %1906 = vst.msk [vmem:[#allocation3 + $0x50] sm:$0xff] %vm1319, %v1890
        %1907 = vst.msk [vmem:[#allocation3 + $0x58] sm:$0xff] %vm1319, %v1891
        %1908 = vst.msk [vmem:[#allocation3 + $0x60] sm:$0xff] %vm1319, %v1892
        %1909 = vst.msk [vmem:[#allocation3 + $0x68] sm:$0xff] %vm1319, %v1893
        %1910 = vst.msk [vmem:[#allocation3 + $0x70] sm:$0xff] %vm1319, %v1894
        %1911 = vst.msk [vmem:[#allocation3 + $0x78] sm:$0xff] %vm1319, %v1895
        %1912 = vst.msk [vmem:[#allocation2] sm:$0xff] %vm1319, %v1432
        %1913 = vst.msk [vmem:[#allocation2 + $0x8] sm:$0xff] %vm1319, %v1433
        %1914 = vst.msk [vmem:[#allocation2 + $0x10] sm:$0xff] %vm1319, %v1434
        %1915 = vst.msk [vmem:[#allocation2 + $0x18] sm:$0xff] %vm1319, %v1435
        %1916 = vst.msk [vmem:[#allocation2 + $0x20] sm:$0xff] %vm1319, %v1436
        %1917 = vst.msk [vmem:[#allocation2 + $0x28] sm:$0xff] %vm1319, %v1437
        %1918 = vst.msk [vmem:[#allocation2 + $0x30] sm:$0xff] %vm1319, %v1438
        %1919 = vst.msk [vmem:[#allocation2 + $0x38] sm:$0xff] %vm1319, %v1439
        %1920 = vst.msk [vmem:[#allocation2 + $0x40] sm:$0xff] %vm1319, %v1440
        %1921 = vst.msk [vmem:[#allocation2 + $0x48] sm:$0xff] %vm1319, %v1441
        %1922 = vst.msk [vmem:[#allocation2 + $0x50] sm:$0xff] %vm1319, %v1442
        %1923 = vst.msk [vmem:[#allocation2 + $0x58] sm:$0xff] %vm1319, %v1443
        %1924 = vst.msk [vmem:[#allocation2 + $0x60] sm:$0xff] %vm1319, %v1444
        %1925 = vst.msk [vmem:[#allocation2 + $0x68] sm:$0xff] %vm1319, %v1445
        %1926 = vst.msk [vmem:[#allocation2 + $0x70] sm:$0xff] %vm1319, %v1446
        %1927 = vst.msk [vmem:[#allocation2 + $0x78] sm:$0xff] %vm1319, %v1447
        %p1928 = scmp.eq.s32.totalorder %s25, 1
        // Predicated region
        $region64: #{forward_packed_data.3} parent=54 // pred_check
          %p1929 = pneg %p1928
        $region65: #{forward_packed_data.3} parent=54 // pred_check_branch
          %1931 = sbr.rel (%p1929) target = $region67
        $region66: #{forward_packed_data.3} parent=54 // pred_region
          %v1932 = vld [vmem:[#allocation2] sm:$0xff]
          %v1933 = vld [vmem:[#allocation2 + $0x8] sm:$0xff]
          %v1934 = vld [vmem:[#allocation2 + $0x10] sm:$0xff]
          %v1935 = vld [vmem:[#allocation2 + $0x18] sm:$0xff]
          %v1936 = vld [vmem:[#allocation2 + $0x20] sm:$0xff]
          %v1937 = vld [vmem:[#allocation2 + $0x28] sm:$0xff]
          %v1938 = vld [vmem:[#allocation2 + $0x30] sm:$0xff]
          %v1939 = vld [vmem:[#allocation2 + $0x38] sm:$0xff]
          %v1940 = vld [vmem:[#allocation2 + $0x40] sm:$0xff]
          %v1941 = vld [vmem:[#allocation2 + $0x48] sm:$0xff]
          %v1942 = vld [vmem:[#allocation2 + $0x50] sm:$0xff]
          %v1943 = vld [vmem:[#allocation2 + $0x58] sm:$0xff]
          %v1944 = vld [vmem:[#allocation2 + $0x60] sm:$0xff]
          %v1945 = vld [vmem:[#allocation2 + $0x68] sm:$0xff]
          %v1946 = vld [vmem:[#allocation2 + $0x70] sm:$0xff]
          %v1947 = vld [vmem:[#allocation2 + $0x78] sm:$0xff]
          %v1948 = vld [vmem:[#allocation3] sm:$0xff]
          %v1949 = vld [vmem:[#allocation3 + $0x8] sm:$0xff]
          %v1950 = vld [vmem:[#allocation3 + $0x10] sm:$0xff]
          %v1951 = vld [vmem:[#allocation3 + $0x18] sm:$0xff]
          %v1952 = vld [vmem:[#allocation3 + $0x20] sm:$0xff]
          %v1953 = vld [vmem:[#allocation3 + $0x28] sm:$0xff]
          %v1954 = vld [vmem:[#allocation3 + $0x30] sm:$0xff]
          %v1955 = vld [vmem:[#allocation3 + $0x38] sm:$0xff]
          %v1956 = vld [vmem:[#allocation3 + $0x40] sm:$0xff]
          %v1957 = vld [vmem:[#allocation3 + $0x48] sm:$0xff]
          %v1958 = vld [vmem:[#allocation3 + $0x50] sm:$0xff]
          %v1959 = vld [vmem:[#allocation3 + $0x58] sm:$0xff]
          %v1960 = vld [vmem:[#allocation3 + $0x60] sm:$0xff]
          %v1961 = vld [vmem:[#allocation3 + $0x68] sm:$0xff]
          %v1962 = vld [vmem:[#allocation3 + $0x70] sm:$0xff]
          %v1963 = vld [vmem:[#allocation3 + $0x78] sm:$0xff]
          %v1964 = vlog2.pop %v1948
          %v1965 = vmul.f32 %v1964, 0.6931472
          %v1966 = vlog2.pop %v1949
          %v1967 = vmul.f32 %v1966, 0.6931472
          %v1968 = vlog2.pop %v1950
          %v1969 = vmul.f32 %v1968, 0.6931472
          %v1970 = vlog2.pop %v1951
          %v1971 = vmul.f32 %v1970, 0.6931472
          %v1972 = vlog2.pop %v1952
          %v1973 = vmul.f32 %v1972, 0.6931472
          %v1974 = vlog2.pop %v1953
          %v1975 = vmul.f32 %v1974, 0.6931472
          %v1976 = vlog2.pop %v1954
          %v1977 = vmul.f32 %v1976, 0.6931472
          %v1978 = vlog2.pop %v1955
          %v1979 = vmul.f32 %v1978, 0.6931472
          %v1980 = vlog2.pop %v1956
          %v1981 = vmul.f32 %v1980, 0.6931472
          %v1982 = vlog2.pop %v1957
          %v1983 = vmul.f32 %v1982, 0.6931472
          %v1984 = vlog2.pop %v1958
          %v1985 = vmul.f32 %v1984, 0.6931472
          %v1986 = vlog2.pop %v1959
          %v1987 = vmul.f32 %v1986, 0.6931472
          %v1988 = vlog2.pop %v1960
          %v1989 = vmul.f32 %v1988, 0.6931472
          %v1990 = vlog2.pop %v1961
          %v1991 = vmul.f32 %v1990, 0.6931472
          %v1992 = vlog2.pop %v1962
          %v1993 = vmul.f32 %v1992, 0.6931472
          %v1994 = vlog2.pop %v1963
          %v1995 = vmul.f32 %v1994, 0.6931472
          %v1996 = vadd.f32 %v1932, %v1965
          %v1997 = vadd.f32 %v1933, %v1967
          %v1998 = vadd.f32 %v1934, %v1969
          %v1999 = vadd.f32 %v1935, %v1971
          %v2000 = vadd.f32 %v1936, %v1973
          %v2001 = vadd.f32 %v1937, %v1975
          %v2002 = vadd.f32 %v1938, %v1977
          %v2003 = vadd.f32 %v1939, %v1979
          %v2004 = vadd.f32 %v1940, %v1981
          %v2005 = vadd.f32 %v1941, %v1983
          %v2006 = vadd.f32 %v1942, %v1985
          %v2007 = vadd.f32 %v1943, %v1987
          %v2008 = vadd.f32 %v1944, %v1989
          %v2009 = vadd.f32 %v1945, %v1991
          %v2010 = vadd.f32 %v1946, %v1993
          %v2011 = vadd.f32 %v1947, %v1995
          %vm2012 = vcmp.ge.s32.totalorder %v1004, 0
          %vm2013 = vcmp.ge.s32.totalorder %v1005, 0
          %vm2014 = vcmp.ge.s32.totalorder %v1006, 0
          %vm2015 = vcmp.ge.s32.totalorder %v1007, 0
          %vm2016 = vcmp.ge.s32.totalorder %v1008, 0
          %vm2017 = vcmp.ge.s32.totalorder %v1009, 0
          %vm2018 = vcmp.ge.s32.totalorder %v1010, 0
          %vm2019 = vcmp.ge.s32.totalorder %v1011, 0
          %vm2020 = vcmp.ge.s32.totalorder %v1012, 0
          %vm2021 = vcmp.ge.s32.totalorder %v1013, 0
          %vm2022 = vcmp.ge.s32.totalorder %v1014, 0
          %vm2023 = vcmp.ge.s32.totalorder %v1015, 0
          %vm2024 = vcmp.ge.s32.totalorder %v1016, 0
          %vm2025 = vcmp.ge.s32.totalorder %v1017, 0
          %vm2026 = vcmp.ge.s32.totalorder %v1018, 0
          %vm2027 = vcmp.ge.s32.totalorder %v1019, 0
          %vm2028 = vcmp.lt.s32.totalorder %v1004, 1024
          %vm2029 = vcmp.lt.s32.totalorder %v1005, 1024
          %vm2030 = vcmp.lt.s32.totalorder %v1006, 1024
          %vm2031 = vcmp.lt.s32.totalorder %v1007, 1024
          %vm2032 = vcmp.lt.s32.totalorder %v1008, 1024
          %vm2033 = vcmp.lt.s32.totalorder %v1009, 1024
          %vm2034 = vcmp.lt.s32.totalorder %v1010, 1024
          %vm2035 = vcmp.lt.s32.totalorder %v1011, 1024
          %vm2036 = vcmp.lt.s32.totalorder %v1012, 1024
          %vm2037 = vcmp.lt.s32.totalorder %v1013, 1024
          %vm2038 = vcmp.lt.s32.totalorder %v1014, 1024
          %vm2039 = vcmp.lt.s32.totalorder %v1015, 1024
          %vm2040 = vcmp.lt.s32.totalorder %v1016, 1024
          %vm2041 = vcmp.lt.s32.totalorder %v1017, 1024
          %vm2042 = vcmp.lt.s32.totalorder %v1018, 1024
          %vm2043 = vcmp.lt.s32.totalorder %v1019, 1024
          %vm2044 = vmand %vm2012, %vm2028
          %vm2045 = vmand %vm2013, %vm2029
          %vm2046 = vmand %vm2014, %vm2030
          %vm2047 = vmand %vm2015, %vm2031
          %vm2048 = vmand %vm2016, %vm2032
          %vm2049 = vmand %vm2017, %vm2033
          %vm2050 = vmand %vm2018, %vm2034
          %vm2051 = vmand %vm2019, %vm2035
          %vm2052 = vmand %vm2020, %vm2036
          %vm2053 = vmand %vm2021, %vm2037
          %vm2054 = vmand %vm2022, %vm2038
          %vm2055 = vmand %vm2023, %vm2039
          %vm2056 = vmand %vm2024, %vm2040
          %vm2057 = vmand %vm2025, %vm2041
          %vm2058 = vmand %vm2026, %vm2042
          %vm2059 = vmand %vm2027, %vm2043
          %v2060 = vld [vmem:[#allocation4] sm:$0xff]
          %v2061 = vld [vmem:[#allocation4 + $0x8] sm:$0xff]
          %v2062 = vld [vmem:[#allocation4 + $0x10] sm:$0xff]
          %v2063 = vld [vmem:[#allocation4 + $0x18] sm:$0xff]
          %v2064 = vld [vmem:[#allocation4 + $0x20] sm:$0xff]
          %v2065 = vld [vmem:[#allocation4 + $0x28] sm:$0xff]
          %v2066 = vld [vmem:[#allocation4 + $0x30] sm:$0xff]
          %v2067 = vld [vmem:[#allocation4 + $0x38] sm:$0xff]
          %v2068 = vld [vmem:[#allocation4 + $0x40] sm:$0xff]
          %v2069 = vld [vmem:[#allocation4 + $0x48] sm:$0xff]
          %v2070 = vld [vmem:[#allocation4 + $0x50] sm:$0xff]
          %v2071 = vld [vmem:[#allocation4 + $0x58] sm:$0xff]
          %v2072 = vld [vmem:[#allocation4 + $0x60] sm:$0xff]
          %v2073 = vld [vmem:[#allocation4 + $0x68] sm:$0xff]
          %v2074 = vld [vmem:[#allocation4 + $0x70] sm:$0xff]
          %v2075 = vld [vmem:[#allocation4 + $0x78] sm:$0xff]
          %v2076 = vsub.f32 %v1996, %v2060
          %v2077 = vsub.f32 %v1997, %v2061
          %v2078 = vsub.f32 %v1998, %v2062
          %v2079 = vsub.f32 %v1999, %v2063
          %v2080 = vsub.f32 %v2000, %v2064
          %v2081 = vsub.f32 %v2001, %v2065
          %v2082 = vsub.f32 %v2002, %v2066
          %v2083 = vsub.f32 %v2003, %v2067
          %v2084 = vsub.f32 %v2004, %v2068
          %v2085 = vsub.f32 %v2005, %v2069
          %v2086 = vsub.f32 %v2006, %v2070
          %v2087 = vsub.f32 %v2007, %v2071
          %v2088 = vsub.f32 %v2008, %v2072
          %v2089 = vsub.f32 %v2009, %v2073
          %v2090 = vsub.f32 %v2010, %v2074
          %v2091 = vsub.f32 %v2011, %v2075
          %v2092 = vsel %vm2044, %v2076, 0.0
          %v2093 = vsel %vm2045, %v2077, 0.0
          %v2094 = vsel %vm2046, %v2078, 0.0
          %v2095 = vsel %vm2047, %v2079, 0.0
          %v2096 = vsel %vm2048, %v2080, 0.0
          %v2097 = vsel %vm2049, %v2081, 0.0
          %v2098 = vsel %vm2050, %v2082, 0.0
          %v2099 = vsel %vm2051, %v2083, 0.0
          %v2100 = vsel %vm2052, %v2084, 0.0
          %v2101 = vsel %vm2053, %v2085, 0.0
          %v2102 = vsel %vm2054, %v2086, 0.0
          %v2103 = vsel %vm2055, %v2087, 0.0
          %v2104 = vsel %vm2056, %v2088, 0.0
          %v2105 = vsel %vm2057, %v2089, 0.0
          %v2106 = vsel %vm2058, %v2090, 0.0
          %v2107 = vsel %vm2059, %v2091, 0.0
          %2108 = vst.msk [vmem:[%s461] sm:$0xff] %vm1319, %v2092
          %2109 = vst.msk [vmem:[%s461 + $0x8] sm:$0xff] %vm1319, %v2093
          %2110 = vst.msk [vmem:[%s461 + $0x10] sm:$0xff] %vm1319, %v2094
          %2111 = vst.msk [vmem:[%s461 + $0x18] sm:$0xff] %vm1319, %v2095
          %2112 = vst.msk [vmem:[%s461 + $0x20] sm:$0xff] %vm1319, %v2096
          %2113 = vst.msk [vmem:[%s461 + $0x28] sm:$0xff] %vm1319, %v2097
          %2114 = vst.msk [vmem:[%s461 + $0x30] sm:$0xff] %vm1319, %v2098
          %2115 = vst.msk [vmem:[%s461 + $0x38] sm:$0xff] %vm1319, %v2099
          %2116 = vst.msk [vmem:[%s461 + $0x40] sm:$0xff] %vm1319, %v2100
          %2117 = vst.msk [vmem:[%s461 + $0x48] sm:$0xff] %vm1319, %v2101
          %2118 = vst.msk [vmem:[%s461 + $0x50] sm:$0xff] %vm1319, %v2102
          %2119 = vst.msk [vmem:[%s461 + $0x58] sm:$0xff] %vm1319, %v2103
          %2120 = vst.msk [vmem:[%s461 + $0x60] sm:$0xff] %vm1319, %v2104
          %2121 = vst.msk [vmem:[%s461 + $0x68] sm:$0xff] %vm1319, %v2105
          %2122 = vst.msk [vmem:[%s461 + $0x70] sm:$0xff] %vm1319, %v2106
          %2123 = vst.msk [vmem:[%s461 + $0x78] sm:$0xff] %vm1319, %v2107
        $region67: #{forward_packed_data.3} parent=54 // pred_fallthru
          _
        %s2124 = sand.u32 %s146, 1
        %s2125 = scalar_lea.sflag [#allocation7], %s2124
        %s2126 = sand.u32 %s146, 1
        %s2127 = smul.addr %s2126, 512
        %s2128 = scalar_lea.vmem [#allocation6], %s2127
        %s2129 = smul.u32 16, %s24
        %p2130 = scmp.lt.s32.totalorder %s2129, 15
        %s2131 = scalar_select %p2130, %s2129, 15
        %s2132 = smul.addr %s2131, 8
        %s2133 = scalar_lea.vmem %s5, %s2132
        // Predicated region
        $region68: #{forward_packed_data.3} parent=54 // pred_check
          %p2134 = pneg %p156
        $region69: #{forward_packed_data.3} parent=54 // pred_check_branch
          %2136 = sbr.rel (%p2134) target = $region71
        $region70: #{forward_packed_data.3} parent=54 // pred_region
          %s2137 = smul.u32 16, %s24
          %s2138 = smul.u32 4, %s25
          %s2140 = ssub.s32 8192, 8192
          %2141 = vsyncadd %s2125, %s2140
          %s2142 = smul.addr %s2137, 8
          %s2143 = sadd.s32 %s2138, %s2142
          %s2144 = smul.addr %s2143, 128
          %s2145 = scalar_lea.hbm %s4, %s2144
          %s2146 = sshll.u32 %s2128, 4
          %s2147 = int_to_ptr.vmem [resolvable:$true] %s2146
          %2152 = dma.vmem_to_hbm [thread:$0]  %s2147, 8192, %s2145, %s2125, 512, 1024, 32
        $region71: #{forward_packed_data.3} parent=54 // pred_fallthru
          _
        // Predicated region
        $region72: #{forward_packed_data.3} parent=54 // pred_check
          %p2153 = pneg %p182
        $region73: #{forward_packed_data.3} parent=54 // pred_check_branch
          %2155 = sbr.rel (%p2153) target = $region75
        $region74: #{forward_packed_data.3} parent=54 // pred_region
          %s2156 = smul.u32 16, %s24
        $region75: #{forward_packed_data.3} parent=54 // pred_fallthru
          _
        // Predicated region
        $region76: #{forward_packed_data.3} parent=54 // pred_check
          %p2157 = pneg %p182
        $region77: #{forward_packed_data.3} parent=54 // pred_check_branch
          %2159 = sbr.rel (%p2157) target = $region79
        $region78: #{forward_packed_data.3} parent=54 // pred_region
          %s2160 = smul.u32 16, %s24
          %p2161 = scmp.lt.s32.totalorder %s2160, 15
          %s2162 = scalar_select %p2161, %s2160, 15
          %s2163 = smul.addr %s2162, 8
          %s2164 = scalar_lea.vmem %s5, %s2163
        $region79: #{forward_packed_data.3} parent=54 // pred_fallthru
          _
      $region55: #{forward_packed_data.3} parent=5 // pred_fallthru
        _
      %p2165 = scmp.le.s32.totalorder 2, %s15
      // Predicated region
      $region80: #{forward_packed_data.3} parent=5 // pred_check
        %p2166 = pneg %p2165
      $region81: #{forward_packed_data.3} parent=5 // pred_check_branch
        %2168 = sbr.rel (%p2166) target = $region83
      $region82: #{forward_packed_data.3} parent=5 // pred_region
        %s2169 = ssub.s32 %s15, 2
        // Predicated region
        $region84: #{forward_packed_data.3} parent=82 // pred_check
          %p2170 = pneg %p162
        $region85: #{forward_packed_data.3} parent=82 // pred_check_branch
          %2172 = sbr.rel (%p2170) target = $region87
        $region86: #{forward_packed_data.3} parent=82 // pred_region
          %s2173 = sand.u32 %s147, 1
          %s2174 = scalar_lea.sflag [#allocation7], %s2173
          %s2175 = sand.u32 %s147, 1
          %s2176 = smul.addr %s2175, 512
          %s2177 = scalar_lea.vmem [#allocation6], %s2176
          %2178 = dma.done %s2174, 8192
        $region87: #{forward_packed_data.3} parent=82 // pred_fallthru
          _
      $region83: #{forward_packed_data.3} parent=5 // pred_fallthru
        _
    $region6: #{forward_packed_data.3} parent=1 // loop_footer
      %s19 = sadd.s32 1, %s15
    $region7: #{forward_packed_data.3} parent=1 // loop_footer_branch
      %14 = sbr.rel target = $region3
    $region8: #{forward_packed_data.3} parent=1 // loop_exit
      _
    %2179 = vsyncpa [#allocation7], 1
    %s2180 = scalar_lea.sflag [#allocation7], 1
    %2181 = vsyncpa %s2180, 1

</llo_original>
